<compile_context>
chip_gen: v7x
topology: tpu7x:2x2x1
jax: 0.10.0
libtpu: 0.0.40
codegen_flags: <defaults>
</compile_context>

<pallas_src>
import jax
import jax.numpy as jnp
from jax.experimental import pallas as pl
from jax.experimental.pallas import tpu as pltpu


# --------------------------------------------------------------------------
# Exact-GELU epilogue helpers (in-kernel, VPU/EUP only)
# --------------------------------------------------------------------------
_ERF_P = 0.3275911
_ERF_A = (0.254829592, -0.284496736, 1.421413741, -1.453152027, 1.061405429)


def _erf_poly(x):
    """Abramowitz & Stegun 7.1.26 erf approximation, |err| <= 1.5e-7 (f32)."""
    ax = jnp.abs(x)
    t = 1.0 / (1.0 + _ERF_P * ax)
    a1, a2, a3, a4, a5 = _ERF_A
    poly = t * (a1 + t * (a2 + t * (a3 + t * (a4 + t * a5))))
    r = 1.0 - poly * jnp.exp(-ax * ax)
    return jnp.where(x >= 0.0, r, -r)


def _gelu_erf(x):
    # TODO(synk): exact-erf GELU implemented with a 1.5e-7-accurate polynomial
    # (exp/mul/select only) instead of relying on lax.erf lowering in Mosaic.
    return 0.5 * x * (1.0 + _erf_poly(x * 0.7071067811865476))


# --------------------------------------------------------------------------
# Glue: zero-pad + FREE reshape packing adjacent column pairs into lanes
# --------------------------------------------------------------------------
def _pack_width_pairs(x_nhwc, wo):
    """(B, H, W, C) -> (B, H+2, wo+1, 2*C).

    Pads by 1 (the conv's zero padding) plus 0/1 extra columns for evenness,
    then reinterprets column pairs as extra channels.  Row-major order is
    preserved, so the reshape is free (no extra HBM pass beyond the pad)."""
    B, H, W, C = x_nhwc.shape
    wp = 2 * (wo + 1)
    xp = jnp.pad(x_nhwc, ((0, 0), (1, 1), (1, wp - W - 1), (0, 0)))
    return xp.reshape(B, H + 2, wo + 1, 2 * C)


# --------------------------------------------------------------------------
# Pallas kernel: in-kernel 3x3/stride-2 patch gather + matmul + bias (+ GELU)
# --------------------------------------------------------------------------
def _make_conv_kernel(ho, wo, cin, apply_gelu):
    """x_ref: (1, H+2, wo+1, 2*cin) column-pair-packed input (bf16)
       w_ref: (9*cin, cout) folded conv+BN weight (bf16)
       b_ref: (1, cout) folded BN bias (f32)
       o_ref: (1, ho, wo, cout) output"""

    def emit_row(x_ref, w_ref, b_ref, o_ref, i):
        taps = []
        for dy in range(3):
            row = x_ref[0, 2 * i + dy]                     # (wo+1, 2*cin)
            for dx in range(3):
                ow, pw = dx // 2, dx % 2
                # contiguous sublane/lane slice == tap (dy, dx) for all wo outputs
                taps.append(row[ow:ow + wo, pw * cin:(pw + 1) * cin])
        patch = jnp.concatenate(taps, axis=-1)             # (wo, 9*cin), bf16
        acc = jnp.dot(patch, w_ref[...],
                      preferred_element_type=jnp.float32) + b_ref[...]
        if apply_gelu:
            acc = _gelu_erf(acc)                           # fused exact GELU
        o_ref[0, i] = acc.astype(o_ref.dtype)

    def kernel(x_ref, w_ref, b_ref, o_ref):
        if ho <= 16:
            # short fixed trip count: full unroll gives the scheduler visibility
            for i in range(ho):
                emit_row(x_ref, w_ref, b_ref, o_ref, i)
        else:
            def body(i, carry):
                emit_row(x_ref, w_ref, b_ref, o_ref, i)
                return carry
            jax.lax.fori_loop(0, ho, body, 0)

    return kernel


def conv3x3_s2_bn(x_nhwc, w, bias, *, apply_gelu=False, out_dtype=jnp.float32):
    """3x3 / stride-2 / pad-1 conv with eval-mode BN folded into (w, bias),
    patch gather + matmul + bias (+ exact GELU) fused in one Pallas kernel.

    x_nhwc: (B, H, W, Cin); w: (3, 3, Cin, Cout) (HWIO); bias: (Cout,)."""
    B, H, W, Cin = x_nhwc.shape
    kh, kw, wcin, Cout = w.shape
    assert (kh, kw) == (3, 3) and wcin == Cin, "kernel specialised to k=3, s=2"
    Ho = (H - 1) // 2 + 1
    Wo = (W - 1) // 2 + 1

    # bf16 operands, f32 accumulation (review item #2).
    x4 = _pack_width_pairs(x_nhwc.astype(jnp.bfloat16), Wo)   # (B, H+2, Wo+1, 2*Cin)
    w2d = w.reshape(9 * Cin, Cout).astype(jnp.bfloat16)       # (9*Cin, Cout)
    b2d = bias.reshape(1, Cout).astype(jnp.float32)

    kernel = _make_conv_kernel(Ho, Wo, Cin, apply_gelu)

    out = pl.pallas_call(
        kernel,
        out_shape=jax.ShapeDtypeStruct((B, Ho, Wo, Cout), out_dtype),
        grid=(B,),
        in_specs=[
            # whole padded image per batch step (re-fetched only when b changes)
            pl.BlockSpec((1, H + 2, Wo + 1, 2 * Cin), lambda b: (b, 0, 0, 0)),
            # weights / bias: constant index_map -> resident in VMEM
            pl.BlockSpec((9 * Cin, Cout), lambda b: (0, 0)),
            pl.BlockSpec((1, Cout), lambda b: (0, 0)),
        ],
        out_specs=pl.BlockSpec((1, Ho, Wo, Cout), lambda b: (b, 0, 0, 0)),
        compiler_params=pltpu.CompilerParams(
            dimension_semantics=("parallel",)),
    )(x4, w2d, b2d)
    return out, (Ho, Wo)


# --------------------------------------------------------------------------
# Forward pass (matches StackConvPatchEmbed.forward, eval mode)
# --------------------------------------------------------------------------
def stack_conv_patch_embed_forward(x, params, *, channels_last_in=False,
                                   channels_last_out=False):
    """x: (B, Cin, H, W) NCHW (or NHWC if channels_last_in).
    Returns (y, (Ho, Wo)) with y in NCHW (or NHWC if channels_last_out)."""
    if not channels_last_in:
        x = jnp.transpose(x, (0, 2, 3, 1))                 # NCHW -> NHWC (once)
    # conv1 + BN + exact GELU, bf16 intermediate
    y, _ = conv3x3_s2_bn(x, params["w1"], params["b1"],
                         apply_gelu=True, out_dtype=jnp.bfloat16)
    # conv2 + BN, f32 output
    y, out_size = conv3x3_s2_bn(y, params["w2"], params["b2"],
                                apply_gelu=False, out_dtype=jnp.float32)
    if not channels_last_out:
        y = jnp.transpose(y, (0, 3, 1, 2))                 # NHWC -> NCHW (once)
    return y, out_size


# --------------------------------------------------------------------------
# Deterministic parameter construction (conv + eval-mode BN, folded)
# --------------------------------------------------------------------------
def init_params(key, in_channels, embed_dims, kernel_size=3, bn_eps=1e-5):
    # TODO(synk): training-mode BatchNorm (batch statistics) is not implemented;
    # eval-mode BN is folded into the conv weights/bias below.
    mid = embed_dims // 2
    ks = iter(jax.random.split(key, 16))

    def conv_bn(cin, cout):
        w = 0.05 * jax.random.normal(
            next(ks), (kernel_size, kernel_size, cin, cout), jnp.float32)
        b = 0.05 * jax.random.normal(next(ks), (cout,), jnp.float32)
        gamma = 1.0 + 0.1 * jax.random.normal(next(ks), (cout,), jnp.float32)
        beta = 0.1 * jax.random.normal(next(ks), (cout,), jnp.float32)
        rmean = 0.1 * jax.random.normal(next(ks), (cout,), jnp.float32)
        rvar = 1.0 + 0.1 * jax.random.uniform(next(ks), (cout,), jnp.float32)
        s = gamma / jnp.sqrt(rvar + bn_eps)                # fold BN into conv
        return w * s, (b - rmean) * s + beta

    w1, b1 = conv_bn(in_channels, mid)
    w2, b2 = conv_bn(mid, embed_dims)
    return dict(w1=w1, b1=b1, w2=w2, b2=b2)


# --------------------------------------------------------------------------
# Pure-XLA reference with the identical bf16-operand / f32-accumulation recipe
# --------------------------------------------------------------------------
@jax.jit
def _reference_forward(x_nchw, params):
    x = jnp.transpose(x_nchw, (0, 2, 3, 1)).astype(jnp.bfloat16)

    def conv(x, w, b):
        y = jax.lax.conv_general_dilated(
            x, w.astype(jnp.bfloat16), window_strides=(2, 2),
            padding=((1, 1), (1, 1)),
            dimension_numbers=("NHWC", "HWIO", "NHWC"),
            preferred_element_type=jnp.float32)
        return y + b.reshape(1, 1, 1, -1)

    y = conv(x, params["w1"], params["b1"])
    y = jax.nn.gelu(y, approximate=False).astype(jnp.bfloat16)
    y = conv(y, params["w2"], params["b2"]).astype(jnp.float32)
    return jnp.transpose(y, (0, 3, 1, 2))


# --------------------------------------------------------------------------
if __name__ == "__main__":
    B, Cin, H, W = 2, 4, 16, 16
    embed_dims = 128          # conv1 -> 64 channels, conv2 -> 128 channels

    key = jax.random.PRNGKey(0)
    pkey, xkey = jax.random.split(key)
    params = init_params(pkey, Cin, embed_dims)
    x = jax.random.normal(xkey, (B, Cin, H, W), jnp.float32)

    fwd = jax.jit(stack_conv_patch_embed_forward)
    y, out_size = fwd(x, params)
    y = jax.block_until_ready(y)

    Ho, Wo = H // 4, W // 4
    assert y.shape == (B, embed_dims, Ho, Wo), y.shape
    assert y.dtype == jnp.float32, y.dtype
    assert (int(out_size[0]), int(out_size[1])) == (Ho, Wo)

    # Numerical check against an XLA conv reference that uses the same
    # bf16-operand / f32-accumulation recipe (diffs are accumulation-order only).
    y_ref = jax.block_until_ready(_reference_forward(x, params))
    max_err = float(jnp.max(jnp.abs(y - y_ref)))
    assert max_err < 1e-2, f"max abs error vs XLA reference: {max_err}"

    print("KERNEL_OK")
</pallas_src>

<mosaic_0001>
module attributes {stable_mosaic.version = 11 : i64} {
  func.func @kernel(%arg0: i32, %arg1: memref<1x18x9x8xbf16, #tpu.memory_space<vmem>>, %arg2: memref<36x64xbf16, #tpu.memory_space<vmem>>, %arg3: memref<1x64xf32, #tpu.memory_space<vmem>>, %arg4: memref<1x8x8x64xbf16, #tpu.memory_space<vmem>>) attributes {dimension_semantics = [#tpu.dimension_semantics<parallel>], iteration_bounds = array<i64: 2>, scalar_prefetch = 0 : i64, scratch_operands = 0 : i64, tpu.core_type = #tpu.core_type<tc>, window_params = [{transform_indices = @transform_0, window_bounds = array<i64: 1, 18, 9, 8>}, {pipeline_mode = #tpu.pipeline_mode<synchronous>, transform_indices = @transform_1, window_bounds = array<i64: 36, 64>}, {pipeline_mode = #tpu.pipeline_mode<synchronous>, transform_indices = @transform_2, window_bounds = array<i64: 1, 64>}, {transform_indices = @transform_3, window_bounds = array<i64: 1, 8, 8, 64>}]} {
    %c0 = arith.constant 0 : index
    %c0_0 = arith.constant 0 : index
    %c0_1 = arith.constant 0 : index
    %c0_2 = arith.constant 0 : index
    %0 = vector.load %arg1[%c0, %c0_0, %c0_1, %c0_2] : memref<1x18x9x8xbf16, #tpu.memory_space<vmem>>, vector<1x1x9x8xbf16>
    %1 = vector.shape_cast %0 : vector<1x1x9x8xbf16> to vector<9x8xbf16>
    %2 = vector.extract_strided_slice %1 {offsets = [0, 0], sizes = [8, 4], strides = [1, 1]} : vector<9x8xbf16> to vector<8x4xbf16>
    %3 = vector.extract_strided_slice %1 {offsets = [0, 4], sizes = [8, 4], strides = [1, 1]} : vector<9x8xbf16> to vector<8x4xbf16>
    %4 = vector.extract_strided_slice %1 {offsets = [1, 0], sizes = [8, 4], strides = [1, 1]} : vector<9x8xbf16> to vector<8x4xbf16>
    %c0_3 = arith.constant 0 : index
    %c1 = arith.constant 1 : index
    %c0_4 = arith.constant 0 : index
    %c0_5 = arith.constant 0 : index
    %5 = vector.load %arg1[%c0_3, %c1, %c0_4, %c0_5] : memref<1x18x9x8xbf16, #tpu.memory_space<vmem>>, vector<1x1x9x8xbf16>
    %6 = vector.shape_cast %5 : vector<1x1x9x8xbf16> to vector<9x8xbf16>
    %7 = vector.extract_strided_slice %6 {offsets = [0, 0], sizes = [8, 4], strides = [1, 1]} : vector<9x8xbf16> to vector<8x4xbf16>
    %8 = vector.extract_strided_slice %6 {offsets = [0, 4], sizes = [8, 4], strides = [1, 1]} : vector<9x8xbf16> to vector<8x4xbf16>
    %9 = vector.extract_strided_slice %6 {offsets = [1, 0], sizes = [8, 4], strides = [1, 1]} : vector<9x8xbf16> to vector<8x4xbf16>
    %c0_6 = arith.constant 0 : index
    %c2 = arith.constant 2 : index
    %c0_7 = arith.constant 0 : index
    %c0_8 = arith.constant 0 : index
    %10 = vector.load %arg1[%c0_6, %c2, %c0_7, %c0_8] : memref<1x18x9x8xbf16, #tpu.memory_space<vmem>>, vector<1x1x9x8xbf16>
    %11 = vector.shape_cast %10 : vector<1x1x9x8xbf16> to vector<9x8xbf16>
    %12 = vector.extract_strided_slice %11 {offsets = [0, 0], sizes = [8, 4], strides = [1, 1]} : vector<9x8xbf16> to vector<8x4xbf16>
    %13 = vector.extract_strided_slice %11 {offsets = [0, 4], sizes = [8, 4], strides = [1, 1]} : vector<9x8xbf16> to vector<8x4xbf16>
    %14 = vector.extract_strided_slice %11 {offsets = [1, 0], sizes = [8, 4], strides = [1, 1]} : vector<9x8xbf16> to vector<8x4xbf16>
    %15 = tpu.concatenate %2, %3, %4, %7, %8, %9, %12, %13, %14 in 1 : vector<8x4xbf16>, vector<8x4xbf16>, vector<8x4xbf16>, vector<8x4xbf16>, vector<8x4xbf16>, vector<8x4xbf16>, vector<8x4xbf16>, vector<8x4xbf16>, vector<8x4xbf16> -> vector<8x36xbf16>
    %c0_9 = arith.constant 0 : index
    %c0_10 = arith.constant 0 : index
    %16 = vector.load %arg2[%c0_9, %c0_10] : memref<36x64xbf16, #tpu.memory_space<vmem>>, vector<36x64xbf16>
    %cst = arith.constant dense<0.000000e+00> : vector<8x64xf32>
    %17 = tpu.matmul %15, %16, %cst {dimension_numbers = #tpu.dot_dimension_numbers<[1], [0], [0], [1], [0, 0, 1, 1], [], []>} : vector<8x36xbf16>, vector<36x64xbf16>, vector<8x64xf32> -> vector<8x64xf32>
    %c0_11 = arith.constant 0 : index
    %c0_12 = arith.constant 0 : index
    %18 = vector.load %arg3[%c0_11, %c0_12] : memref<1x64xf32, #tpu.memory_space<vmem>>, vector<1x64xf32>
    %19 = vector.broadcast %18 : vector<1x64xf32> to vector<8x64xf32>
    %20 = arith.addf %17, %19 : vector<8x64xf32>
    %cst_13 = arith.constant 5.000000e-01 : f32
    %21 = vector.broadcast %cst_13 : f32 to vector<8x64xf32>
    %22 = arith.mulf %21, %20 : vector<8x64xf32>
    %cst_14 = arith.constant 0.707106769 : f32
    %23 = vector.broadcast %cst_14 : f32 to vector<8x64xf32>
    %24 = arith.mulf %20, %23 : vector<8x64xf32>
    %25 = math.absf %24 : vector<8x64xf32>
    %cst_15 = arith.constant 0.327591091 : f32
    %26 = vector.broadcast %cst_15 : f32 to vector<8x64xf32>
    %27 = arith.mulf %26, %25 : vector<8x64xf32>
    %cst_16 = arith.constant 1.000000e+00 : f32
    %28 = vector.broadcast %cst_16 : f32 to vector<8x64xf32>
    %29 = arith.addf %28, %27 : vector<8x64xf32>
    %cst_17 = arith.constant 1.000000e+00 : f32
    %30 = vector.broadcast %cst_17 : f32 to vector<8x64xf32>
    %31 = arith.divf %30, %29 : vector<8x64xf32>
    %cst_18 = arith.constant 1.06140542 : f32
    %32 = vector.broadcast %cst_18 : f32 to vector<8x64xf32>
    %33 = arith.mulf %31, %32 : vector<8x64xf32>
    %cst_19 = arith.constant -1.45315206 : f32
    %34 = vector.broadcast %cst_19 : f32 to vector<8x64xf32>
    %35 = arith.addf %34, %33 : vector<8x64xf32>
    %36 = arith.mulf %31, %35 : vector<8x64xf32>
    %cst_20 = arith.constant 1.42141378 : f32
    %37 = vector.broadcast %cst_20 : f32 to vector<8x64xf32>
    %38 = arith.addf %37, %36 : vector<8x64xf32>
    %39 = arith.mulf %31, %38 : vector<8x64xf32>
    %cst_21 = arith.constant -0.284496725 : f32
    %40 = vector.broadcast %cst_21 : f32 to vector<8x64xf32>
    %41 = arith.addf %40, %39 : vector<8x64xf32>
    %42 = arith.mulf %31, %41 : vector<8x64xf32>
    %cst_22 = arith.constant 0.254829586 : f32
    %43 = vector.broadcast %cst_22 : f32 to vector<8x64xf32>
    %44 = arith.addf %43, %42 : vector<8x64xf32>
    %45 = arith.mulf %31, %44 : vector<8x64xf32>
    %cst_23 = arith.constant 0.000000e+00 : f32
    %46 = vector.broadcast %cst_23 : f32 to vector<8x64xf32>
    %47 = arith.subf %46, %25 : vector<8x64xf32>
    %48 = arith.mulf %47, %25 : vector<8x64xf32>
    %49 = math.exp %48 : vector<8x64xf32>
    %50 = arith.mulf %45, %49 : vector<8x64xf32>
    %cst_24 = arith.constant 1.000000e+00 : f32
    %51 = vector.broadcast %cst_24 : f32 to vector<8x64xf32>
    %52 = arith.subf %51, %50 : vector<8x64xf32>
    %cst_25 = arith.constant 0.000000e+00 : f32
    %53 = vector.broadcast %cst_25 : f32 to vector<8x64xf32>
    %54 = arith.cmpf oge, %24, %53 : vector<8x64xf32>
    %cst_26 = arith.constant 0.000000e+00 : f32
    %55 = vector.broadcast %cst_26 : f32 to vector<8x64xf32>
    %56 = arith.subf %55, %52 : vector<8x64xf32>
    %57 = arith.select %54, %52, %56 : vector<8x64xi1>, vector<8x64xf32>
    %cst_27 = arith.constant 1.000000e+00 : f32
    %58 = vector.broadcast %cst_27 : f32 to vector<8x64xf32>
    %59 = arith.addf %58, %57 : vector<8x64xf32>
    %60 = arith.mulf %22, %59 : vector<8x64xf32>
    %61 = arith.truncf %60 : vector<8x64xf32> to vector<8x64xbf16>
    %c0_28 = arith.constant 0 : index
    %c0_29 = arith.constant 0 : index
    %c0_30 = arith.constant 0 : index
    %c0_31 = arith.constant 0 : index
    %62 = vector.load %arg4[%c0_28, %c0_29, %c0_30, %c0_31] : memref<1x8x8x64xbf16, #tpu.memory_space<vmem>>, vector<1x1x8x64xbf16>
    %63 = vector.shape_cast %62 : vector<1x1x8x64xbf16> to vector<8x64xbf16>
    %64 = vector.shape_cast %61 : vector<8x64xbf16> to vector<1x1x8x64xbf16>
    tpu.vector_store %arg4[%c0_28, %c0_29, %c0_30, %c0_31], %64 {strides = array<i32>} : memref<1x8x8x64xbf16, #tpu.memory_space<vmem>>, vector<1x1x8x64xbf16>,
    %c0_32 = arith.constant 0 : index
    %c2_33 = arith.constant 2 : index
    %c0_34 = arith.constant 0 : index
    %c0_35 = arith.constant 0 : index
    %65 = vector.load %arg1[%c0_32, %c2_33, %c0_34, %c0_35] : memref<1x18x9x8xbf16, #tpu.memory_space<vmem>>, vector<1x1x9x8xbf16>
    %66 = vector.shape_cast %65 : vector<1x1x9x8xbf16> to vector<9x8xbf16>
    %67 = vector.extract_strided_slice %66 {offsets = [0, 0], sizes = [8, 4], strides = [1, 1]} : vector<9x8xbf16> to vector<8x4xbf16>
    %68 = vector.extract_strided_slice %66 {offsets = [0, 4], sizes = [8, 4], strides = [1, 1]} : vector<9x8xbf16> to vector<8x4xbf16>
    %69 = vector.extract_strided_slice %66 {offsets = [1, 0], sizes = [8, 4], strides = [1, 1]} : vector<9x8xbf16> to vector<8x4xbf16>
    %c0_36 = arith.constant 0 : index
    %c3 = arith.constant 3 : index
    %c0_37 = arith.constant 0 : index
    %c0_38 = arith.constant 0 : index
    %70 = vector.load %arg1[%c0_36, %c3, %c0_37, %c0_38] : memref<1x18x9x8xbf16, #tpu.memory_space<vmem>>, vector<1x1x9x8xbf16>
    %71 = vector.shape_cast %70 : vector<1x1x9x8xbf16> to vector<9x8xbf16>
    %72 = vector.extract_strided_slice %71 {offsets = [0, 0], sizes = [8, 4], strides = [1, 1]} : vector<9x8xbf16> to vector<8x4xbf16>
    %73 = vector.extract_strided_slice %71 {offsets = [0, 4], sizes = [8, 4], strides = [1, 1]} : vector<9x8xbf16> to vector<8x4xbf16>
    %74 = vector.extract_strided_slice %71 {offsets = [1, 0], sizes = [8, 4], strides = [1, 1]} : vector<9x8xbf16> to vector<8x4xbf16>
    %c0_39 = arith.constant 0 : index
    %c4 = arith.constant 4 : index
    %c0_40 = arith.constant 0 : index
    %c0_41 = arith.constant 0 : index
    %75 = vector.load %arg1[%c0_39, %c4, %c0_40, %c0_41] : memref<1x18x9x8xbf16, #tpu.memory_space<vmem>>, vector<1x1x9x8xbf16>
    %76 = vector.shape_cast %75 : vector<1x1x9x8xbf16> to vector<9x8xbf16>
    %77 = vector.extract_strided_slice %76 {offsets = [0, 0], sizes = [8, 4], strides = [1, 1]} : vector<9x8xbf16> to vector<8x4xbf16>
    %78 = vector.extract_strided_slice %76 {offsets = [0, 4], sizes = [8, 4], strides = [1, 1]} : vector<9x8xbf16> to vector<8x4xbf16>
    %79 = vector.extract_strided_slice %76 {offsets = [1, 0], sizes = [8, 4], strides = [1, 1]} : vector<9x8xbf16> to vector<8x4xbf16>
    %80 = tpu.concatenate %67, %68, %69, %72, %73, %74, %77, %78, %79 in 1 : vector<8x4xbf16>, vector<8x4xbf16>, vector<8x4xbf16>, vector<8x4xbf16>, vector<8x4xbf16>, vector<8x4xbf16>, vector<8x4xbf16>, vector<8x4xbf16>, vector<8x4xbf16> -> vector<8x36xbf16>
    %c0_42 = arith.constant 0 : index
    %c0_43 = arith.constant 0 : index
    %81 = vector.load %arg2[%c0_42, %c0_43] : memref<36x64xbf16, #tpu.memory_space<vmem>>, vector<36x64xbf16>
    %cst_44 = arith.constant dense<0.000000e+00> : vector<8x64xf32>
    %82 = tpu.matmul %80, %81, %cst_44 {dimension_numbers = #tpu.dot_dimension_numbers<[1], [0], [0], [1], [0, 0, 1, 1], [], []>} : vector<8x36xbf16>, vector<36x64xbf16>, vector<8x64xf32> -> vector<8x64xf32>
    %c0_45 = arith.constant 0 : index
    %c0_46 = arith.constant 0 : index
    %83 = vector.load %arg3[%c0_45, %c0_46] : memref<1x64xf32, #tpu.memory_space<vmem>>, vector<1x64xf32>
    %84 = vector.broadcast %83 : vector<1x64xf32> to vector<8x64xf32>
    %85 = arith.addf %82, %84 : vector<8x64xf32>
    %cst_47 = arith.constant 5.000000e-01 : f32
    %86 = vector.broadcast %cst_47 : f32 to vector<8x64xf32>
    %87 = arith.mulf %86, %85 : vector<8x64xf32>
    %cst_48 = arith.constant 0.707106769 : f32
    %88 = vector.broadcast %cst_48 : f32 to vector<8x64xf32>
    %89 = arith.mulf %85, %88 : vector<8x64xf32>
    %90 = math.absf %89 : vector<8x64xf32>
    %cst_49 = arith.constant 0.327591091 : f32
    %91 = vector.broadcast %cst_49 : f32 to vector<8x64xf32>
    %92 = arith.mulf %91, %90 : vector<8x64xf32>
    %cst_50 = arith.constant 1.000000e+00 : f32
    %93 = vector.broadcast %cst_50 : f32 to vector<8x64xf32>
    %94 = arith.addf %93, %92 : vector<8x64xf32>
    %cst_51 = arith.constant 1.000000e+00 : f32
    %95 = vector.broadcast %cst_51 : f32 to vector<8x64xf32>
    %96 = arith.divf %95, %94 : vector<8x64xf32>
    %cst_52 = arith.constant 1.06140542 : f32
    %97 = vector.broadcast %cst_52 : f32 to vector<8x64xf32>
    %98 = arith.mulf %96, %97 : vector<8x64xf32>
    %cst_53 = arith.constant -1.45315206 : f32
    %99 = vector.broadcast %cst_53 : f32 to vector<8x64xf32>
    %100 = arith.addf %99, %98 : vector<8x64xf32>
    %101 = arith.mulf %96, %100 : vector<8x64xf32>
    %cst_54 = arith.constant 1.42141378 : f32
    %102 = vector.broadcast %cst_54 : f32 to vector<8x64xf32>
    %103 = arith.addf %102, %101 : vector<8x64xf32>
    %104 = arith.mulf %96, %103 : vector<8x64xf32>
    %cst_55 = arith.constant -0.284496725 : f32
    %105 = vector.broadcast %cst_55 : f32 to vector<8x64xf32>
    %106 = arith.addf %105, %104 : vector<8x64xf32>
    %107 = arith.mulf %96, %106 : vector<8x64xf32>
    %cst_56 = arith.constant 0.254829586 : f32
    %108 = vector.broadcast %cst_56 : f32 to vector<8x64xf32>
    %109 = arith.addf %108, %107 : vector<8x64xf32>
    %110 = arith.mulf %96, %109 : vector<8x64xf32>
    %cst_57 = arith.constant 0.000000e+00 : f32
    %111 = vector.broadcast %cst_57 : f32 to vector<8x64xf32>
    %112 = arith.subf %111, %90 : vector<8x64xf32>
    %113 = arith.mulf %112, %90 : vector<8x64xf32>
    %114 = math.exp %113 : vector<8x64xf32>
    %115 = arith.mulf %110, %114 : vector<8x64xf32>
    %cst_58 = arith.constant 1.000000e+00 : f32
    %116 = vector.broadcast %cst_58 : f32 to vector<8x64xf32>
    %117 = arith.subf %116, %115 : vector<8x64xf32>
    %cst_59 = arith.constant 0.000000e+00 : f32
    %118 = vector.broadcast %cst_59 : f32 to vector<8x64xf32>
    %119 = arith.cmpf oge, %89, %118 : vector<8x64xf32>
    %cst_60 = arith.constant 0.000000e+00 : f32
    %120 = vector.broadcast %cst_60 : f32 to vector<8x64xf32>
    %121 = arith.subf %120, %117 : vector<8x64xf32>
    %122 = arith.select %119, %117, %121 : vector<8x64xi1>, vector<8x64xf32>
    %cst_61 = arith.constant 1.000000e+00 : f32
    %123 = vector.broadcast %cst_61 : f32 to vector<8x64xf32>
    %124 = arith.addf %123, %122 : vector<8x64xf32>
    %125 = arith.mulf %87, %124 : vector<8x64xf32>
    %126 = arith.truncf %125 : vector<8x64xf32> to vector<8x64xbf16>
    %c0_62 = arith.constant 0 : index
    %c1_63 = arith.constant 1 : index
    %c0_64 = arith.constant 0 : index
    %c0_65 = arith.constant 0 : index
    %127 = vector.load %arg4[%c0_62, %c1_63, %c0_64, %c0_65] : memref<1x8x8x64xbf16, #tpu.memory_space<vmem>>, vector<1x1x8x64xbf16>
    %128 = vector.shape_cast %127 : vector<1x1x8x64xbf16> to vector<8x64xbf16>
    %129 = vector.shape_cast %126 : vector<8x64xbf16> to vector<1x1x8x64xbf16>
    tpu.vector_store %arg4[%c0_62, %c1_63, %c0_64, %c0_65], %129 {strides = array<i32>} : memref<1x8x8x64xbf16, #tpu.memory_space<vmem>>, vector<1x1x8x64xbf16>,
    %c0_66 = arith.constant 0 : index
    %c4_67 = arith.constant 4 : index
    %c0_68 = arith.constant 0 : index
    %c0_69 = arith.constant 0 : index
    %130 = vector.load %arg1[%c0_66, %c4_67, %c0_68, %c0_69] : memref<1x18x9x8xbf16, #tpu.memory_space<vmem>>, vector<1x1x9x8xbf16>
    %131 = vector.shape_cast %130 : vector<1x1x9x8xbf16> to vector<9x8xbf16>
    %132 = vector.extract_strided_slice %131 {offsets = [0, 0], sizes = [8, 4], strides = [1, 1]} : vector<9x8xbf16> to vector<8x4xbf16>
    %133 = vector.extract_strided_slice %131 {offsets = [0, 4], sizes = [8, 4], strides = [1, 1]} : vector<9x8xbf16> to vector<8x4xbf16>
    %134 = vector.extract_strided_slice %131 {offsets = [1, 0], sizes = [8, 4], strides = [1, 1]} : vector<9x8xbf16> to vector<8x4xbf16>
    %c0_70 = arith.constant 0 : index
    %c5 = arith.constant 5 : index
    %c0_71 = arith.constant 0 : index
    %c0_72 = arith.constant 0 : index
    %135 = vector.load %arg1[%c0_70, %c5, %c0_71, %c0_72] : memref<1x18x9x8xbf16, #tpu.memory_space<vmem>>, vector<1x1x9x8xbf16>
    %136 = vector.shape_cast %135 : vector<1x1x9x8xbf16> to vector<9x8xbf16>
    %137 = vector.extract_strided_slice %136 {offsets = [0, 0], sizes = [8, 4], strides = [1, 1]} : vector<9x8xbf16> to vector<8x4xbf16>
    %138 = vector.extract_strided_slice %136 {offsets = [0, 4], sizes = [8, 4], strides = [1, 1]} : vector<9x8xbf16> to vector<8x4xbf16>
    %139 = vector.extract_strided_slice %136 {offsets = [1, 0], sizes = [8, 4], strides = [1, 1]} : vector<9x8xbf16> to vector<8x4xbf16>
    %c0_73 = arith.constant 0 : index
    %c6 = arith.constant 6 : index
    %c0_74 = arith.constant 0 : index
    %c0_75 = arith.constant 0 : index
    %140 = vector.load %arg1[%c0_73, %c6, %c0_74, %c0_75] : memref<1x18x9x8xbf16, #tpu.memory_space<vmem>>, vector<1x1x9x8xbf16>
    %141 = vector.shape_cast %140 : vector<1x1x9x8xbf16> to vector<9x8xbf16>
    %142 = vector.extract_strided_slice %141 {offsets = [0, 0], sizes = [8, 4], strides = [1, 1]} : vector<9x8xbf16> to vector<8x4xbf16>
    %143 = vector.extract_strided_slice %141 {offsets = [0, 4], sizes = [8, 4], strides = [1, 1]} : vector<9x8xbf16> to vector<8x4xbf16>
    %144 = vector.extract_strided_slice %141 {offsets = [1, 0], sizes = [8, 4], strides = [1, 1]} : vector<9x8xbf16> to vector<8x4xbf16>
    %145 = tpu.concatenate %132, %133, %134, %137, %138, %139, %142, %143, %144 in 1 : vector<8x4xbf16>, vector<8x4xbf16>, vector<8x4xbf16>, vector<8x4xbf16>, vector<8x4xbf16>, vector<8x4xbf16>, vector<8x4xbf16>, vector<8x4xbf16>, vector<8x4xbf16> -> vector<8x36xbf16>
    %c0_76 = arith.constant 0 : index
    %c0_77 = arith.constant 0 : index
    %146 = vector.load %arg2[%c0_76, %c0_77] : memref<36x64xbf16, #tpu.memory_space<vmem>>, vector<36x64xbf16>
    %cst_78 = arith.constant dense<0.000000e+00> : vector<8x64xf32>
    %147 = tpu.matmul %145, %146, %cst_78 {dimension_numbers = #tpu.dot_dimension_numbers<[1], [0], [0], [1], [0, 0, 1, 1], [], []>} : vector<8x36xbf16>, vector<36x64xbf16>, vector<8x64xf32> -> vector<8x64xf32>
    %c0_79 = arith.constant 0 : index
    %c0_80 = arith.constant 0 : index
    %148 = vector.load %arg3[%c0_79, %c0_80] : memref<1x64xf32, #tpu.memory_space<vmem>>, vector<1x64xf32>
    %149 = vector.broadcast %148 : vector<1x64xf32> to vector<8x64xf32>
    %150 = arith.addf %147, %149 : vector<8x64xf32>
    %cst_81 = arith.constant 5.000000e-01 : f32
    %151 = vector.broadcast %cst_81 : f32 to vector<8x64xf32>
    %152 = arith.mulf %151, %150 : vector<8x64xf32>
    %cst_82 = arith.constant 0.707106769 : f32
    %153 = vector.broadcast %cst_82 : f32 to vector<8x64xf32>
    %154 = arith.mulf %150, %153 : vector<8x64xf32>
    %155 = math.absf %154 : vector<8x64xf32>
    %cst_83 = arith.constant 0.327591091 : f32
    %156 = vector.broadcast %cst_83 : f32 to vector<8x64xf32>
    %157 = arith.mulf %156, %155 : vector<8x64xf32>
    %cst_84 = arith.constant 1.000000e+00 : f32
    %158 = vector.broadcast %cst_84 : f32 to vector<8x64xf32>
    %159 = arith.addf %158, %157 : vector<8x64xf32>
    %cst_85 = arith.constant 1.000000e+00 : f32
    %160 = vector.broadcast %cst_85 : f32 to vector<8x64xf32>
    %161 = arith.divf %160, %159 : vector<8x64xf32>
    %cst_86 = arith.constant 1.06140542 : f32
    %162 = vector.broadcast %cst_86 : f32 to vector<8x64xf32>
    %163 = arith.mulf %161, %162 : vector<8x64xf32>
    %cst_87 = arith.constant -1.45315206 : f32
    %164 = vector.broadcast %cst_87 : f32 to vector<8x64xf32>
    %165 = arith.addf %164, %163 : vector<8x64xf32>
    %166 = arith.mulf %161, %165 : vector<8x64xf32>
    %cst_88 = arith.constant 1.42141378 : f32
    %167 = vector.broadcast %cst_88 : f32 to vector<8x64xf32>
    %168 = arith.addf %167, %166 : vector<8x64xf32>
    %169 = arith.mulf %161, %168 : vector<8x64xf32>
    %cst_89 = arith.constant -0.284496725 : f32
    %170 = vector.broadcast %cst_89 : f32 to vector<8x64xf32>
    %171 = arith.addf %170, %169 : vector<8x64xf32>
    %172 = arith.mulf %161, %171 : vector<8x64xf32>
    %cst_90 = arith.constant 0.254829586 : f32
    %173 = vector.broadcast %cst_90 : f32 to vector<8x64xf32>
    %174 = arith.addf %173, %172 : vector<8x64xf32>
    %175 = arith.mulf %161, %174 : vector<8x64xf32>
    %cst_91 = arith.constant 0.000000e+00 : f32
    %176 = vector.broadcast %cst_91 : f32 to vector<8x64xf32>
    %177 = arith.subf %176, %155 : vector<8x64xf32>
    %178 = arith.mulf %177, %155 : vector<8x64xf32>
    %179 = math.exp %178 : vector<8x64xf32>
    %180 = arith.mulf %175, %179 : vector<8x64xf32>
    %cst_92 = arith.constant 1.000000e+00 : f32
    %181 = vector.broadcast %cst_92 : f32 to vector<8x64xf32>
    %182 = arith.subf %181, %180 : vector<8x64xf32>
    %cst_93 = arith.constant 0.000000e+00 : f32
    %183 = vector.broadcast %cst_93 : f32 to vector<8x64xf32>
    %184 = arith.cmpf oge, %154, %183 : vector<8x64xf32>
    %cst_94 = arith.constant 0.000000e+00 : f32
    %185 = vector.broadcast %cst_94 : f32 to vector<8x64xf32>
    %186 = arith.subf %185, %182 : vector<8x64xf32>
    %187 = arith.select %184, %182, %186 : vector<8x64xi1>, vector<8x64xf32>
    %cst_95 = arith.constant 1.000000e+00 : f32
    %188 = vector.broadcast %cst_95 : f32 to vector<8x64xf32>
    %189 = arith.addf %188, %187 : vector<8x64xf32>
    %190 = arith.mulf %152, %189 : vector<8x64xf32>
    %191 = arith.truncf %190 : vector<8x64xf32> to vector<8x64xbf16>
    %c0_96 = arith.constant 0 : index
    %c2_97 = arith.constant 2 : index
    %c0_98 = arith.constant 0 : index
    %c0_99 = arith.constant 0 : index
    %192 = vector.load %arg4[%c0_96, %c2_97, %c0_98, %c0_99] : memref<1x8x8x64xbf16, #tpu.memory_space<vmem>>, vector<1x1x8x64xbf16>
    %193 = vector.shape_cast %192 : vector<1x1x8x64xbf16> to vector<8x64xbf16>
    %194 = vector.shape_cast %191 : vector<8x64xbf16> to vector<1x1x8x64xbf16>
    tpu.vector_store %arg4[%c0_96, %c2_97, %c0_98, %c0_99], %194 {strides = array<i32>} : memref<1x8x8x64xbf16, #tpu.memory_space<vmem>>, vector<1x1x8x64xbf16>,
    %c0_100 = arith.constant 0 : index
    %c6_101 = arith.constant 6 : index
    %c0_102 = arith.constant 0 : index
    %c0_103 = arith.constant 0 : index
    %195 = vector.load %arg1[%c0_100, %c6_101, %c0_102, %c0_103] : memref<1x18x9x8xbf16, #tpu.memory_space<vmem>>, vector<1x1x9x8xbf16>
    %196 = vector.shape_cast %195 : vector<1x1x9x8xbf16> to vector<9x8xbf16>
    %197 = vector.extract_strided_slice %196 {offsets = [0, 0], sizes = [8, 4], strides = [1, 1]} : vector<9x8xbf16> to vector<8x4xbf16>
    %198 = vector.extract_strided_slice %196 {offsets = [0, 4], sizes = [8, 4], strides = [1, 1]} : vector<9x8xbf16> to vector<8x4xbf16>
    %199 = vector.extract_strided_slice %196 {offsets = [1, 0], sizes = [8, 4], strides = [1, 1]} : vector<9x8xbf16> to vector<8x4xbf16>
    %c0_104 = arith.constant 0 : index
    %c7 = arith.constant 7 : index
    %c0_105 = arith.constant 0 : index
    %c0_106 = arith.constant 0 : index
    %200 = vector.load %arg1[%c0_104, %c7, %c0_105, %c0_106] : memref<1x18x9x8xbf16, #tpu.memory_space<vmem>>, vector<1x1x9x8xbf16>
    %201 = vector.shape_cast %200 : vector<1x1x9x8xbf16> to vector<9x8xbf16>
    %202 = vector.extract_strided_slice %201 {offsets = [0, 0], sizes = [8, 4], strides = [1, 1]} : vector<9x8xbf16> to vector<8x4xbf16>
    %203 = vector.extract_strided_slice %201 {offsets = [0, 4], sizes = [8, 4], strides = [1, 1]} : vector<9x8xbf16> to vector<8x4xbf16>
    %204 = vector.extract_strided_slice %201 {offsets = [1, 0], sizes = [8, 4], strides = [1, 1]} : vector<9x8xbf16> to vector<8x4xbf16>
    %c0_107 = arith.constant 0 : index
    %c8 = arith.constant 8 : index
    %c0_108 = arith.constant 0 : index
    %c0_109 = arith.constant 0 : index
    %205 = vector.load %arg1[%c0_107, %c8, %c0_108, %c0_109] : memref<1x18x9x8xbf16, #tpu.memory_space<vmem>>, vector<1x1x9x8xbf16>
    %206 = vector.shape_cast %205 : vector<1x1x9x8xbf16> to vector<9x8xbf16>
    %207 = vector.extract_strided_slice %206 {offsets = [0, 0], sizes = [8, 4], strides = [1, 1]} : vector<9x8xbf16> to vector<8x4xbf16>
    %208 = vector.extract_strided_slice %206 {offsets = [0, 4], sizes = [8, 4], strides = [1, 1]} : vector<9x8xbf16> to vector<8x4xbf16>
    %209 = vector.extract_strided_slice %206 {offsets = [1, 0], sizes = [8, 4], strides = [1, 1]} : vector<9x8xbf16> to vector<8x4xbf16>
    %210 = tpu.concatenate %197, %198, %199, %202, %203, %204, %207, %208, %209 in 1 : vector<8x4xbf16>, vector<8x4xbf16>, vector<8x4xbf16>, vector<8x4xbf16>, vector<8x4xbf16>, vector<8x4xbf16>, vector<8x4xbf16>, vector<8x4xbf16>, vector<8x4xbf16> -> vector<8x36xbf16>
    %c0_110 = arith.constant 0 : index
    %c0_111 = arith.constant 0 : index
    %211 = vector.load %arg2[%c0_110, %c0_111] : memref<36x64xbf16, #tpu.memory_space<vmem>>, vector<36x64xbf16>
    %cst_112 = arith.constant dense<0.000000e+00> : vector<8x64xf32>
    %212 = tpu.matmul %210, %211, %cst_112 {dimension_numbers = #tpu.dot_dimension_numbers<[1], [0], [0], [1], [0, 0, 1, 1], [], []>} : vector<8x36xbf16>, vector<36x64xbf16>, vector<8x64xf32> -> vector<8x64xf32>
    %c0_113 = arith.constant 0 : index
    %c0_114 = arith.constant 0 : index
    %213 = vector.load %arg3[%c0_113, %c0_114] : memref<1x64xf32, #tpu.memory_space<vmem>>, vector<1x64xf32>
    %214 = vector.broadcast %213 : vector<1x64xf32> to vector<8x64xf32>
    %215 = arith.addf %212, %214 : vector<8x64xf32>
    %cst_115 = arith.constant 5.000000e-01 : f32
    %216 = vector.broadcast %cst_115 : f32 to vector<8x64xf32>
    %217 = arith.mulf %216, %215 : vector<8x64xf32>
    %cst_116 = arith.constant 0.707106769 : f32
    %218 = vector.broadcast %cst_116 : f32 to vector<8x64xf32>
    %219 = arith.mulf %215, %218 : vector<8x64xf32>
    %220 = math.absf %219 : vector<8x64xf32>
    %cst_117 = arith.constant 0.327591091 : f32
    %221 = vector.broadcast %cst_117 : f32 to vector<8x64xf32>
    %222 = arith.mulf %221, %220 : vector<8x64xf32>
    %cst_118 = arith.constant 1.000000e+00 : f32
    %223 = vector.broadcast %cst_118 : f32 to vector<8x64xf32>
    %224 = arith.addf %223, %222 : vector<8x64xf32>
    %cst_119 = arith.constant 1.000000e+00 : f32
    %225 = vector.broadcast %cst_119 : f32 to vector<8x64xf32>
    %226 = arith.divf %225, %224 : vector<8x64xf32>
    %cst_120 = arith.constant 1.06140542 : f32
    %227 = vector.broadcast %cst_120 : f32 to vector<8x64xf32>
    %228 = arith.mulf %226, %227 : vector<8x64xf32>
    %cst_121 = arith.constant -1.45315206 : f32
    %229 = vector.broadcast %cst_121 : f32 to vector<8x64xf32>
    %230 = arith.addf %229, %228 : vector<8x64xf32>
    %231 = arith.mulf %226, %230 : vector<8x64xf32>
    %cst_122 = arith.constant 1.42141378 : f32
    %232 = vector.broadcast %cst_122 : f32 to vector<8x64xf32>
    %233 = arith.addf %232, %231 : vector<8x64xf32>
    %234 = arith.mulf %226, %233 : vector<8x64xf32>
    %cst_123 = arith.constant -0.284496725 : f32
    %235 = vector.broadcast %cst_123 : f32 to vector<8x64xf32>
    %236 = arith.addf %235, %234 : vector<8x64xf32>
    %237 = arith.mulf %226, %236 : vector<8x64xf32>
    %cst_124 = arith.constant 0.254829586 : f32
    %238 = vector.broadcast %cst_124 : f32 to vector<8x64xf32>
    %239 = arith.addf %238, %237 : vector<8x64xf32>
    %240 = arith.mulf %226, %239 : vector<8x64xf32>
    %cst_125 = arith.constant 0.000000e+00 : f32
    %241 = vector.broadcast %cst_125 : f32 to vector<8x64xf32>
    %242 = arith.subf %241, %220 : vector<8x64xf32>
    %243 = arith.mulf %242, %220 : vector<8x64xf32>
    %244 = math.exp %243 : vector<8x64xf32>
    %245 = arith.mulf %240, %244 : vector<8x64xf32>
    %cst_126 = arith.constant 1.000000e+00 : f32
    %246 = vector.broadcast %cst_126 : f32 to vector<8x64xf32>
    %247 = arith.subf %246, %245 : vector<8x64xf32>
    %cst_127 = arith.constant 0.000000e+00 : f32
    %248 = vector.broadcast %cst_127 : f32 to vector<8x64xf32>
    %249 = arith.cmpf oge, %219, %248 : vector<8x64xf32>
    %cst_128 = arith.constant 0.000000e+00 : f32
    %250 = vector.broadcast %cst_128 : f32 to vector<8x64xf32>
    %251 = arith.subf %250, %247 : vector<8x64xf32>
    %252 = arith.select %249, %247, %251 : vector<8x64xi1>, vector<8x64xf32>
    %cst_129 = arith.constant 1.000000e+00 : f32
    %253 = vector.broadcast %cst_129 : f32 to vector<8x64xf32>
    %254 = arith.addf %253, %252 : vector<8x64xf32>
    %255 = arith.mulf %217, %254 : vector<8x64xf32>
    %256 = arith.truncf %255 : vector<8x64xf32> to vector<8x64xbf16>
    %c0_130 = arith.constant 0 : index
    %c3_131 = arith.constant 3 : index
    %c0_132 = arith.constant 0 : index
    %c0_133 = arith.constant 0 : index
    %257 = vector.load %arg4[%c0_130, %c3_131, %c0_132, %c0_133] : memref<1x8x8x64xbf16, #tpu.memory_space<vmem>>, vector<1x1x8x64xbf16>
    %258 = vector.shape_cast %257 : vector<1x1x8x64xbf16> to vector<8x64xbf16>
    %259 = vector.shape_cast %256 : vector<8x64xbf16> to vector<1x1x8x64xbf16>
    tpu.vector_store %arg4[%c0_130, %c3_131, %c0_132, %c0_133], %259 {strides = array<i32>} : memref<1x8x8x64xbf16, #tpu.memory_space<vmem>>, vector<1x1x8x64xbf16>,
    %c0_134 = arith.constant 0 : index
    %c8_135 = arith.constant 8 : index
    %c0_136 = arith.constant 0 : index
    %c0_137 = arith.constant 0 : index
    %260 = vector.load %arg1[%c0_134, %c8_135, %c0_136, %c0_137] : memref<1x18x9x8xbf16, #tpu.memory_space<vmem>>, vector<1x1x9x8xbf16>
    %261 = vector.shape_cast %260 : vector<1x1x9x8xbf16> to vector<9x8xbf16>
    %262 = vector.extract_strided_slice %261 {offsets = [0, 0], sizes = [8, 4], strides = [1, 1]} : vector<9x8xbf16> to vector<8x4xbf16>
    %263 = vector.extract_strided_slice %261 {offsets = [0, 4], sizes = [8, 4], strides = [1, 1]} : vector<9x8xbf16> to vector<8x4xbf16>
    %264 = vector.extract_strided_slice %261 {offsets = [1, 0], sizes = [8, 4], strides = [1, 1]} : vector<9x8xbf16> to vector<8x4xbf16>
    %c0_138 = arith.constant 0 : index
    %c9 = arith.constant 9 : index
    %c0_139 = arith.constant 0 : index
    %c0_140 = arith.constant 0 : index
    %265 = vector.load %arg1[%c0_138, %c9, %c0_139, %c0_140] : memref<1x18x9x8xbf16, #tpu.memory_space<vmem>>, vector<1x1x9x8xbf16>
    %266 = vector.shape_cast %265 : vector<1x1x9x8xbf16> to vector<9x8xbf16>
    %267 = vector.extract_strided_slice %266 {offsets = [0, 0], sizes = [8, 4], strides = [1, 1]} : vector<9x8xbf16> to vector<8x4xbf16>
    %268 = vector.extract_strided_slice %266 {offsets = [0, 4], sizes = [8, 4], strides = [1, 1]} : vector<9x8xbf16> to vector<8x4xbf16>
    %269 = vector.extract_strided_slice %266 {offsets = [1, 0], sizes = [8, 4], strides = [1, 1]} : vector<9x8xbf16> to vector<8x4xbf16>
    %c0_141 = arith.constant 0 : index
    %c10 = arith.constant 10 : index
    %c0_142 = arith.constant 0 : index
    %c0_143 = arith.constant 0 : index
    %270 = vector.load %arg1[%c0_141, %c10, %c0_142, %c0_143] : memref<1x18x9x8xbf16, #tpu.memory_space<vmem>>, vector<1x1x9x8xbf16>
    %271 = vector.shape_cast %270 : vector<1x1x9x8xbf16> to vector<9x8xbf16>
    %272 = vector.extract_strided_slice %271 {offsets = [0, 0], sizes = [8, 4], strides = [1, 1]} : vector<9x8xbf16> to vector<8x4xbf16>
    %273 = vector.extract_strided_slice %271 {offsets = [0, 4], sizes = [8, 4], strides = [1, 1]} : vector<9x8xbf16> to vector<8x4xbf16>
    %274 = vector.extract_strided_slice %271 {offsets = [1, 0], sizes = [8, 4], strides = [1, 1]} : vector<9x8xbf16> to vector<8x4xbf16>
    %275 = tpu.concatenate %262, %263, %264, %267, %268, %269, %272, %273, %274 in 1 : vector<8x4xbf16>, vector<8x4xbf16>, vector<8x4xbf16>, vector<8x4xbf16>, vector<8x4xbf16>, vector<8x4xbf16>, vector<8x4xbf16>, vector<8x4xbf16>, vector<8x4xbf16> -> vector<8x36xbf16>
    %c0_144 = arith.constant 0 : index
    %c0_145 = arith.constant 0 : index
    %276 = vector.load %arg2[%c0_144, %c0_145] : memref<36x64xbf16, #tpu.memory_space<vmem>>, vector<36x64xbf16>
    %cst_146 = arith.constant dense<0.000000e+00> : vector<8x64xf32>
    %277 = tpu.matmul %275, %276, %cst_146 {dimension_numbers = #tpu.dot_dimension_numbers<[1], [0], [0], [1], [0, 0, 1, 1], [], []>} : vector<8x36xbf16>, vector<36x64xbf16>, vector<8x64xf32> -> vector<8x64xf32>
    %c0_147 = arith.constant 0 : index
    %c0_148 = arith.constant 0 : index
    %278 = vector.load %arg3[%c0_147, %c0_148] : memref<1x64xf32, #tpu.memory_space<vmem>>, vector<1x64xf32>
    %279 = vector.broadcast %278 : vector<1x64xf32> to vector<8x64xf32>
    %280 = arith.addf %277, %279 : vector<8x64xf32>
    %cst_149 = arith.constant 5.000000e-01 : f32
    %281 = vector.broadcast %cst_149 : f32 to vector<8x64xf32>
    %282 = arith.mulf %281, %280 : vector<8x64xf32>
    %cst_150 = arith.constant 0.707106769 : f32
    %283 = vector.broadcast %cst_150 : f32 to vector<8x64xf32>
    %284 = arith.mulf %280, %283 : vector<8x64xf32>
    %285 = math.absf %284 : vector<8x64xf32>
    %cst_151 = arith.constant 0.327591091 : f32
    %286 = vector.broadcast %cst_151 : f32 to vector<8x64xf32>
    %287 = arith.mulf %286, %285 : vector<8x64xf32>
    %cst_152 = arith.constant 1.000000e+00 : f32
    %288 = vector.broadcast %cst_152 : f32 to vector<8x64xf32>
    %289 = arith.addf %288, %287 : vector<8x64xf32>
    %cst_153 = arith.constant 1.000000e+00 : f32
    %290 = vector.broadcast %cst_153 : f32 to vector<8x64xf32>
    %291 = arith.divf %290, %289 : vector<8x64xf32>
    %cst_154 = arith.constant 1.06140542 : f32
    %292 = vector.broadcast %cst_154 : f32 to vector<8x64xf32>
    %293 = arith.mulf %291, %292 : vector<8x64xf32>
    %cst_155 = arith.constant -1.45315206 : f32
    %294 = vector.broadcast %cst_155 : f32 to vector<8x64xf32>
    %295 = arith.addf %294, %293 : vector<8x64xf32>
    %296 = arith.mulf %291, %295 : vector<8x64xf32>
    %cst_156 = arith.constant 1.42141378 : f32
    %297 = vector.broadcast %cst_156 : f32 to vector<8x64xf32>
    %298 = arith.addf %297, %296 : vector<8x64xf32>
    %299 = arith.mulf %291, %298 : vector<8x64xf32>
    %cst_157 = arith.constant -0.284496725 : f32
    %300 = vector.broadcast %cst_157 : f32 to vector<8x64xf32>
    %301 = arith.addf %300, %299 : vector<8x64xf32>
    %302 = arith.mulf %291, %301 : vector<8x64xf32>
    %cst_158 = arith.constant 0.254829586 : f32
    %303 = vector.broadcast %cst_158 : f32 to vector<8x64xf32>
    %304 = arith.addf %303, %302 : vector<8x64xf32>
    %305 = arith.mulf %291, %304 : vector<8x64xf32>
    %cst_159 = arith.constant 0.000000e+00 : f32
    %306 = vector.broadcast %cst_159 : f32 to vector<8x64xf32>
    %307 = arith.subf %306, %285 : vector<8x64xf32>
    %308 = arith.mulf %307, %285 : vector<8x64xf32>
    %309 = math.exp %308 : vector<8x64xf32>
    %310 = arith.mulf %305, %309 : vector<8x64xf32>
    %cst_160 = arith.constant 1.000000e+00 : f32
    %311 = vector.broadcast %cst_160 : f32 to vector<8x64xf32>
    %312 = arith.subf %311, %310 : vector<8x64xf32>
    %cst_161 = arith.constant 0.000000e+00 : f32
    %313 = vector.broadcast %cst_161 : f32 to vector<8x64xf32>
    %314 = arith.cmpf oge, %284, %313 : vector<8x64xf32>
    %cst_162 = arith.constant 0.000000e+00 : f32
    %315 = vector.broadcast %cst_162 : f32 to vector<8x64xf32>
    %316 = arith.subf %315, %312 : vector<8x64xf32>
    %317 = arith.select %314, %312, %316 : vector<8x64xi1>, vector<8x64xf32>
    %cst_163 = arith.constant 1.000000e+00 : f32
    %318 = vector.broadcast %cst_163 : f32 to vector<8x64xf32>
    %319 = arith.addf %318, %317 : vector<8x64xf32>
    %320 = arith.mulf %282, %319 : vector<8x64xf32>
    %321 = arith.truncf %320 : vector<8x64xf32> to vector<8x64xbf16>
    %c0_164 = arith.constant 0 : index
    %c4_165 = arith.constant 4 : index
    %c0_166 = arith.constant 0 : index
    %c0_167 = arith.constant 0 : index
    %322 = vector.load %arg4[%c0_164, %c4_165, %c0_166, %c0_167] : memref<1x8x8x64xbf16, #tpu.memory_space<vmem>>, vector<1x1x8x64xbf16>
    %323 = vector.shape_cast %322 : vector<1x1x8x64xbf16> to vector<8x64xbf16>
    %324 = vector.shape_cast %321 : vector<8x64xbf16> to vector<1x1x8x64xbf16>
    tpu.vector_store %arg4[%c0_164, %c4_165, %c0_166, %c0_167], %324 {strides = array<i32>} : memref<1x8x8x64xbf16, #tpu.memory_space<vmem>>, vector<1x1x8x64xbf16>,
    %c0_168 = arith.constant 0 : index
    %c10_169 = arith.constant 10 : index
    %c0_170 = arith.constant 0 : index
    %c0_171 = arith.constant 0 : index
    %325 = vector.load %arg1[%c0_168, %c10_169, %c0_170, %c0_171] : memref<1x18x9x8xbf16, #tpu.memory_space<vmem>>, vector<1x1x9x8xbf16>
    %326 = vector.shape_cast %325 : vector<1x1x9x8xbf16> to vector<9x8xbf16>
    %327 = vector.extract_strided_slice %326 {offsets = [0, 0], sizes = [8, 4], strides = [1, 1]} : vector<9x8xbf16> to vector<8x4xbf16>
    %328 = vector.extract_strided_slice %326 {offsets = [0, 4], sizes = [8, 4], strides = [1, 1]} : vector<9x8xbf16> to vector<8x4xbf16>
    %329 = vector.extract_strided_slice %326 {offsets = [1, 0], sizes = [8, 4], strides = [1, 1]} : vector<9x8xbf16> to vector<8x4xbf16>
    %c0_172 = arith.constant 0 : index
    %c11 = arith.constant 11 : index
    %c0_173 = arith.constant 0 : index
    %c0_174 = arith.constant 0 : index
    %330 = vector.load %arg1[%c0_172, %c11, %c0_173, %c0_174] : memref<1x18x9x8xbf16, #tpu.memory_space<vmem>>, vector<1x1x9x8xbf16>
    %331 = vector.shape_cast %330 : vector<1x1x9x8xbf16> to vector<9x8xbf16>
    %332 = vector.extract_strided_slice %331 {offsets = [0, 0], sizes = [8, 4], strides = [1, 1]} : vector<9x8xbf16> to vector<8x4xbf16>
    %333 = vector.extract_strided_slice %331 {offsets = [0, 4], sizes = [8, 4], strides = [1, 1]} : vector<9x8xbf16> to vector<8x4xbf16>
    %334 = vector.extract_strided_slice %331 {offsets = [1, 0], sizes = [8, 4], strides = [1, 1]} : vector<9x8xbf16> to vector<8x4xbf16>
    %c0_175 = arith.constant 0 : index
    %c12 = arith.constant 12 : index
    %c0_176 = arith.constant 0 : index
    %c0_177 = arith.constant 0 : index
    %335 = vector.load %arg1[%c0_175, %c12, %c0_176, %c0_177] : memref<1x18x9x8xbf16, #tpu.memory_space<vmem>>, vector<1x1x9x8xbf16>
    %336 = vector.shape_cast %335 : vector<1x1x9x8xbf16> to vector<9x8xbf16>
    %337 = vector.extract_strided_slice %336 {offsets = [0, 0], sizes = [8, 4], strides = [1, 1]} : vector<9x8xbf16> to vector<8x4xbf16>
    %338 = vector.extract_strided_slice %336 {offsets = [0, 4], sizes = [8, 4], strides = [1, 1]} : vector<9x8xbf16> to vector<8x4xbf16>
    %339 = vector.extract_strided_slice %336 {offsets = [1, 0], sizes = [8, 4], strides = [1, 1]} : vector<9x8xbf16> to vector<8x4xbf16>
    %340 = tpu.concatenate %327, %328, %329, %332, %333, %334, %337, %338, %339 in 1 : vector<8x4xbf16>, vector<8x4xbf16>, vector<8x4xbf16>, vector<8x4xbf16>, vector<8x4xbf16>, vector<8x4xbf16>, vector<8x4xbf16>, vector<8x4xbf16>, vector<8x4xbf16> -> vector<8x36xbf16>
    %c0_178 = arith.constant 0 : index
    %c0_179 = arith.constant 0 : index
    %341 = vector.load %arg2[%c0_178, %c0_179] : memref<36x64xbf16, #tpu.memory_space<vmem>>, vector<36x64xbf16>
    %cst_180 = arith.constant dense<0.000000e+00> : vector<8x64xf32>
    %342 = tpu.matmul %340, %341, %cst_180 {dimension_numbers = #tpu.dot_dimension_numbers<[1], [0], [0], [1], [0, 0, 1, 1], [], []>} : vector<8x36xbf16>, vector<36x64xbf16>, vector<8x64xf32> -> vector<8x64xf32>
    %c0_181 = arith.constant 0 : index
    %c0_182 = arith.constant 0 : index
    %343 = vector.load %arg3[%c0_181, %c0_182] : memref<1x64xf32, #tpu.memory_space<vmem>>, vector<1x64xf32>
    %344 = vector.broadcast %343 : vector<1x64xf32> to vector<8x64xf32>
    %345 = arith.addf %342, %344 : vector<8x64xf32>
    %cst_183 = arith.constant 5.000000e-01 : f32
    %346 = vector.broadcast %cst_183 : f32 to vector<8x64xf32>
    %347 = arith.mulf %346, %345 : vector<8x64xf32>
    %cst_184 = arith.constant 0.707106769 : f32
    %348 = vector.broadcast %cst_184 : f32 to vector<8x64xf32>
    %349 = arith.mulf %345, %348 : vector<8x64xf32>
    %350 = math.absf %349 : vector<8x64xf32>
    %cst_185 = arith.constant 0.327591091 : f32
    %351 = vector.broadcast %cst_185 : f32 to vector<8x64xf32>
    %352 = arith.mulf %351, %350 : vector<8x64xf32>
    %cst_186 = arith.constant 1.000000e+00 : f32
    %353 = vector.broadcast %cst_186 : f32 to vector<8x64xf32>
    %354 = arith.addf %353, %352 : vector<8x64xf32>
    %cst_187 = arith.constant 1.000000e+00 : f32
    %355 = vector.broadcast %cst_187 : f32 to vector<8x64xf32>
    %356 = arith.divf %355, %354 : vector<8x64xf32>
    %cst_188 = arith.constant 1.06140542 : f32
    %357 = vector.broadcast %cst_188 : f32 to vector<8x64xf32>
    %358 = arith.mulf %356, %357 : vector<8x64xf32>
    %cst_189 = arith.constant -1.45315206 : f32
    %359 = vector.broadcast %cst_189 : f32 to vector<8x64xf32>
    %360 = arith.addf %359, %358 : vector<8x64xf32>
    %361 = arith.mulf %356, %360 : vector<8x64xf32>
    %cst_190 = arith.constant 1.42141378 : f32
    %362 = vector.broadcast %cst_190 : f32 to vector<8x64xf32>
    %363 = arith.addf %362, %361 : vector<8x64xf32>
    %364 = arith.mulf %356, %363 : vector<8x64xf32>
    %cst_191 = arith.constant -0.284496725 : f32
    %365 = vector.broadcast %cst_191 : f32 to vector<8x64xf32>
    %366 = arith.addf %365, %364 : vector<8x64xf32>
    %367 = arith.mulf %356, %366 : vector<8x64xf32>
    %cst_192 = arith.constant 0.254829586 : f32
    %368 = vector.broadcast %cst_192 : f32 to vector<8x64xf32>
    %369 = arith.addf %368, %367 : vector<8x64xf32>
    %370 = arith.mulf %356, %369 : vector<8x64xf32>
    %cst_193 = arith.constant 0.000000e+00 : f32
    %371 = vector.broadcast %cst_193 : f32 to vector<8x64xf32>
    %372 = arith.subf %371, %350 : vector<8x64xf32>
    %373 = arith.mulf %372, %350 : vector<8x64xf32>
    %374 = math.exp %373 : vector<8x64xf32>
    %375 = arith.mulf %370, %374 : vector<8x64xf32>
    %cst_194 = arith.constant 1.000000e+00 : f32
    %376 = vector.broadcast %cst_194 : f32 to vector<8x64xf32>
    %377 = arith.subf %376, %375 : vector<8x64xf32>
    %cst_195 = arith.constant 0.000000e+00 : f32
    %378 = vector.broadcast %cst_195 : f32 to vector<8x64xf32>
    %379 = arith.cmpf oge, %349, %378 : vector<8x64xf32>
    %cst_196 = arith.constant 0.000000e+00 : f32
    %380 = vector.broadcast %cst_196 : f32 to vector<8x64xf32>
    %381 = arith.subf %380, %377 : vector<8x64xf32>
    %382 = arith.select %379, %377, %381 : vector<8x64xi1>, vector<8x64xf32>
    %cst_197 = arith.constant 1.000000e+00 : f32
    %383 = vector.broadcast %cst_197 : f32 to vector<8x64xf32>
    %384 = arith.addf %383, %382 : vector<8x64xf32>
    %385 = arith.mulf %347, %384 : vector<8x64xf32>
    %386 = arith.truncf %385 : vector<8x64xf32> to vector<8x64xbf16>
    %c0_198 = arith.constant 0 : index
    %c5_199 = arith.constant 5 : index
    %c0_200 = arith.constant 0 : index
    %c0_201 = arith.constant 0 : index
    %387 = vector.load %arg4[%c0_198, %c5_199, %c0_200, %c0_201] : memref<1x8x8x64xbf16, #tpu.memory_space<vmem>>, vector<1x1x8x64xbf16>
    %388 = vector.shape_cast %387 : vector<1x1x8x64xbf16> to vector<8x64xbf16>
    %389 = vector.shape_cast %386 : vector<8x64xbf16> to vector<1x1x8x64xbf16>
    tpu.vector_store %arg4[%c0_198, %c5_199, %c0_200, %c0_201], %389 {strides = array<i32>} : memref<1x8x8x64xbf16, #tpu.memory_space<vmem>>, vector<1x1x8x64xbf16>,
    %c0_202 = arith.constant 0 : index
    %c12_203 = arith.constant 12 : index
    %c0_204 = arith.constant 0 : index
    %c0_205 = arith.constant 0 : index
    %390 = vector.load %arg1[%c0_202, %c12_203, %c0_204, %c0_205] : memref<1x18x9x8xbf16, #tpu.memory_space<vmem>>, vector<1x1x9x8xbf16>
    %391 = vector.shape_cast %390 : vector<1x1x9x8xbf16> to vector<9x8xbf16>
    %392 = vector.extract_strided_slice %391 {offsets = [0, 0], sizes = [8, 4], strides = [1, 1]} : vector<9x8xbf16> to vector<8x4xbf16>
    %393 = vector.extract_strided_slice %391 {offsets = [0, 4], sizes = [8, 4], strides = [1, 1]} : vector<9x8xbf16> to vector<8x4xbf16>
    %394 = vector.extract_strided_slice %391 {offsets = [1, 0], sizes = [8, 4], strides = [1, 1]} : vector<9x8xbf16> to vector<8x4xbf16>
    %c0_206 = arith.constant 0 : index
    %c13 = arith.constant 13 : index
    %c0_207 = arith.constant 0 : index
    %c0_208 = arith.constant 0 : index
    %395 = vector.load %arg1[%c0_206, %c13, %c0_207, %c0_208] : memref<1x18x9x8xbf16, #tpu.memory_space<vmem>>, vector<1x1x9x8xbf16>
    %396 = vector.shape_cast %395 : vector<1x1x9x8xbf16> to vector<9x8xbf16>
    %397 = vector.extract_strided_slice %396 {offsets = [0, 0], sizes = [8, 4], strides = [1, 1]} : vector<9x8xbf16> to vector<8x4xbf16>
    %398 = vector.extract_strided_slice %396 {offsets = [0, 4], sizes = [8, 4], strides = [1, 1]} : vector<9x8xbf16> to vector<8x4xbf16>
    %399 = vector.extract_strided_slice %396 {offsets = [1, 0], sizes = [8, 4], strides = [1, 1]} : vector<9x8xbf16> to vector<8x4xbf16>
    %c0_209 = arith.constant 0 : index
    %c14 = arith.constant 14 : index
    %c0_210 = arith.constant 0 : index
    %c0_211 = arith.constant 0 : index
    %400 = vector.load %arg1[%c0_209, %c14, %c0_210, %c0_211] : memref<1x18x9x8xbf16, #tpu.memory_space<vmem>>, vector<1x1x9x8xbf16>
    %401 = vector.shape_cast %400 : vector<1x1x9x8xbf16> to vector<9x8xbf16>
    %402 = vector.extract_strided_slice %401 {offsets = [0, 0], sizes = [8, 4], strides = [1, 1]} : vector<9x8xbf16> to vector<8x4xbf16>
    %403 = vector.extract_strided_slice %401 {offsets = [0, 4], sizes = [8, 4], strides = [1, 1]} : vector<9x8xbf16> to vector<8x4xbf16>
    %404 = vector.extract_strided_slice %401 {offsets = [1, 0], sizes = [8, 4], strides = [1, 1]} : vector<9x8xbf16> to vector<8x4xbf16>
    %405 = tpu.concatenate %392, %393, %394, %397, %398, %399, %402, %403, %404 in 1 : vector<8x4xbf16>, vector<8x4xbf16>, vector<8x4xbf16>, vector<8x4xbf16>, vector<8x4xbf16>, vector<8x4xbf16>, vector<8x4xbf16>, vector<8x4xbf16>, vector<8x4xbf16> -> vector<8x36xbf16>
    %c0_212 = arith.constant 0 : index
    %c0_213 = arith.constant 0 : index
    %406 = vector.load %arg2[%c0_212, %c0_213] : memref<36x64xbf16, #tpu.memory_space<vmem>>, vector<36x64xbf16>
    %cst_214 = arith.constant dense<0.000000e+00> : vector<8x64xf32>
    %407 = tpu.matmul %405, %406, %cst_214 {dimension_numbers = #tpu.dot_dimension_numbers<[1], [0], [0], [1], [0, 0, 1, 1], [], []>} : vector<8x36xbf16>, vector<36x64xbf16>, vector<8x64xf32> -> vector<8x64xf32>
    %c0_215 = arith.constant 0 : index
    %c0_216 = arith.constant 0 : index
    %408 = vector.load %arg3[%c0_215, %c0_216] : memref<1x64xf32, #tpu.memory_space<vmem>>, vector<1x64xf32>
    %409 = vector.broadcast %408 : vector<1x64xf32> to vector<8x64xf32>
    %410 = arith.addf %407, %409 : vector<8x64xf32>
    %cst_217 = arith.constant 5.000000e-01 : f32
    %411 = vector.broadcast %cst_217 : f32 to vector<8x64xf32>
    %412 = arith.mulf %411, %410 : vector<8x64xf32>
    %cst_218 = arith.constant 0.707106769 : f32
    %413 = vector.broadcast %cst_218 : f32 to vector<8x64xf32>
    %414 = arith.mulf %410, %413 : vector<8x64xf32>
    %415 = math.absf %414 : vector<8x64xf32>
    %cst_219 = arith.constant 0.327591091 : f32
    %416 = vector.broadcast %cst_219 : f32 to vector<8x64xf32>
    %417 = arith.mulf %416, %415 : vector<8x64xf32>
    %cst_220 = arith.constant 1.000000e+00 : f32
    %418 = vector.broadcast %cst_220 : f32 to vector<8x64xf32>
    %419 = arith.addf %418, %417 : vector<8x64xf32>
    %cst_221 = arith.constant 1.000000e+00 : f32
    %420 = vector.broadcast %cst_221 : f32 to vector<8x64xf32>
    %421 = arith.divf %420, %419 : vector<8x64xf32>
    %cst_222 = arith.constant 1.06140542 : f32
    %422 = vector.broadcast %cst_222 : f32 to vector<8x64xf32>
    %423 = arith.mulf %421, %422 : vector<8x64xf32>
    %cst_223 = arith.constant -1.45315206 : f32
    %424 = vector.broadcast %cst_223 : f32 to vector<8x64xf32>
    %425 = arith.addf %424, %423 : vector<8x64xf32>
    %426 = arith.mulf %421, %425 : vector<8x64xf32>
    %cst_224 = arith.constant 1.42141378 : f32
    %427 = vector.broadcast %cst_224 : f32 to vector<8x64xf32>
    %428 = arith.addf %427, %426 : vector<8x64xf32>
    %429 = arith.mulf %421, %428 : vector<8x64xf32>
    %cst_225 = arith.constant -0.284496725 : f32
    %430 = vector.broadcast %cst_225 : f32 to vector<8x64xf32>
    %431 = arith.addf %430, %429 : vector<8x64xf32>
    %432 = arith.mulf %421, %431 : vector<8x64xf32>
    %cst_226 = arith.constant 0.254829586 : f32
    %433 = vector.broadcast %cst_226 : f32 to vector<8x64xf32>
    %434 = arith.addf %433, %432 : vector<8x64xf32>
    %435 = arith.mulf %421, %434 : vector<8x64xf32>
    %cst_227 = arith.constant 0.000000e+00 : f32
    %436 = vector.broadcast %cst_227 : f32 to vector<8x64xf32>
    %437 = arith.subf %436, %415 : vector<8x64xf32>
    %438 = arith.mulf %437, %415 : vector<8x64xf32>
    %439 = math.exp %438 : vector<8x64xf32>
    %440 = arith.mulf %435, %439 : vector<8x64xf32>
    %cst_228 = arith.constant 1.000000e+00 : f32
    %441 = vector.broadcast %cst_228 : f32 to vector<8x64xf32>
    %442 = arith.subf %441, %440 : vector<8x64xf32>
    %cst_229 = arith.constant 0.000000e+00 : f32
    %443 = vector.broadcast %cst_229 : f32 to vector<8x64xf32>
    %444 = arith.cmpf oge, %414, %443 : vector<8x64xf32>
    %cst_230 = arith.constant 0.000000e+00 : f32
    %445 = vector.broadcast %cst_230 : f32 to vector<8x64xf32>
    %446 = arith.subf %445, %442 : vector<8x64xf32>
    %447 = arith.select %444, %442, %446 : vector<8x64xi1>, vector<8x64xf32>
    %cst_231 = arith.constant 1.000000e+00 : f32
    %448 = vector.broadcast %cst_231 : f32 to vector<8x64xf32>
    %449 = arith.addf %448, %447 : vector<8x64xf32>
    %450 = arith.mulf %412, %449 : vector<8x64xf32>
    %451 = arith.truncf %450 : vector<8x64xf32> to vector<8x64xbf16>
    %c0_232 = arith.constant 0 : index
    %c6_233 = arith.constant 6 : index
    %c0_234 = arith.constant 0 : index
    %c0_235 = arith.constant 0 : index
    %452 = vector.load %arg4[%c0_232, %c6_233, %c0_234, %c0_235] : memref<1x8x8x64xbf16, #tpu.memory_space<vmem>>, vector<1x1x8x64xbf16>
    %453 = vector.shape_cast %452 : vector<1x1x8x64xbf16> to vector<8x64xbf16>
    %454 = vector.shape_cast %451 : vector<8x64xbf16> to vector<1x1x8x64xbf16>
    tpu.vector_store %arg4[%c0_232, %c6_233, %c0_234, %c0_235], %454 {strides = array<i32>} : memref<1x8x8x64xbf16, #tpu.memory_space<vmem>>, vector<1x1x8x64xbf16>,
    %c0_236 = arith.constant 0 : index
    %c14_237 = arith.constant 14 : index
    %c0_238 = arith.constant 0 : index
    %c0_239 = arith.constant 0 : index
    %455 = vector.load %arg1[%c0_236, %c14_237, %c0_238, %c0_239] : memref<1x18x9x8xbf16, #tpu.memory_space<vmem>>, vector<1x1x9x8xbf16>
    %456 = vector.shape_cast %455 : vector<1x1x9x8xbf16> to vector<9x8xbf16>
    %457 = vector.extract_strided_slice %456 {offsets = [0, 0], sizes = [8, 4], strides = [1, 1]} : vector<9x8xbf16> to vector<8x4xbf16>
    %458 = vector.extract_strided_slice %456 {offsets = [0, 4], sizes = [8, 4], strides = [1, 1]} : vector<9x8xbf16> to vector<8x4xbf16>
    %459 = vector.extract_strided_slice %456 {offsets = [1, 0], sizes = [8, 4], strides = [1, 1]} : vector<9x8xbf16> to vector<8x4xbf16>
    %c0_240 = arith.constant 0 : index
    %c15 = arith.constant 15 : index
    %c0_241 = arith.constant 0 : index
    %c0_242 = arith.constant 0 : index
    %460 = vector.load %arg1[%c0_240, %c15, %c0_241, %c0_242] : memref<1x18x9x8xbf16, #tpu.memory_space<vmem>>, vector<1x1x9x8xbf16>
    %461 = vector.shape_cast %460 : vector<1x1x9x8xbf16> to vector<9x8xbf16>
    %462 = vector.extract_strided_slice %461 {offsets = [0, 0], sizes = [8, 4], strides = [1, 1]} : vector<9x8xbf16> to vector<8x4xbf16>
    %463 = vector.extract_strided_slice %461 {offsets = [0, 4], sizes = [8, 4], strides = [1, 1]} : vector<9x8xbf16> to vector<8x4xbf16>
    %464 = vector.extract_strided_slice %461 {offsets = [1, 0], sizes = [8, 4], strides = [1, 1]} : vector<9x8xbf16> to vector<8x4xbf16>
    %c0_243 = arith.constant 0 : index
    %c16 = arith.constant 16 : index
    %c0_244 = arith.constant 0 : index
    %c0_245 = arith.constant 0 : index
    %465 = vector.load %arg1[%c0_243, %c16, %c0_244, %c0_245] : memref<1x18x9x8xbf16, #tpu.memory_space<vmem>>, vector<1x1x9x8xbf16>
    %466 = vector.shape_cast %465 : vector<1x1x9x8xbf16> to vector<9x8xbf16>
    %467 = vector.extract_strided_slice %466 {offsets = [0, 0], sizes = [8, 4], strides = [1, 1]} : vector<9x8xbf16> to vector<8x4xbf16>
    %468 = vector.extract_strided_slice %466 {offsets = [0, 4], sizes = [8, 4], strides = [1, 1]} : vector<9x8xbf16> to vector<8x4xbf16>
    %469 = vector.extract_strided_slice %466 {offsets = [1, 0], sizes = [8, 4], strides = [1, 1]} : vector<9x8xbf16> to vector<8x4xbf16>
    %470 = tpu.concatenate %457, %458, %459, %462, %463, %464, %467, %468, %469 in 1 : vector<8x4xbf16>, vector<8x4xbf16>, vector<8x4xbf16>, vector<8x4xbf16>, vector<8x4xbf16>, vector<8x4xbf16>, vector<8x4xbf16>, vector<8x4xbf16>, vector<8x4xbf16> -> vector<8x36xbf16>
    %c0_246 = arith.constant 0 : index
    %c0_247 = arith.constant 0 : index
    %471 = vector.load %arg2[%c0_246, %c0_247] : memref<36x64xbf16, #tpu.memory_space<vmem>>, vector<36x64xbf16>
    %cst_248 = arith.constant dense<0.000000e+00> : vector<8x64xf32>
    %472 = tpu.matmul %470, %471, %cst_248 {dimension_numbers = #tpu.dot_dimension_numbers<[1], [0], [0], [1], [0, 0, 1, 1], [], []>} : vector<8x36xbf16>, vector<36x64xbf16>, vector<8x64xf32> -> vector<8x64xf32>
    %c0_249 = arith.constant 0 : index
    %c0_250 = arith.constant 0 : index
    %473 = vector.load %arg3[%c0_249, %c0_250] : memref<1x64xf32, #tpu.memory_space<vmem>>, vector<1x64xf32>
    %474 = vector.broadcast %473 : vector<1x64xf32> to vector<8x64xf32>
    %475 = arith.addf %472, %474 : vector<8x64xf32>
    %cst_251 = arith.constant 5.000000e-01 : f32
    %476 = vector.broadcast %cst_251 : f32 to vector<8x64xf32>
    %477 = arith.mulf %476, %475 : vector<8x64xf32>
    %cst_252 = arith.constant 0.707106769 : f32
    %478 = vector.broadcast %cst_252 : f32 to vector<8x64xf32>
    %479 = arith.mulf %475, %478 : vector<8x64xf32>
    %480 = math.absf %479 : vector<8x64xf32>
    %cst_253 = arith.constant 0.327591091 : f32
    %481 = vector.broadcast %cst_253 : f32 to vector<8x64xf32>
    %482 = arith.mulf %481, %480 : vector<8x64xf32>
    %cst_254 = arith.constant 1.000000e+00 : f32
    %483 = vector.broadcast %cst_254 : f32 to vector<8x64xf32>
    %484 = arith.addf %483, %482 : vector<8x64xf32>
    %cst_255 = arith.constant 1.000000e+00 : f32
    %485 = vector.broadcast %cst_255 : f32 to vector<8x64xf32>
    %486 = arith.divf %485, %484 : vector<8x64xf32>
    %cst_256 = arith.constant 1.06140542 : f32
    %487 = vector.broadcast %cst_256 : f32 to vector<8x64xf32>
    %488 = arith.mulf %486, %487 : vector<8x64xf32>
    %cst_257 = arith.constant -1.45315206 : f32
    %489 = vector.broadcast %cst_257 : f32 to vector<8x64xf32>
    %490 = arith.addf %489, %488 : vector<8x64xf32>
    %491 = arith.mulf %486, %490 : vector<8x64xf32>
    %cst_258 = arith.constant 1.42141378 : f32
    %492 = vector.broadcast %cst_258 : f32 to vector<8x64xf32>
    %493 = arith.addf %492, %491 : vector<8x64xf32>
    %494 = arith.mulf %486, %493 : vector<8x64xf32>
    %cst_259 = arith.constant -0.284496725 : f32
    %495 = vector.broadcast %cst_259 : f32 to vector<8x64xf32>
    %496 = arith.addf %495, %494 : vector<8x64xf32>
    %497 = arith.mulf %486, %496 : vector<8x64xf32>
    %cst_260 = arith.constant 0.254829586 : f32
    %498 = vector.broadcast %cst_260 : f32 to vector<8x64xf32>
    %499 = arith.addf %498, %497 : vector<8x64xf32>
    %500 = arith.mulf %486, %499 : vector<8x64xf32>
    %cst_261 = arith.constant 0.000000e+00 : f32
    %501 = vector.broadcast %cst_261 : f32 to vector<8x64xf32>
    %502 = arith.subf %501, %480 : vector<8x64xf32>
    %503 = arith.mulf %502, %480 : vector<8x64xf32>
    %504 = math.exp %503 : vector<8x64xf32>
    %505 = arith.mulf %500, %504 : vector<8x64xf32>
    %cst_262 = arith.constant 1.000000e+00 : f32
    %506 = vector.broadcast %cst_262 : f32 to vector<8x64xf32>
    %507 = arith.subf %506, %505 : vector<8x64xf32>
    %cst_263 = arith.constant 0.000000e+00 : f32
    %508 = vector.broadcast %cst_263 : f32 to vector<8x64xf32>
    %509 = arith.cmpf oge, %479, %508 : vector<8x64xf32>
    %cst_264 = arith.constant 0.000000e+00 : f32
    %510 = vector.broadcast %cst_264 : f32 to vector<8x64xf32>
    %511 = arith.subf %510, %507 : vector<8x64xf32>
    %512 = arith.select %509, %507, %511 : vector<8x64xi1>, vector<8x64xf32>
    %cst_265 = arith.constant 1.000000e+00 : f32
    %513 = vector.broadcast %cst_265 : f32 to vector<8x64xf32>
    %514 = arith.addf %513, %512 : vector<8x64xf32>
    %515 = arith.mulf %477, %514 : vector<8x64xf32>
    %516 = arith.truncf %515 : vector<8x64xf32> to vector<8x64xbf16>
    %c0_266 = arith.constant 0 : index
    %c7_267 = arith.constant 7 : index
    %c0_268 = arith.constant 0 : index
    %c0_269 = arith.constant 0 : index
    %517 = vector.load %arg4[%c0_266, %c7_267, %c0_268, %c0_269] : memref<1x8x8x64xbf16, #tpu.memory_space<vmem>>, vector<1x1x8x64xbf16>
    %518 = vector.shape_cast %517 : vector<1x1x8x64xbf16> to vector<8x64xbf16>
    %519 = vector.shape_cast %516 : vector<8x64xbf16> to vector<1x1x8x64xbf16>
    tpu.vector_store %arg4[%c0_266, %c7_267, %c0_268, %c0_269], %519 {strides = array<i32>} : memref<1x8x8x64xbf16, #tpu.memory_space<vmem>>, vector<1x1x8x64xbf16>,
    return
  }
  func.func @transform_0(%arg0: i32) -> (i32, i32, i32, i32) {
    %c0_i32 = arith.constant 0 : i32
    %c0_i32_0 = arith.constant 0 : i32
    %c0_i32_1 = arith.constant 0 : i32
    %c0_i32_2 = arith.constant 0 : i32
    return %arg0, %c0_i32, %c0_i32_0, %c0_i32_1 : i32, i32, i32, i32
  }
  func.func @transform_1(%arg0: i32) -> (i32, i32) {
    %c0_i32 = arith.constant 0 : i32
    %c0_i32_0 = arith.constant 0 : i32
    %c0_i32_1 = arith.constant 0 : i32
    return %c0_i32, %c0_i32_0 : i32, i32
  }
  func.func @transform_2(%arg0: i32) -> (i32, i32) {
    %c0_i32 = arith.constant 0 : i32
    %c0_i32_0 = arith.constant 0 : i32
    %c0_i32_1 = arith.constant 0 : i32
    return %c0_i32, %c0_i32_0 : i32, i32
  }
  func.func @transform_3(%arg0: i32) -> (i32, i32, i32, i32) {
    %c0_i32 = arith.constant 0 : i32
    %c0_i32_0 = arith.constant 0 : i32
    %c0_i32_1 = arith.constant 0 : i32
    %c0_i32_2 = arith.constant 0 : i32
    return %arg0, %c0_i32, %c0_i32_0, %c0_i32_1 : i32, i32, i32, i32
  }
}

module attributes {stable_mosaic.version = 11 : i64} {
  func.func @kernel(%arg0: i32, %arg1: memref<1x10x5x128xbf16, #tpu.memory_space<vmem>>, %arg2: memref<576x128xbf16, #tpu.memory_space<vmem>>, %arg3: memref<1x128xf32, #tpu.memory_space<vmem>>, %arg4: memref<1x4x4x128xf32, #tpu.memory_space<vmem>>) attributes {dimension_semantics = [#tpu.dimension_semantics<parallel>], iteration_bounds = array<i64: 2>, scalar_prefetch = 0 : i64, scratch_operands = 0 : i64, tpu.core_type = #tpu.core_type<tc>, window_params = [{transform_indices = @transform_0, window_bounds = array<i64: 1, 10, 5, 128>}, {pipeline_mode = #tpu.pipeline_mode<synchronous>, transform_indices = @transform_1, window_bounds = array<i64: 576, 128>}, {pipeline_mode = #tpu.pipeline_mode<synchronous>, transform_indices = @transform_2, window_bounds = array<i64: 1, 128>}, {transform_indices = @transform_3, window_bounds = array<i64: 1, 4, 4, 128>}]} {
    %c0 = arith.constant 0 : index
    %c0_0 = arith.constant 0 : index
    %c0_1 = arith.constant 0 : index
    %c0_2 = arith.constant 0 : index
    %0 = vector.load %arg1[%c0, %c0_0, %c0_1, %c0_2] : memref<1x10x5x128xbf16, #tpu.memory_space<vmem>>, vector<1x1x5x128xbf16>
    %1 = vector.shape_cast %0 : vector<1x1x5x128xbf16> to vector<5x128xbf16>
    %2 = vector.extract_strided_slice %1 {offsets = [0, 0], sizes = [4, 64], strides = [1, 1]} : vector<5x128xbf16> to vector<4x64xbf16>
    %3 = vector.extract_strided_slice %1 {offsets = [0, 64], sizes = [4, 64], strides = [1, 1]} : vector<5x128xbf16> to vector<4x64xbf16>
    %4 = vector.extract_strided_slice %1 {offsets = [1, 0], sizes = [4, 64], strides = [1, 1]} : vector<5x128xbf16> to vector<4x64xbf16>
    %c0_3 = arith.constant 0 : index
    %c1 = arith.constant 1 : index
    %c0_4 = arith.constant 0 : index
    %c0_5 = arith.constant 0 : index
    %5 = vector.load %arg1[%c0_3, %c1, %c0_4, %c0_5] : memref<1x10x5x128xbf16, #tpu.memory_space<vmem>>, vector<1x1x5x128xbf16>
    %6 = vector.shape_cast %5 : vector<1x1x5x128xbf16> to vector<5x128xbf16>
    %7 = vector.extract_strided_slice %6 {offsets = [0, 0], sizes = [4, 64], strides = [1, 1]} : vector<5x128xbf16> to vector<4x64xbf16>
    %8 = vector.extract_strided_slice %6 {offsets = [0, 64], sizes = [4, 64], strides = [1, 1]} : vector<5x128xbf16> to vector<4x64xbf16>
    %9 = vector.extract_strided_slice %6 {offsets = [1, 0], sizes = [4, 64], strides = [1, 1]} : vector<5x128xbf16> to vector<4x64xbf16>
    %c0_6 = arith.constant 0 : index
    %c2 = arith.constant 2 : index
    %c0_7 = arith.constant 0 : index
    %c0_8 = arith.constant 0 : index
    %10 = vector.load %arg1[%c0_6, %c2, %c0_7, %c0_8] : memref<1x10x5x128xbf16, #tpu.memory_space<vmem>>, vector<1x1x5x128xbf16>
    %11 = vector.shape_cast %10 : vector<1x1x5x128xbf16> to vector<5x128xbf16>
    %12 = vector.extract_strided_slice %11 {offsets = [0, 0], sizes = [4, 64], strides = [1, 1]} : vector<5x128xbf16> to vector<4x64xbf16>
    %13 = vector.extract_strided_slice %11 {offsets = [0, 64], sizes = [4, 64], strides = [1, 1]} : vector<5x128xbf16> to vector<4x64xbf16>
    %14 = vector.extract_strided_slice %11 {offsets = [1, 0], sizes = [4, 64], strides = [1, 1]} : vector<5x128xbf16> to vector<4x64xbf16>
    %15 = tpu.concatenate %2, %3, %4, %7, %8, %9, %12, %13, %14 in 1 : vector<4x64xbf16>, vector<4x64xbf16>, vector<4x64xbf16>, vector<4x64xbf16>, vector<4x64xbf16>, vector<4x64xbf16>, vector<4x64xbf16>, vector<4x64xbf16>, vector<4x64xbf16> -> vector<4x576xbf16>
    %c0_9 = arith.constant 0 : index
    %c0_10 = arith.constant 0 : index
    %16 = vector.load %arg2[%c0_9, %c0_10] : memref<576x128xbf16, #tpu.memory_space<vmem>>, vector<576x128xbf16>
    %cst = arith.constant dense<0.000000e+00> : vector<4x128xf32>
    %17 = tpu.matmul %15, %16, %cst {dimension_numbers = #tpu.dot_dimension_numbers<[1], [0], [0], [1], [0, 0, 1, 1], [], []>} : vector<4x576xbf16>, vector<576x128xbf16>, vector<4x128xf32> -> vector<4x128xf32>
    %c0_11 = arith.constant 0 : index
    %c0_12 = arith.constant 0 : index
    %18 = vector.load %arg3[%c0_11, %c0_12] : memref<1x128xf32, #tpu.memory_space<vmem>>, vector<1x128xf32>
    %19 = vector.broadcast %18 : vector<1x128xf32> to vector<4x128xf32>
    %20 = arith.addf %17, %19 : vector<4x128xf32>
    %c0_13 = arith.constant 0 : index
    %c0_14 = arith.constant 0 : index
    %c0_15 = arith.constant 0 : index
    %c0_16 = arith.constant 0 : index
    %21 = vector.load %arg4[%c0_13, %c0_14, %c0_15, %c0_16] : memref<1x4x4x128xf32, #tpu.memory_space<vmem>>, vector<1x1x4x128xf32>
    %22 = vector.shape_cast %21 : vector<1x1x4x128xf32> to vector<4x128xf32>
    %23 = vector.shape_cast %20 : vector<4x128xf32> to vector<1x1x4x128xf32>
    tpu.vector_store %arg4[%c0_13, %c0_14, %c0_15, %c0_16], %23 {strides = array<i32>} : memref<1x4x4x128xf32, #tpu.memory_space<vmem>>, vector<1x1x4x128xf32>,
    %c0_17 = arith.constant 0 : index
    %c2_18 = arith.constant 2 : index
    %c0_19 = arith.constant 0 : index
    %c0_20 = arith.constant 0 : index
    %24 = vector.load %arg1[%c0_17, %c2_18, %c0_19, %c0_20] : memref<1x10x5x128xbf16, #tpu.memory_space<vmem>>, vector<1x1x5x128xbf16>
    %25 = vector.shape_cast %24 : vector<1x1x5x128xbf16> to vector<5x128xbf16>
    %26 = vector.extract_strided_slice %25 {offsets = [0, 0], sizes = [4, 64], strides = [1, 1]} : vector<5x128xbf16> to vector<4x64xbf16>
    %27 = vector.extract_strided_slice %25 {offsets = [0, 64], sizes = [4, 64], strides = [1, 1]} : vector<5x128xbf16> to vector<4x64xbf16>
    %28 = vector.extract_strided_slice %25 {offsets = [1, 0], sizes = [4, 64], strides = [1, 1]} : vector<5x128xbf16> to vector<4x64xbf16>
    %c0_21 = arith.constant 0 : index
    %c3 = arith.constant 3 : index
    %c0_22 = arith.constant 0 : index
    %c0_23 = arith.constant 0 : index
    %29 = vector.load %arg1[%c0_21, %c3, %c0_22, %c0_23] : memref<1x10x5x128xbf16, #tpu.memory_space<vmem>>, vector<1x1x5x128xbf16>
    %30 = vector.shape_cast %29 : vector<1x1x5x128xbf16> to vector<5x128xbf16>
    %31 = vector.extract_strided_slice %30 {offsets = [0, 0], sizes = [4, 64], strides = [1, 1]} : vector<5x128xbf16> to vector<4x64xbf16>
    %32 = vector.extract_strided_slice %30 {offsets = [0, 64], sizes = [4, 64], strides = [1, 1]} : vector<5x128xbf16> to vector<4x64xbf16>
    %33 = vector.extract_strided_slice %30 {offsets = [1, 0], sizes = [4, 64], strides = [1, 1]} : vector<5x128xbf16> to vector<4x64xbf16>
    %c0_24 = arith.constant 0 : index
    %c4 = arith.constant 4 : index
    %c0_25 = arith.constant 0 : index
    %c0_26 = arith.constant 0 : index
    %34 = vector.load %arg1[%c0_24, %c4, %c0_25, %c0_26] : memref<1x10x5x128xbf16, #tpu.memory_space<vmem>>, vector<1x1x5x128xbf16>
    %35 = vector.shape_cast %34 : vector<1x1x5x128xbf16> to vector<5x128xbf16>
    %36 = vector.extract_strided_slice %35 {offsets = [0, 0], sizes = [4, 64], strides = [1, 1]} : vector<5x128xbf16> to vector<4x64xbf16>
    %37 = vector.extract_strided_slice %35 {offsets = [0, 64], sizes = [4, 64], strides = [1, 1]} : vector<5x128xbf16> to vector<4x64xbf16>
    %38 = vector.extract_strided_slice %35 {offsets = [1, 0], sizes = [4, 64], strides = [1, 1]} : vector<5x128xbf16> to vector<4x64xbf16>
    %39 = tpu.concatenate %26, %27, %28, %31, %32, %33, %36, %37, %38 in 1 : vector<4x64xbf16>, vector<4x64xbf16>, vector<4x64xbf16>, vector<4x64xbf16>, vector<4x64xbf16>, vector<4x64xbf16>, vector<4x64xbf16>, vector<4x64xbf16>, vector<4x64xbf16> -> vector<4x576xbf16>
    %c0_27 = arith.constant 0 : index
    %c0_28 = arith.constant 0 : index
    %40 = vector.load %arg2[%c0_27, %c0_28] : memref<576x128xbf16, #tpu.memory_space<vmem>>, vector<576x128xbf16>
    %cst_29 = arith.constant dense<0.000000e+00> : vector<4x128xf32>
    %41 = tpu.matmul %39, %40, %cst_29 {dimension_numbers = #tpu.dot_dimension_numbers<[1], [0], [0], [1], [0, 0, 1, 1], [], []>} : vector<4x576xbf16>, vector<576x128xbf16>, vector<4x128xf32> -> vector<4x128xf32>
    %c0_30 = arith.constant 0 : index
    %c0_31 = arith.constant 0 : index
    %42 = vector.load %arg3[%c0_30, %c0_31] : memref<1x128xf32, #tpu.memory_space<vmem>>, vector<1x128xf32>
    %43 = vector.broadcast %42 : vector<1x128xf32> to vector<4x128xf32>
    %44 = arith.addf %41, %43 : vector<4x128xf32>
    %c0_32 = arith.constant 0 : index
    %c1_33 = arith.constant 1 : index
    %c0_34 = arith.constant 0 : index
    %c0_35 = arith.constant 0 : index
    %45 = vector.load %arg4[%c0_32, %c1_33, %c0_34, %c0_35] : memref<1x4x4x128xf32, #tpu.memory_space<vmem>>, vector<1x1x4x128xf32>
    %46 = vector.shape_cast %45 : vector<1x1x4x128xf32> to vector<4x128xf32>
    %47 = vector.shape_cast %44 : vector<4x128xf32> to vector<1x1x4x128xf32>
    tpu.vector_store %arg4[%c0_32, %c1_33, %c0_34, %c0_35], %47 {strides = array<i32>} : memref<1x4x4x128xf32, #tpu.memory_space<vmem>>, vector<1x1x4x128xf32>,
    %c0_36 = arith.constant 0 : index
    %c4_37 = arith.constant 4 : index
    %c0_38 = arith.constant 0 : index
    %c0_39 = arith.constant 0 : index
    %48 = vector.load %arg1[%c0_36, %c4_37, %c0_38, %c0_39] : memref<1x10x5x128xbf16, #tpu.memory_space<vmem>>, vector<1x1x5x128xbf16>
    %49 = vector.shape_cast %48 : vector<1x1x5x128xbf16> to vector<5x128xbf16>
    %50 = vector.extract_strided_slice %49 {offsets = [0, 0], sizes = [4, 64], strides = [1, 1]} : vector<5x128xbf16> to vector<4x64xbf16>
    %51 = vector.extract_strided_slice %49 {offsets = [0, 64], sizes = [4, 64], strides = [1, 1]} : vector<5x128xbf16> to vector<4x64xbf16>
    %52 = vector.extract_strided_slice %49 {offsets = [1, 0], sizes = [4, 64], strides = [1, 1]} : vector<5x128xbf16> to vector<4x64xbf16>
    %c0_40 = arith.constant 0 : index
    %c5 = arith.constant 5 : index
    %c0_41 = arith.constant 0 : index
    %c0_42 = arith.constant 0 : index
    %53 = vector.load %arg1[%c0_40, %c5, %c0_41, %c0_42] : memref<1x10x5x128xbf16, #tpu.memory_space<vmem>>, vector<1x1x5x128xbf16>
    %54 = vector.shape_cast %53 : vector<1x1x5x128xbf16> to vector<5x128xbf16>
    %55 = vector.extract_strided_slice %54 {offsets = [0, 0], sizes = [4, 64], strides = [1, 1]} : vector<5x128xbf16> to vector<4x64xbf16>
    %56 = vector.extract_strided_slice %54 {offsets = [0, 64], sizes = [4, 64], strides = [1, 1]} : vector<5x128xbf16> to vector<4x64xbf16>
    %57 = vector.extract_strided_slice %54 {offsets = [1, 0], sizes = [4, 64], strides = [1, 1]} : vector<5x128xbf16> to vector<4x64xbf16>
    %c0_43 = arith.constant 0 : index
    %c6 = arith.constant 6 : index
    %c0_44 = arith.constant 0 : index
    %c0_45 = arith.constant 0 : index
    %58 = vector.load %arg1[%c0_43, %c6, %c0_44, %c0_45] : memref<1x10x5x128xbf16, #tpu.memory_space<vmem>>, vector<1x1x5x128xbf16>
    %59 = vector.shape_cast %58 : vector<1x1x5x128xbf16> to vector<5x128xbf16>
    %60 = vector.extract_strided_slice %59 {offsets = [0, 0], sizes = [4, 64], strides = [1, 1]} : vector<5x128xbf16> to vector<4x64xbf16>
    %61 = vector.extract_strided_slice %59 {offsets = [0, 64], sizes = [4, 64], strides = [1, 1]} : vector<5x128xbf16> to vector<4x64xbf16>
    %62 = vector.extract_strided_slice %59 {offsets = [1, 0], sizes = [4, 64], strides = [1, 1]} : vector<5x128xbf16> to vector<4x64xbf16>
    %63 = tpu.concatenate %50, %51, %52, %55, %56, %57, %60, %61, %62 in 1 : vector<4x64xbf16>, vector<4x64xbf16>, vector<4x64xbf16>, vector<4x64xbf16>, vector<4x64xbf16>, vector<4x64xbf16>, vector<4x64xbf16>, vector<4x64xbf16>, vector<4x64xbf16> -> vector<4x576xbf16>
    %c0_46 = arith.constant 0 : index
    %c0_47 = arith.constant 0 : index
    %64 = vector.load %arg2[%c0_46, %c0_47] : memref<576x128xbf16, #tpu.memory_space<vmem>>, vector<576x128xbf16>
    %cst_48 = arith.constant dense<0.000000e+00> : vector<4x128xf32>
    %65 = tpu.matmul %63, %64, %cst_48 {dimension_numbers = #tpu.dot_dimension_numbers<[1], [0], [0], [1], [0, 0, 1, 1], [], []>} : vector<4x576xbf16>, vector<576x128xbf16>, vector<4x128xf32> -> vector<4x128xf32>
    %c0_49 = arith.constant 0 : index
    %c0_50 = arith.constant 0 : index
    %66 = vector.load %arg3[%c0_49, %c0_50] : memref<1x128xf32, #tpu.memory_space<vmem>>, vector<1x128xf32>
    %67 = vector.broadcast %66 : vector<1x128xf32> to vector<4x128xf32>
    %68 = arith.addf %65, %67 : vector<4x128xf32>
    %c0_51 = arith.constant 0 : index
    %c2_52 = arith.constant 2 : index
    %c0_53 = arith.constant 0 : index
    %c0_54 = arith.constant 0 : index
    %69 = vector.load %arg4[%c0_51, %c2_52, %c0_53, %c0_54] : memref<1x4x4x128xf32, #tpu.memory_space<vmem>>, vector<1x1x4x128xf32>
    %70 = vector.shape_cast %69 : vector<1x1x4x128xf32> to vector<4x128xf32>
    %71 = vector.shape_cast %68 : vector<4x128xf32> to vector<1x1x4x128xf32>
    tpu.vector_store %arg4[%c0_51, %c2_52, %c0_53, %c0_54], %71 {strides = array<i32>} : memref<1x4x4x128xf32, #tpu.memory_space<vmem>>, vector<1x1x4x128xf32>,
    %c0_55 = arith.constant 0 : index
    %c6_56 = arith.constant 6 : index
    %c0_57 = arith.constant 0 : index
    %c0_58 = arith.constant 0 : index
    %72 = vector.load %arg1[%c0_55, %c6_56, %c0_57, %c0_58] : memref<1x10x5x128xbf16, #tpu.memory_space<vmem>>, vector<1x1x5x128xbf16>
    %73 = vector.shape_cast %72 : vector<1x1x5x128xbf16> to vector<5x128xbf16>
    %74 = vector.extract_strided_slice %73 {offsets = [0, 0], sizes = [4, 64], strides = [1, 1]} : vector<5x128xbf16> to vector<4x64xbf16>
    %75 = vector.extract_strided_slice %73 {offsets = [0, 64], sizes = [4, 64], strides = [1, 1]} : vector<5x128xbf16> to vector<4x64xbf16>
    %76 = vector.extract_strided_slice %73 {offsets = [1, 0], sizes = [4, 64], strides = [1, 1]} : vector<5x128xbf16> to vector<4x64xbf16>
    %c0_59 = arith.constant 0 : index
    %c7 = arith.constant 7 : index
    %c0_60 = arith.constant 0 : index
    %c0_61 = arith.constant 0 : index
    %77 = vector.load %arg1[%c0_59, %c7, %c0_60, %c0_61] : memref<1x10x5x128xbf16, #tpu.memory_space<vmem>>, vector<1x1x5x128xbf16>
    %78 = vector.shape_cast %77 : vector<1x1x5x128xbf16> to vector<5x128xbf16>
    %79 = vector.extract_strided_slice %78 {offsets = [0, 0], sizes = [4, 64], strides = [1, 1]} : vector<5x128xbf16> to vector<4x64xbf16>
    %80 = vector.extract_strided_slice %78 {offsets = [0, 64], sizes = [4, 64], strides = [1, 1]} : vector<5x128xbf16> to vector<4x64xbf16>
    %81 = vector.extract_strided_slice %78 {offsets = [1, 0], sizes = [4, 64], strides = [1, 1]} : vector<5x128xbf16> to vector<4x64xbf16>
    %c0_62 = arith.constant 0 : index
    %c8 = arith.constant 8 : index
    %c0_63 = arith.constant 0 : index
    %c0_64 = arith.constant 0 : index
    %82 = vector.load %arg1[%c0_62, %c8, %c0_63, %c0_64] : memref<1x10x5x128xbf16, #tpu.memory_space<vmem>>, vector<1x1x5x128xbf16>
    %83 = vector.shape_cast %82 : vector<1x1x5x128xbf16> to vector<5x128xbf16>
    %84 = vector.extract_strided_slice %83 {offsets = [0, 0], sizes = [4, 64], strides = [1, 1]} : vector<5x128xbf16> to vector<4x64xbf16>
    %85 = vector.extract_strided_slice %83 {offsets = [0, 64], sizes = [4, 64], strides = [1, 1]} : vector<5x128xbf16> to vector<4x64xbf16>
    %86 = vector.extract_strided_slice %83 {offsets = [1, 0], sizes = [4, 64], strides = [1, 1]} : vector<5x128xbf16> to vector<4x64xbf16>
    %87 = tpu.concatenate %74, %75, %76, %79, %80, %81, %84, %85, %86 in 1 : vector<4x64xbf16>, vector<4x64xbf16>, vector<4x64xbf16>, vector<4x64xbf16>, vector<4x64xbf16>, vector<4x64xbf16>, vector<4x64xbf16>, vector<4x64xbf16>, vector<4x64xbf16> -> vector<4x576xbf16>
    %c0_65 = arith.constant 0 : index
    %c0_66 = arith.constant 0 : index
    %88 = vector.load %arg2[%c0_65, %c0_66] : memref<576x128xbf16, #tpu.memory_space<vmem>>, vector<576x128xbf16>
    %cst_67 = arith.constant dense<0.000000e+00> : vector<4x128xf32>
    %89 = tpu.matmul %87, %88, %cst_67 {dimension_numbers = #tpu.dot_dimension_numbers<[1], [0], [0], [1], [0, 0, 1, 1], [], []>} : vector<4x576xbf16>, vector<576x128xbf16>, vector<4x128xf32> -> vector<4x128xf32>
    %c0_68 = arith.constant 0 : index
    %c0_69 = arith.constant 0 : index
    %90 = vector.load %arg3[%c0_68, %c0_69] : memref<1x128xf32, #tpu.memory_space<vmem>>, vector<1x128xf32>
    %91 = vector.broadcast %90 : vector<1x128xf32> to vector<4x128xf32>
    %92 = arith.addf %89, %91 : vector<4x128xf32>
    %c0_70 = arith.constant 0 : index
    %c3_71 = arith.constant 3 : index
    %c0_72 = arith.constant 0 : index
    %c0_73 = arith.constant 0 : index
    %93 = vector.load %arg4[%c0_70, %c3_71, %c0_72, %c0_73] : memref<1x4x4x128xf32, #tpu.memory_space<vmem>>, vector<1x1x4x128xf32>
    %94 = vector.shape_cast %93 : vector<1x1x4x128xf32> to vector<4x128xf32>
    %95 = vector.shape_cast %92 : vector<4x128xf32> to vector<1x1x4x128xf32>
    tpu.vector_store %arg4[%c0_70, %c3_71, %c0_72, %c0_73], %95 {strides = array<i32>} : memref<1x4x4x128xf32, #tpu.memory_space<vmem>>, vector<1x1x4x128xf32>,
    return
  }
  func.func @transform_0(%arg0: i32) -> (i32, i32, i32, i32) {
    %c0_i32 = arith.constant 0 : i32
    %c0_i32_0 = arith.constant 0 : i32
    %c0_i32_1 = arith.constant 0 : i32
    %c0_i32_2 = arith.constant 0 : i32
    return %arg0, %c0_i32, %c0_i32_0, %c0_i32_1 : i32, i32, i32, i32
  }
  func.func @transform_1(%arg0: i32) -> (i32, i32) {
    %c0_i32 = arith.constant 0 : i32
    %c0_i32_0 = arith.constant 0 : i32
    %c0_i32_1 = arith.constant 0 : i32
    return %c0_i32, %c0_i32_0 : i32, i32
  }
  func.func @transform_2(%arg0: i32) -> (i32, i32) {
    %c0_i32 = arith.constant 0 : i32
    %c0_i32_0 = arith.constant 0 : i32
    %c0_i32_1 = arith.constant 0 : i32
    return %c0_i32, %c0_i32_0 : i32, i32
  }
  func.func @transform_3(%arg0: i32) -> (i32, i32, i32, i32) {
    %c0_i32 = arith.constant 0 : i32
    %c0_i32_0 = arith.constant 0 : i32
    %c0_i32_1 = arith.constant 0 : i32
    %c0_i32_2 = arith.constant 0 : i32
    return %arg0, %c0_i32, %c0_i32_0, %c0_i32_1 : i32, i32, i32, i32
  }
}

</mosaic_0001>

<llo_original>
// kernel: stack_conv_patch_embed_forward.2
$region0: #{stack_conv_patch_embed_forward.2}
  #allocation0 [shape = 'u32[]', space=smem, size = 0x4, offset = 0x4, fixed_abs, tag = 'smem constant byte address 0x4 - core index']
  #allocation1 [shape = 'u32[144,128]{1,0:T(1,128)}', space=vmem, size = 0x12000, scoped, tag = 'internal scratch']
  %s0 = inlined_call_operand.vmem [shape: bf16[2,18,9,8], index: 0, kind: input, shape index: {}]
  %s1 = inlined_call_operand.vmem [shape: bf16[36,64], index: 1, kind: input, shape index: {}]
  %s2 = inlined_call_operand.vmem [shape: f32[1,64], index: 2, kind: input, shape index: {}]
  %s3 = inlined_call_operand.vmem [shape: bf16[2,8,8,64], index: 3, kind: output, shape index: {}]
  %s4 = sld [smem:[#allocation0]]
  $region45: #{stack_conv_patch_embed_forward.2} parent=0
    _
  %s6 = ssub.s32 1, %s4
  %s7 = scalar_select 0, %s6, %s4
  loop: start=0, step=1, limit=4
  $region2: #{stack_conv_patch_embed_forward.2} parent=0 // loop_pre_header
    _
  $region3: #{stack_conv_patch_embed_forward.2} parent=0 // loop_header
    %s9 = sphi 0, %s13
    %p10 = scmp.ge.s32.totalorder %s9, 4
    %s19 = sphi 0, %s21
    %s22 = sphi 0, %s19
    %s23 = sphi 0, %s22
    %s39 = sphi 0, %s23
    %s43 = sphi 0, %s43
    %s45 = sphi 0, %s43
    %s46 = sphi 0, %s45
    %s60 = sphi 0, %s46
    %s64 = sphi 0, %s64
    %s66 = sphi 0, %s64
    %s67 = sphi 0, %s66
    %s81 = sphi 0, %s67
    %s87 = sphi 0, %s89
    %s90 = sphi 0, %s87
    %s91 = sphi 0, %s90
    %s107 = sphi 0, %s91
  $region4: #{stack_conv_patch_embed_forward.2} parent=0 // loop_header_branch
    %12 = sbr.rel (%p10) target = $region8
  $region5: #{stack_conv_patch_embed_forward.2} parent=0 // loop_body
    %s14 = ssub.s32 %s9, 1
    %s15 = ssub.s32 %s9, 2
    %s16 = sadd.s32 %s9, 1
    %s17 = ssub.s32 %s9, %s16
    %p18 = scmp.eq.s32.totalorder %s17, 0
    %s20 = sadd.s32 %s19, 1
    %s21 = scalar_select %p18, %s19, %s20
    %p24 = pneg %p18
    %p25 = scmp.eq.s32.totalorder %s9, 1
    %p26 = por %p24, %p25
    %p27 = scmp.ne.s32.totalorder %s19, %s22
    %p28 = scmp.eq.s32.totalorder %s9, 0
    %p29 = por %p27, %p28
    %p30 = scmp.ne.s32.totalorder %s19, %s22
    %p31 = scmp.eq.s32.totalorder %s14, 1
    %p32 = por %p30, %p31
    %p33 = scmp.ne.s32.totalorder %s22, %s23
    %p34 = scmp.eq.s32.totalorder %s14, 0
    %p35 = por %p33, %p34
    %p36 = scmp.ne.s32.totalorder %s22, %s23
    %p37 = scmp.eq.s32.totalorder %s15, 1
    %p38 = por %p36, %p37
    %p40 = scmp.ne.s32.totalorder %s23, %s39
    %p41 = scmp.eq.s32.totalorder %s15, 0
    %p42 = por %p40, %p41
    %s44 = sadd.s32 %s43, 1
    %p47 = scmp.eq.s32.totalorder %s9, 1
    %p48 = scmp.ne.s32.totalorder %s43, %s45
    %p49 = scmp.eq.s32.totalorder %s9, 0
    %p50 = por %p48, %p49
    %p51 = scmp.ne.s32.totalorder %s43, %s45
    %p52 = scmp.eq.s32.totalorder %s14, 1
    %p53 = por %p51, %p52
    %p54 = scmp.ne.s32.totalorder %s45, %s46
    %p55 = scmp.eq.s32.totalorder %s14, 0
    %p56 = por %p54, %p55
    %p57 = scmp.ne.s32.totalorder %s45, %s46
    %p58 = scmp.eq.s32.totalorder %s15, 1
    %p59 = por %p57, %p58
    %p61 = scmp.ne.s32.totalorder %s46, %s60
    %p62 = scmp.eq.s32.totalorder %s15, 0
    %p63 = por %p61, %p62
    %s65 = sadd.s32 %s64, 1
    %p68 = scmp.eq.s32.totalorder %s9, 1
    %p69 = scmp.ne.s32.totalorder %s64, %s66
    %p70 = scmp.eq.s32.totalorder %s9, 0
    %p71 = por %p69, %p70
    %p72 = scmp.ne.s32.totalorder %s64, %s66
    %p73 = scmp.eq.s32.totalorder %s14, 1
    %p74 = por %p72, %p73
    %p75 = scmp.ne.s32.totalorder %s66, %s67
    %p76 = scmp.eq.s32.totalorder %s14, 0
    %p77 = por %p75, %p76
    %p78 = scmp.ne.s32.totalorder %s66, %s67
    %p79 = scmp.eq.s32.totalorder %s15, 1
    %p80 = por %p78, %p79
    %p82 = scmp.ne.s32.totalorder %s67, %s81
    %p83 = scmp.eq.s32.totalorder %s15, 0
    %p84 = por %p82, %p83
    %s85 = ssub.s32 %s9, %s16
    %p86 = scmp.eq.s32.totalorder %s85, 0
    %s88 = sadd.s32 %s87, 1
    %s89 = scalar_select %p86, %s87, %s88
    %p92 = pneg %p86
    %p93 = scmp.eq.s32.totalorder %s9, 1
    %p94 = por %p92, %p93
    %p95 = scmp.ne.s32.totalorder %s87, %s90
    %p96 = scmp.eq.s32.totalorder %s9, 0
    %p97 = por %p95, %p96
    %p98 = scmp.ne.s32.totalorder %s87, %s90
    %p99 = scmp.eq.s32.totalorder %s14, 1
    %p100 = por %p98, %p99
    %p101 = scmp.ne.s32.totalorder %s90, %s91
    %p102 = scmp.eq.s32.totalorder %s14, 0
    %p103 = por %p101, %p102
    %p104 = scmp.ne.s32.totalorder %s90, %s91
    %p105 = scmp.eq.s32.totalorder %s15, 1
    %p106 = por %p104, %p105
    %p108 = scmp.ne.s32.totalorder %s91, %s107
    %p109 = scmp.eq.s32.totalorder %s15, 0
    %p110 = por %p108, %p109
    %p111 = scmp.le.s32.totalorder 1, %s9
    %p112 = scmp.lt.s32.totalorder %s9, 3
    %p113 = pnand %p111, %p112
    %p114 = pneg %p113
    // Predicated region
    $region9: #{stack_conv_patch_embed_forward.2} parent=5 // pred_check
      _
    $region10: #{stack_conv_patch_embed_forward.2} parent=5 // pred_check_branch
      %116 = sbr.rel (%p113) target = $region12
    $region11: #{stack_conv_patch_embed_forward.2} parent=5 // pred_region
      %s117 = ssub.s32 %s9, 1
      // Predicated region
      $region13: #{stack_conv_patch_embed_forward.2} parent=11 // pred_check
        %p118 = pneg %p56
      $region14: #{stack_conv_patch_embed_forward.2} parent=11 // pred_check_branch
        %120 = sbr.rel (%p118) target = $region16
      $region15: #{stack_conv_patch_embed_forward.2} parent=11 // pred_region
        _
      $region16: #{stack_conv_patch_embed_forward.2} parent=11 // pred_fallthru
        _
      // Predicated region
      $region17: #{stack_conv_patch_embed_forward.2} parent=11 // pred_check
        %p121 = pneg %p77
      $region18: #{stack_conv_patch_embed_forward.2} parent=11 // pred_check_branch
        %123 = sbr.rel (%p121) target = $region20
      $region19: #{stack_conv_patch_embed_forward.2} parent=11 // pred_region
        _
      $region20: #{stack_conv_patch_embed_forward.2} parent=11 // pred_fallthru
        _
    $region12: #{stack_conv_patch_embed_forward.2} parent=5 // pred_fallthru
      _
    %p124 = scmp.lt.s32.totalorder %s9, 2
    // Predicated region
    $region21: #{stack_conv_patch_embed_forward.2} parent=5 // pred_check
      %p125 = pneg %p124
    $region22: #{stack_conv_patch_embed_forward.2} parent=5 // pred_check_branch
      %127 = sbr.rel (%p125) target = $region24
    $region23: #{stack_conv_patch_embed_forward.2} parent=5 // pred_region
      // Predicated region
      $region25: #{stack_conv_patch_embed_forward.2} parent=23 // pred_check
        %p128 = pneg %p29
      $region26: #{stack_conv_patch_embed_forward.2} parent=23 // pred_check_branch
        %130 = sbr.rel (%p128) target = $region28
      $region27: #{stack_conv_patch_embed_forward.2} parent=23 // pred_region
        %p131 = scmp.lt.s32.totalorder %s9, 1
        %s132 = scalar_select %p131, %s9, 1
        %s133 = smul.addr %s132, 36
        %s134 = smul.addr %s133, 4
        %s135 = scalar_lea.vmem %s0, %s134
      $region28: #{stack_conv_patch_embed_forward.2} parent=23 // pred_fallthru
        _
    $region24: #{stack_conv_patch_embed_forward.2} parent=5 // pred_fallthru
      _
    %p136 = scmp.le.s32.totalorder 1, %s9
    %p137 = scmp.lt.s32.totalorder %s9, 3
    %p138 = pnand %p136, %p137
    %p139 = pneg %p138
    // Predicated region
    $region29: #{stack_conv_patch_embed_forward.2} parent=5 // pred_check
      _
    $region30: #{stack_conv_patch_embed_forward.2} parent=5 // pred_check_branch
      %141 = sbr.rel (%p138) target = $region32
    $region31: #{stack_conv_patch_embed_forward.2} parent=5 // pred_region
      %s142 = ssub.s32 %s9, 1
      %p143 = scmp.lt.s32.totalorder %s14, 1
      %s144 = scalar_select %p143, %s14, 1
      %s145 = smul.addr %s144, 36
      %s146 = smul.addr %s145, 4
      %s147 = scalar_lea.vmem %s0, %s146
      %p148 = pneg %p35
      %p149 = pneg %p32
      %p150 = pneg %p56
      %p151 = pneg %p53
      %p152 = pneg %p77
      %p153 = pneg %p74
      %p154 = pneg %p103
      %p155 = pneg %p100
      %p156 = scmp.lt.s32.totalorder %s14, 1
      %s157 = scalar_select %p156, %s14, 1
      %s158 = smul.addr %s157, 8
      %s159 = smul.addr %s158, 4
      %s160 = scalar_lea.vmem %s3, %s159
      %p161 = scmp.lt.s32.totalorder %s14, 1
      %s162 = scalar_select %p161, %s14, 1
      %s163 = smul.addr %s162, 36
      %s164 = smul.addr %s163, 4
      %s165 = scalar_lea.vmem %s0, %s164
      %p166 = scmp.lt.s32.totalorder %s14, 1
      %s167 = scalar_select %p166, %s14, 1
      %s168 = smul.addr %s167, 8
      %s169 = smul.addr %s168, 4
      %s170 = scalar_lea.vmem %s3, %s169
      %v172 = vld [vmem:[%s165] sm:$0xf]
      %v173 = vld [vmem:[%s165 + $0x4] sm:$0x1]
      %s174 = scalar_lea.vmem %s165, 8
      %v175 = vld [vmem:[%s174] sm:$0xf]
      %v176 = vld [vmem:[%s174 + $0x4] sm:$0x1]
      %s177 = scalar_lea.vmem %s165, 16
      %v178 = vld [vmem:[%s177] sm:$0xf]
      %v179 = vld [vmem:[%s177 + $0x4] sm:$0x1]
      %v182 = vunpack.c.l.b16 %v172
      %v183 = vunpack.c.l.b16 %v173
      %v184 = vpack.c.b16 %v183, %v182
      %v186 = vshrl.u32 %v184, 16
      %v188 = vshll.u32 %v184, 16
      %v190 = vrot.slane %v188, 1
      %v191 = vor.u32 %v186, %v190
      %192 = vrot.lane.b32.xlu0 %v191, 8
      %v193 = vpop.permute.xlu0 %192
      %v195 = vunpack.c.l.b16 %v175
      %v196 = vpack.c.b16 %v195, %v195
      %197 = vrot.lane.b32.xlu0 %v196, 12
      %v198 = vpop.permute.xlu0 %197
      %v200 = vunpack.c.l.b16 %v176
      %v201 = vpack.c.b16 %v200, %v195
      %v203 = vshrl.u32 %v201, 16
      %v205 = vshll.u32 %v201, 16
      %v207 = vrot.slane %v205, 1
      %v208 = vor.u32 %v203, %v207
      %209 = vrot.lane.b32.xlu0 %v208, 20
      %v210 = vpop.permute.xlu0 %209
      %v212 = vunpack.c.l.b16 %v178
      %v213 = vpack.c.b16 %v212, %v212
      %214 = vrot.lane.b32.xlu0 %v213, 24
      %v215 = vpop.permute.xlu0 %214
      %v217 = vunpack.c.l.b16 %v179
      %v218 = vpack.c.b16 %v217, %v212
      %v220 = vshrl.u32 %v218, 16
      %v222 = vshll.u32 %v218, 16
      %v224 = vrot.slane %v222, 1
      %v225 = vor.u32 %v220, %v224
      %226 = vrot.lane.b32.xlu0 %v225, 32
      %v227 = vpop.permute.xlu0 %226
      %vm229 = vcmask 64512
      %v231 = vsel %vm229, %v172, %v193
      %vm232 = vcmask 97280
      %v234 = vsel %vm232, %v231, %v198
      %vm235 = vcmask 130048
      %v236 = vsel %vm235, %v234, %v198
      %vm237 = vcmask 162816
      %v239 = vsel %vm237, %v236, %v210
      %vm240 = vcmask 195584
      %v242 = vsel %vm240, %v239, %v215
      %vm243 = vcmask 228352
      %v244 = vsel %vm243, %v242, %v215
      %vm245 = vcmask 261120
      %v247 = vsel %vm245, %v244, %v227
      %v248 = vld [vmem:[%s1] sm:$0xf]
      %v249 = vld [vmem:[%s1 + $0x4] sm:$0xf]
      %v250 = vld [vmem:[%s1 + $0x8] sm:$0xf]
      %v251 = vld [vmem:[%s1 + $0xc] sm:$0xf]
      %v252 = vld [vmem:[%s1 + $0x10] sm:$0x3]
      %v253 = vld [vmem:[%s2] sm:$0x1]
      %v255 = vlaneseq
      %v256 = vshrl.u32 %v255, 7
      %v257 = vsub.s32 0, %v256
      %v258 = vrot.slane %v253, %v257
      %v265 = vunpack.c.l.b16 %v248
      %v266 = vunpack.c.l.b16 %v249
      %v267 = vunpack.c.l.b16 %v250
      %v268 = vunpack.c.l.b16 %v251
      %v269 = vunpack.c.l.b16 %v252
      %v270 = vpack.c.b16 %v266, %v265
      %v271 = vpack.c.b16 %v268, %v267
      %v272 = vpack.c.b16 %v269, %v269
      %vm275 = vcmask 293888
      %v276 = vsel %vm275, %v247, 0
      %vm278 = vcmask 1041408
      %v280 = vsel %vm278, %v272, 0
      %282 = vmatprep.subr.bf16.mxu0 0
      %283 = vmatpush1.bf16.msra.mxu0 %v270
      %284 = vmatprep.subr.bf16.mxu0 0
      %285 = vmatpush1.bf16.msra.mxu0 %v271
      %286 = vmatprep.subr.bf16.mxu0 0
      %287 = vmatpush1.bf16.msra.mxu0 %v280
      %288 = vmatprep.subr.bf16.mxu0 0
      %289 = vmatpush1.bf16.msra.mxu0 0
      %290 = vmatprep.subr.bf16.mxu0 0
      %291 = vmatpush1.bf16.msra.mxu0 0
      %292 = vmatprep.subr.bf16.mxu0 0
      %293 = vmatpush1.bf16.msra.mxu0 0
      %294 = vmatprep.subr.bf16.mxu0 0
      %295 = vmatpush1.bf16.msra.mxu0 0
      %296 = vmatprep.subr.bf16.mxu0 0
      %297 = vmatpush1.bf16.msra.mxu0 0
      %298 = vmatprep.subr.bf16.mxu0 0
      %299 = vmatpush1.bf16.msra.mxu0 0
      %300 = vmatprep.subr.bf16.mxu0 0
      %301 = vmatpush1.bf16.msra.mxu0 0
      %302 = vmatprep.subr.bf16.mxu0 0
      %303 = vmatpush1.bf16.msra.mxu0 0
      %304 = vmatprep.subr.bf16.mxu0 0
      %305 = vmatpush1.bf16.msra.mxu0 0
      %306 = vmatprep.subr.bf16.mxu0 0
      %307 = vmatpush1.bf16.msra.mxu0 0
      %308 = vmatprep.subr.bf16.mxu0 0
      %309 = vmatpush1.bf16.msra.mxu0 0
      %310 = vmatprep.subr.bf16.mxu0 0
      %311 = vmatpush1.bf16.msra.mxu0 0
      %312 = vmatprep.subr.bf16.mxu0 0
      %313 = vmatpush1.bf16.msra.mxu0 0
      %314 = vmatprep.mubr.bf16.mxu0 0
      %315 = vmatmul.mubr.bf16.gmra.mrb[0].mxu0 %v276
      %v316 = vpop.f32.mrb[0].mxu0
      %v317 = vadd.f32 %v258, %v316
      %v318 = vpop.f32.mrb[0].mxu0
      %v319 = vpop.f32.mrb[0].mxu0
      %v320 = vpop.f32.mrb[0].mxu0
      %321 = vdwg.mxu0
      %v322 = vmul.f32 %v317, 0.5
      %v323 = vmul.f32 %v317, 0.70710677
      %v324 = vand.u32 2147483647, %v323
      %v325 = vmul.f32 %v324, 0.3275911
      %v326 = vadd.f32 %v325, 1.0
      %v327 = vrcp.pop %v326
      %v328 = vmul.f32 1.0, %v327
      %v329 = vmul.f32 %v328, 1.0614054
      %v330 = vadd.f32 %v329, -1.4531521
      %v331 = vmul.f32 %v328, %v330
      %v332 = vadd.f32 %v331, 1.4214138
      %v333 = vmul.f32 %v328, %v332
      %v334 = vadd.f32 %v333, -0.28449672
      %v335 = vmul.f32 %v328, %v334
      %v336 = vadd.f32 %v335, 0.2548296
      %v337 = vmul.f32 %v328, %v336
      %v338 = vsub.f32 0.0, %v324
      %v339 = vmul.f32 %v338, %v324
      %v340 = vmul.f32 %v339, 1.442695
      %v341 = vpow.pop %v340
      %v342 = vmul.f32 %v337, %v341
      %v343 = vsub.f32 1.0, %v342
      %vm344 = vcmp.ge.f32.partialorder %v323, 0.0
      %v345 = vsub.f32 0.0, %v343
      %v346 = vsel %vm344, %v343, %v345
      %v347 = vadd.f32 %v346, 1.0
      %v348 = vmul.f32 %v322, %v347
      %v349 = vpack.c.bf16 %v348, %v348
      %vm350 = vcmask 519168
      %351 = vst.msk [vmem:[%s170] sm:$0xf] %vm350, %v349
      %v352 = vld [vmem:[%s177] sm:$0xf]
      %v353 = vld [vmem:[%s177 + $0x4] sm:$0x1]
      %s354 = scalar_lea.vmem %s165, 24
      %v355 = vld [vmem:[%s354] sm:$0xf]
      %v356 = vld [vmem:[%s354 + $0x4] sm:$0x1]
      %s357 = scalar_lea.vmem %s165, 32
      %v358 = vld [vmem:[%s357] sm:$0xf]
      %v359 = vld [vmem:[%s357 + $0x4] sm:$0x1]
      %v362 = vunpack.c.l.b16 %v352
      %v363 = vunpack.c.l.b16 %v353
      %v364 = vpack.c.b16 %v363, %v362
      %v366 = vshrl.u32 %v364, 16
      %v368 = vshll.u32 %v364, 16
      %v370 = vrot.slane %v368, 1
      %v371 = vor.u32 %v366, %v370
      %372 = vrot.lane.b32.xlu0 %v371, 8
      %v373 = vpop.permute.xlu0 %372
      %v375 = vunpack.c.l.b16 %v355
      %v376 = vpack.c.b16 %v375, %v375
      %377 = vrot.lane.b32.xlu0 %v376, 12
      %v378 = vpop.permute.xlu0 %377
      %v380 = vunpack.c.l.b16 %v356
      %v381 = vpack.c.b16 %v380, %v375
      %v383 = vshrl.u32 %v381, 16
      %v385 = vshll.u32 %v381, 16
      %v387 = vrot.slane %v385, 1
      %v388 = vor.u32 %v383, %v387
      %389 = vrot.lane.b32.xlu0 %v388, 20
      %v390 = vpop.permute.xlu0 %389
      %v392 = vunpack.c.l.b16 %v358
      %v393 = vpack.c.b16 %v392, %v392
      %394 = vrot.lane.b32.xlu0 %v393, 24
      %v395 = vpop.permute.xlu0 %394
      %v397 = vunpack.c.l.b16 %v359
      %v398 = vpack.c.b16 %v397, %v392
      %v400 = vshrl.u32 %v398, 16
      %v402 = vshll.u32 %v398, 16
      %v404 = vrot.slane %v402, 1
      %v405 = vor.u32 %v400, %v404
      %406 = vrot.lane.b32.xlu0 %v405, 32
      %v407 = vpop.permute.xlu0 %406
      %v410 = vsel %vm229, %v352, %v373
      %v412 = vsel %vm232, %v410, %v378
      %v413 = vsel %vm235, %v412, %v378
      %v415 = vsel %vm237, %v413, %v390
      %v417 = vsel %vm240, %v415, %v395
      %v418 = vsel %vm243, %v417, %v395
      %v420 = vsel %vm245, %v418, %v407
      %v421 = vld [vmem:[%s1] sm:$0xf]
      %v422 = vld [vmem:[%s1 + $0x4] sm:$0xf]
      %v423 = vld [vmem:[%s1 + $0x8] sm:$0xf]
      %v424 = vld [vmem:[%s1 + $0xc] sm:$0xf]
      %v425 = vld [vmem:[%s1 + $0x10] sm:$0x3]
      %v426 = vld [vmem:[%s2] sm:$0x1]
      %v428 = vlaneseq
      %v429 = vshrl.u32 %v428, 7
      %v430 = vsub.s32 0, %v429
      %v431 = vrot.slane %v426, %v430
      %v438 = vunpack.c.l.b16 %v421
      %v439 = vunpack.c.l.b16 %v422
      %v440 = vunpack.c.l.b16 %v423
      %v441 = vunpack.c.l.b16 %v424
      %v442 = vunpack.c.l.b16 %v425
      %v443 = vpack.c.b16 %v439, %v438
      %v444 = vpack.c.b16 %v441, %v440
      %v445 = vpack.c.b16 %v442, %v442
      %v448 = vsel %vm275, %v420, 0
      %v451 = vsel %vm278, %v445, 0
      %453 = vmatprep.subr.bf16.mxu0 0
      %454 = vmatpush1.bf16.msra.mxu0 %v443
      %455 = vmatprep.subr.bf16.mxu0 0
      %456 = vmatpush1.bf16.msra.mxu0 %v444
      %457 = vmatprep.subr.bf16.mxu0 0
      %458 = vmatpush1.bf16.msra.mxu0 %v451
      %459 = vmatprep.subr.bf16.mxu0 0
      %460 = vmatpush1.bf16.msra.mxu0 0
      %461 = vmatprep.subr.bf16.mxu0 0
      %462 = vmatpush1.bf16.msra.mxu0 0
      %463 = vmatprep.subr.bf16.mxu0 0
      %464 = vmatpush1.bf16.msra.mxu0 0
      %465 = vmatprep.subr.bf16.mxu0 0
      %466 = vmatpush1.bf16.msra.mxu0 0
      %467 = vmatprep.subr.bf16.mxu0 0
      %468 = vmatpush1.bf16.msra.mxu0 0
      %469 = vmatprep.subr.bf16.mxu0 0
      %470 = vmatpush1.bf16.msra.mxu0 0
      %471 = vmatprep.subr.bf16.mxu0 0
      %472 = vmatpush1.bf16.msra.mxu0 0
      %473 = vmatprep.subr.bf16.mxu0 0
      %474 = vmatpush1.bf16.msra.mxu0 0
      %475 = vmatprep.subr.bf16.mxu0 0
      %476 = vmatpush1.bf16.msra.mxu0 0
      %477 = vmatprep.subr.bf16.mxu0 0
      %478 = vmatpush1.bf16.msra.mxu0 0
      %479 = vmatprep.subr.bf16.mxu0 0
      %480 = vmatpush1.bf16.msra.mxu0 0
      %481 = vmatprep.subr.bf16.mxu0 0
      %482 = vmatpush1.bf16.msra.mxu0 0
      %483 = vmatprep.subr.bf16.mxu0 0
      %484 = vmatpush1.bf16.msra.mxu0 0
      %485 = vmatprep.mubr.bf16.mxu0 0
      %486 = vmatmul.mubr.bf16.gmra.mrb[0].mxu0 %v448
      %v487 = vpop.f32.mrb[0].mxu0
      %v488 = vadd.f32 %v431, %v487
      %v489 = vpop.f32.mrb[0].mxu0
      %v490 = vpop.f32.mrb[0].mxu0
      %v491 = vpop.f32.mrb[0].mxu0
      %492 = vdwg.mxu0
      %v493 = vmul.f32 %v488, 0.5
      %v494 = vmul.f32 %v488, 0.70710677
      %v495 = vand.u32 2147483647, %v494
      %v496 = vmul.f32 %v495, 0.3275911
      %v497 = vadd.f32 %v496, 1.0
      %v498 = vrcp.pop %v497
      %v499 = vmul.f32 1.0, %v498
      %v500 = vmul.f32 %v499, 1.0614054
      %v501 = vadd.f32 %v500, -1.4531521
      %v502 = vmul.f32 %v499, %v501
      %v503 = vadd.f32 %v502, 1.4214138
      %v504 = vmul.f32 %v499, %v503
      %v505 = vadd.f32 %v504, -0.28449672
      %v506 = vmul.f32 %v499, %v505
      %v507 = vadd.f32 %v506, 0.2548296
      %v508 = vmul.f32 %v499, %v507
      %v509 = vsub.f32 0.0, %v495
      %v510 = vmul.f32 %v509, %v495
      %v511 = vmul.f32 %v510, 1.442695
      %v512 = vpow.pop %v511
      %v513 = vmul.f32 %v508, %v512
      %v514 = vsub.f32 1.0, %v513
      %vm515 = vcmp.ge.f32.partialorder %v494, 0.0
      %v516 = vsub.f32 0.0, %v514
      %v517 = vsel %vm515, %v514, %v516
      %v518 = vadd.f32 %v517, 1.0
      %v519 = vmul.f32 %v493, %v518
      %v520 = vpack.c.bf16 %v519, %v519
      %s521 = scalar_lea.vmem %s170, 4
      %522 = vst.msk [vmem:[%s521] sm:$0xf] %vm350, %v520
      %v523 = vld [vmem:[%s357] sm:$0xf]
      %v524 = vld [vmem:[%s357 + $0x4] sm:$0x1]
      %s525 = scalar_lea.vmem %s165, 40
      %v526 = vld [vmem:[%s525] sm:$0xf]
      %v527 = vld [vmem:[%s525 + $0x4] sm:$0x1]
      %s528 = scalar_lea.vmem %s165, 48
      %v529 = vld [vmem:[%s528] sm:$0xf]
      %v530 = vld [vmem:[%s528 + $0x4] sm:$0x1]
      %v533 = vunpack.c.l.b16 %v523
      %v534 = vunpack.c.l.b16 %v524
      %v535 = vpack.c.b16 %v534, %v533
      %v537 = vshrl.u32 %v535, 16
      %v539 = vshll.u32 %v535, 16
      %v541 = vrot.slane %v539, 1
      %v542 = vor.u32 %v537, %v541
      %543 = vrot.lane.b32.xlu0 %v542, 8
      %v544 = vpop.permute.xlu0 %543
      %v546 = vunpack.c.l.b16 %v526
      %v547 = vpack.c.b16 %v546, %v546
      %548 = vrot.lane.b32.xlu0 %v547, 12
      %v549 = vpop.permute.xlu0 %548
      %v551 = vunpack.c.l.b16 %v527
      %v552 = vpack.c.b16 %v551, %v546
      %v554 = vshrl.u32 %v552, 16
      %v556 = vshll.u32 %v552, 16
      %v558 = vrot.slane %v556, 1
      %v559 = vor.u32 %v554, %v558
      %560 = vrot.lane.b32.xlu0 %v559, 20
      %v561 = vpop.permute.xlu0 %560
      %v563 = vunpack.c.l.b16 %v529
      %v564 = vpack.c.b16 %v563, %v563
      %565 = vrot.lane.b32.xlu0 %v564, 24
      %v566 = vpop.permute.xlu0 %565
      %v568 = vunpack.c.l.b16 %v530
      %v569 = vpack.c.b16 %v568, %v563
      %v571 = vshrl.u32 %v569, 16
      %v573 = vshll.u32 %v569, 16
      %v575 = vrot.slane %v573, 1
      %v576 = vor.u32 %v571, %v575
      %577 = vrot.lane.b32.xlu0 %v576, 32
      %v578 = vpop.permute.xlu0 %577
      %v581 = vsel %vm229, %v523, %v544
      %v583 = vsel %vm232, %v581, %v549
      %v584 = vsel %vm235, %v583, %v549
      %v586 = vsel %vm237, %v584, %v561
      %v588 = vsel %vm240, %v586, %v566
      %v589 = vsel %vm243, %v588, %v566
      %v591 = vsel %vm245, %v589, %v578
      %v592 = vld [vmem:[%s1] sm:$0xf]
      %v593 = vld [vmem:[%s1 + $0x4] sm:$0xf]
      %v594 = vld [vmem:[%s1 + $0x8] sm:$0xf]
      %v595 = vld [vmem:[%s1 + $0xc] sm:$0xf]
      %v596 = vld [vmem:[%s1 + $0x10] sm:$0x3]
      %v597 = vld [vmem:[%s2] sm:$0x1]
      %v599 = vlaneseq
      %v600 = vshrl.u32 %v599, 7
      %v601 = vsub.s32 0, %v600
      %v602 = vrot.slane %v597, %v601
      %v609 = vunpack.c.l.b16 %v592
      %v610 = vunpack.c.l.b16 %v593
      %v611 = vunpack.c.l.b16 %v594
      %v612 = vunpack.c.l.b16 %v595
      %v613 = vunpack.c.l.b16 %v596
      %v614 = vpack.c.b16 %v610, %v609
      %v615 = vpack.c.b16 %v612, %v611
      %v616 = vpack.c.b16 %v613, %v613
      %v619 = vsel %vm275, %v591, 0
      %v622 = vsel %vm278, %v616, 0
      %624 = vmatprep.subr.bf16.mxu0 0
      %625 = vmatpush1.bf16.msra.mxu0 %v614
      %626 = vmatprep.subr.bf16.mxu0 0
      %627 = vmatpush1.bf16.msra.mxu0 %v615
      %628 = vmatprep.subr.bf16.mxu0 0
      %629 = vmatpush1.bf16.msra.mxu0 %v622
      %630 = vmatprep.subr.bf16.mxu0 0
      %631 = vmatpush1.bf16.msra.mxu0 0
      %632 = vmatprep.subr.bf16.mxu0 0
      %633 = vmatpush1.bf16.msra.mxu0 0
      %634 = vmatprep.subr.bf16.mxu0 0
      %635 = vmatpush1.bf16.msra.mxu0 0
      %636 = vmatprep.subr.bf16.mxu0 0
      %637 = vmatpush1.bf16.msra.mxu0 0
      %638 = vmatprep.subr.bf16.mxu0 0
      %639 = vmatpush1.bf16.msra.mxu0 0
      %640 = vmatprep.subr.bf16.mxu0 0
      %641 = vmatpush1.bf16.msra.mxu0 0
      %642 = vmatprep.subr.bf16.mxu0 0
      %643 = vmatpush1.bf16.msra.mxu0 0
      %644 = vmatprep.subr.bf16.mxu0 0
      %645 = vmatpush1.bf16.msra.mxu0 0
      %646 = vmatprep.subr.bf16.mxu0 0
      %647 = vmatpush1.bf16.msra.mxu0 0
      %648 = vmatprep.subr.bf16.mxu0 0
      %649 = vmatpush1.bf16.msra.mxu0 0
      %650 = vmatprep.subr.bf16.mxu0 0
      %651 = vmatpush1.bf16.msra.mxu0 0
      %652 = vmatprep.subr.bf16.mxu0 0
      %653 = vmatpush1.bf16.msra.mxu0 0
      %654 = vmatprep.subr.bf16.mxu0 0
      %655 = vmatpush1.bf16.msra.mxu0 0
      %656 = vmatprep.mubr.bf16.mxu0 0
      %657 = vmatmul.mubr.bf16.gmra.mrb[0].mxu0 %v619
      %v658 = vpop.f32.mrb[0].mxu0
      %v659 = vadd.f32 %v602, %v658
      %v660 = vpop.f32.mrb[0].mxu0
      %v661 = vpop.f32.mrb[0].mxu0
      %v662 = vpop.f32.mrb[0].mxu0
      %663 = vdwg.mxu0
      %v664 = vmul.f32 %v659, 0.5
      %v665 = vmul.f32 %v659, 0.70710677
      %v666 = vand.u32 2147483647, %v665
      %v667 = vmul.f32 %v666, 0.3275911
      %v668 = vadd.f32 %v667, 1.0
      %v669 = vrcp.pop %v668
      %v670 = vmul.f32 1.0, %v669
      %v671 = vmul.f32 %v670, 1.0614054
      %v672 = vadd.f32 %v671, -1.4531521
      %v673 = vmul.f32 %v670, %v672
      %v674 = vadd.f32 %v673, 1.4214138
      %v675 = vmul.f32 %v670, %v674
      %v676 = vadd.f32 %v675, -0.28449672
      %v677 = vmul.f32 %v670, %v676
      %v678 = vadd.f32 %v677, 0.2548296
      %v679 = vmul.f32 %v670, %v678
      %v680 = vsub.f32 0.0, %v666
      %v681 = vmul.f32 %v680, %v666
      %v682 = vmul.f32 %v681, 1.442695
      %v683 = vpow.pop %v682
      %v684 = vmul.f32 %v679, %v683
      %v685 = vsub.f32 1.0, %v684
      %vm686 = vcmp.ge.f32.partialorder %v665, 0.0
      %v687 = vsub.f32 0.0, %v685
      %v688 = vsel %vm686, %v685, %v687
      %v689 = vadd.f32 %v688, 1.0
      %v690 = vmul.f32 %v664, %v689
      %v691 = vpack.c.bf16 %v690, %v690
      %s692 = scalar_lea.vmem %s170, 8
      %693 = vst.msk [vmem:[%s692] sm:$0xf] %vm350, %v691
      %v694 = vld [vmem:[%s528] sm:$0xf]
      %v695 = vld [vmem:[%s528 + $0x4] sm:$0x1]
      %s696 = scalar_lea.vmem %s165, 56
      %v697 = vld [vmem:[%s696] sm:$0xf]
      %v698 = vld [vmem:[%s696 + $0x4] sm:$0x1]
      %s699 = scalar_lea.vmem %s165, 64
      %v700 = vld [vmem:[%s699] sm:$0xf]
      %v701 = vld [vmem:[%s699 + $0x4] sm:$0x1]
      %v704 = vunpack.c.l.b16 %v694
      %v705 = vunpack.c.l.b16 %v695
      %v706 = vpack.c.b16 %v705, %v704
      %v708 = vshrl.u32 %v706, 16
      %v710 = vshll.u32 %v706, 16
      %v712 = vrot.slane %v710, 1
      %v713 = vor.u32 %v708, %v712
      %714 = vrot.lane.b32.xlu0 %v713, 8
      %v715 = vpop.permute.xlu0 %714
      %v717 = vunpack.c.l.b16 %v697
      %v718 = vpack.c.b16 %v717, %v717
      %719 = vrot.lane.b32.xlu0 %v718, 12
      %v720 = vpop.permute.xlu0 %719
      %v722 = vunpack.c.l.b16 %v698
      %v723 = vpack.c.b16 %v722, %v717
      %v725 = vshrl.u32 %v723, 16
      %v727 = vshll.u32 %v723, 16
      %v729 = vrot.slane %v727, 1
      %v730 = vor.u32 %v725, %v729
      %731 = vrot.lane.b32.xlu0 %v730, 20
      %v732 = vpop.permute.xlu0 %731
      %v734 = vunpack.c.l.b16 %v700
      %v735 = vpack.c.b16 %v734, %v734
      %736 = vrot.lane.b32.xlu0 %v735, 24
      %v737 = vpop.permute.xlu0 %736
      %v739 = vunpack.c.l.b16 %v701
      %v740 = vpack.c.b16 %v739, %v734
      %v742 = vshrl.u32 %v740, 16
      %v744 = vshll.u32 %v740, 16
      %v746 = vrot.slane %v744, 1
      %v747 = vor.u32 %v742, %v746
      %748 = vrot.lane.b32.xlu0 %v747, 32
      %v749 = vpop.permute.xlu0 %748
      %v752 = vsel %vm229, %v694, %v715
      %v754 = vsel %vm232, %v752, %v720
      %v755 = vsel %vm235, %v754, %v720
      %v757 = vsel %vm237, %v755, %v732
      %v759 = vsel %vm240, %v757, %v737
      %v760 = vsel %vm243, %v759, %v737
      %v762 = vsel %vm245, %v760, %v749
      %v763 = vld [vmem:[%s1] sm:$0xf]
      %v764 = vld [vmem:[%s1 + $0x4] sm:$0xf]
      %v765 = vld [vmem:[%s1 + $0x8] sm:$0xf]
      %v766 = vld [vmem:[%s1 + $0xc] sm:$0xf]
      %v767 = vld [vmem:[%s1 + $0x10] sm:$0x3]
      %v768 = vld [vmem:[%s2] sm:$0x1]
      %v770 = vlaneseq
      %v771 = vshrl.u32 %v770, 7
      %v772 = vsub.s32 0, %v771
      %v773 = vrot.slane %v768, %v772
      %v780 = vunpack.c.l.b16 %v763
      %v781 = vunpack.c.l.b16 %v764
      %v782 = vunpack.c.l.b16 %v765
      %v783 = vunpack.c.l.b16 %v766
      %v784 = vunpack.c.l.b16 %v767
      %v785 = vpack.c.b16 %v781, %v780
      %v786 = vpack.c.b16 %v783, %v782
      %v787 = vpack.c.b16 %v784, %v784
      %v790 = vsel %vm275, %v762, 0
      %v793 = vsel %vm278, %v787, 0
      %795 = vmatprep.subr.bf16.mxu0 0
      %796 = vmatpush1.bf16.msra.mxu0 %v785
      %797 = vmatprep.subr.bf16.mxu0 0
      %798 = vmatpush1.bf16.msra.mxu0 %v786
      %799 = vmatprep.subr.bf16.mxu0 0
      %800 = vmatpush1.bf16.msra.mxu0 %v793
      %801 = vmatprep.subr.bf16.mxu0 0
      %802 = vmatpush1.bf16.msra.mxu0 0
      %803 = vmatprep.subr.bf16.mxu0 0
      %804 = vmatpush1.bf16.msra.mxu0 0
      %805 = vmatprep.subr.bf16.mxu0 0
      %806 = vmatpush1.bf16.msra.mxu0 0
      %807 = vmatprep.subr.bf16.mxu0 0
      %808 = vmatpush1.bf16.msra.mxu0 0
      %809 = vmatprep.subr.bf16.mxu0 0
      %810 = vmatpush1.bf16.msra.mxu0 0
      %811 = vmatprep.subr.bf16.mxu0 0
      %812 = vmatpush1.bf16.msra.mxu0 0
      %813 = vmatprep.subr.bf16.mxu0 0
      %814 = vmatpush1.bf16.msra.mxu0 0
      %815 = vmatprep.subr.bf16.mxu0 0
      %816 = vmatpush1.bf16.msra.mxu0 0
      %817 = vmatprep.subr.bf16.mxu0 0
      %818 = vmatpush1.bf16.msra.mxu0 0
      %819 = vmatprep.subr.bf16.mxu0 0
      %820 = vmatpush1.bf16.msra.mxu0 0
      %821 = vmatprep.subr.bf16.mxu0 0
      %822 = vmatpush1.bf16.msra.mxu0 0
      %823 = vmatprep.subr.bf16.mxu0 0
      %824 = vmatpush1.bf16.msra.mxu0 0
      %825 = vmatprep.subr.bf16.mxu0 0
      %826 = vmatpush1.bf16.msra.mxu0 0
      %827 = vmatprep.mubr.bf16.mxu0 0
      %828 = vmatmul.mubr.bf16.gmra.mrb[0].mxu0 %v790
      %v829 = vpop.f32.mrb[0].mxu0
      %v830 = vadd.f32 %v773, %v829
      %v831 = vpop.f32.mrb[0].mxu0
      %v832 = vpop.f32.mrb[0].mxu0
      %v833 = vpop.f32.mrb[0].mxu0
      %834 = vdwg.mxu0
      %v835 = vmul.f32 %v830, 0.5
      %v836 = vmul.f32 %v830, 0.70710677
      %v837 = vand.u32 2147483647, %v836
      %v838 = vmul.f32 %v837, 0.3275911
      %v839 = vadd.f32 %v838, 1.0
      %v840 = vrcp.pop %v839
      %v841 = vmul.f32 1.0, %v840
      %v842 = vmul.f32 %v841, 1.0614054
      %v843 = vadd.f32 %v842, -1.4531521
      %v844 = vmul.f32 %v841, %v843
      %v845 = vadd.f32 %v844, 1.4214138
      %v846 = vmul.f32 %v841, %v845
      %v847 = vadd.f32 %v846, -0.28449672
      %v848 = vmul.f32 %v841, %v847
      %v849 = vadd.f32 %v848, 0.2548296
      %v850 = vmul.f32 %v841, %v849
      %v851 = vsub.f32 0.0, %v837
      %v852 = vmul.f32 %v851, %v837
      %v853 = vmul.f32 %v852, 1.442695
      %v854 = vpow.pop %v853
      %v855 = vmul.f32 %v850, %v854
      %v856 = vsub.f32 1.0, %v855
      %vm857 = vcmp.ge.f32.partialorder %v836, 0.0
      %v858 = vsub.f32 0.0, %v856
      %v859 = vsel %vm857, %v856, %v858
      %v860 = vadd.f32 %v859, 1.0
      %v861 = vmul.f32 %v835, %v860
      %v862 = vpack.c.bf16 %v861, %v861
      %s863 = scalar_lea.vmem %s170, 12
      %864 = vst.msk [vmem:[%s863] sm:$0xf] %vm350, %v862
      %v865 = vld [vmem:[%s699] sm:$0xf]
      %v866 = vld [vmem:[%s699 + $0x4] sm:$0x1]
      %s867 = scalar_lea.vmem %s165, 72
      %v868 = vld [vmem:[%s867] sm:$0xf]
      %v869 = vld [vmem:[%s867 + $0x4] sm:$0x1]
      %s870 = scalar_lea.vmem %s165, 80
      %v871 = vld [vmem:[%s870] sm:$0xf]
      %v872 = vld [vmem:[%s870 + $0x4] sm:$0x1]
      %v875 = vunpack.c.l.b16 %v865
      %v876 = vunpack.c.l.b16 %v866
      %v877 = vpack.c.b16 %v876, %v875
      %v879 = vshrl.u32 %v877, 16
      %v881 = vshll.u32 %v877, 16
      %v883 = vrot.slane %v881, 1
      %v884 = vor.u32 %v879, %v883
      %885 = vrot.lane.b32.xlu0 %v884, 8
      %v886 = vpop.permute.xlu0 %885
      %v888 = vunpack.c.l.b16 %v868
      %v889 = vpack.c.b16 %v888, %v888
      %890 = vrot.lane.b32.xlu0 %v889, 12
      %v891 = vpop.permute.xlu0 %890
      %v893 = vunpack.c.l.b16 %v869
      %v894 = vpack.c.b16 %v893, %v888
      %v896 = vshrl.u32 %v894, 16
      %v898 = vshll.u32 %v894, 16
      %v900 = vrot.slane %v898, 1
      %v901 = vor.u32 %v896, %v900
      %902 = vrot.lane.b32.xlu0 %v901, 20
      %v903 = vpop.permute.xlu0 %902
      %v905 = vunpack.c.l.b16 %v871
      %v906 = vpack.c.b16 %v905, %v905
      %907 = vrot.lane.b32.xlu0 %v906, 24
      %v908 = vpop.permute.xlu0 %907
      %v910 = vunpack.c.l.b16 %v872
      %v911 = vpack.c.b16 %v910, %v905
      %v913 = vshrl.u32 %v911, 16
      %v915 = vshll.u32 %v911, 16
      %v917 = vrot.slane %v915, 1
      %v918 = vor.u32 %v913, %v917
      %919 = vrot.lane.b32.xlu0 %v918, 32
      %v920 = vpop.permute.xlu0 %919
      %v923 = vsel %vm229, %v865, %v886
      %v925 = vsel %vm232, %v923, %v891
      %v926 = vsel %vm235, %v925, %v891
      %v928 = vsel %vm237, %v926, %v903
      %v930 = vsel %vm240, %v928, %v908
      %v931 = vsel %vm243, %v930, %v908
      %v933 = vsel %vm245, %v931, %v920
      %v934 = vld [vmem:[%s1] sm:$0xf]
      %v935 = vld [vmem:[%s1 + $0x4] sm:$0xf]
      %v936 = vld [vmem:[%s1 + $0x8] sm:$0xf]
      %v937 = vld [vmem:[%s1 + $0xc] sm:$0xf]
      %v938 = vld [vmem:[%s1 + $0x10] sm:$0x3]
      %v939 = vld [vmem:[%s2] sm:$0x1]
      %v941 = vlaneseq
      %v942 = vshrl.u32 %v941, 7
      %v943 = vsub.s32 0, %v942
      %v944 = vrot.slane %v939, %v943
      %v951 = vunpack.c.l.b16 %v934
      %v952 = vunpack.c.l.b16 %v935
      %v953 = vunpack.c.l.b16 %v936
      %v954 = vunpack.c.l.b16 %v937
      %v955 = vunpack.c.l.b16 %v938
      %v956 = vpack.c.b16 %v952, %v951
      %v957 = vpack.c.b16 %v954, %v953
      %v958 = vpack.c.b16 %v955, %v955
      %v961 = vsel %vm275, %v933, 0
      %v964 = vsel %vm278, %v958, 0
      %966 = vmatprep.subr.bf16.mxu0 0
      %967 = vmatpush1.bf16.msra.mxu0 %v956
      %968 = vmatprep.subr.bf16.mxu0 0
      %969 = vmatpush1.bf16.msra.mxu0 %v957
      %970 = vmatprep.subr.bf16.mxu0 0
      %971 = vmatpush1.bf16.msra.mxu0 %v964
      %972 = vmatprep.subr.bf16.mxu0 0
      %973 = vmatpush1.bf16.msra.mxu0 0
      %974 = vmatprep.subr.bf16.mxu0 0
      %975 = vmatpush1.bf16.msra.mxu0 0
      %976 = vmatprep.subr.bf16.mxu0 0
      %977 = vmatpush1.bf16.msra.mxu0 0
      %978 = vmatprep.subr.bf16.mxu0 0
      %979 = vmatpush1.bf16.msra.mxu0 0
      %980 = vmatprep.subr.bf16.mxu0 0
      %981 = vmatpush1.bf16.msra.mxu0 0
      %982 = vmatprep.subr.bf16.mxu0 0
      %983 = vmatpush1.bf16.msra.mxu0 0
      %984 = vmatprep.subr.bf16.mxu0 0
      %985 = vmatpush1.bf16.msra.mxu0 0
      %986 = vmatprep.subr.bf16.mxu0 0
      %987 = vmatpush1.bf16.msra.mxu0 0
      %988 = vmatprep.subr.bf16.mxu0 0
      %989 = vmatpush1.bf16.msra.mxu0 0
      %990 = vmatprep.subr.bf16.mxu0 0
      %991 = vmatpush1.bf16.msra.mxu0 0
      %992 = vmatprep.subr.bf16.mxu0 0
      %993 = vmatpush1.bf16.msra.mxu0 0
      %994 = vmatprep.subr.bf16.mxu0 0
      %995 = vmatpush1.bf16.msra.mxu0 0
      %996 = vmatprep.subr.bf16.mxu0 0
      %997 = vmatpush1.bf16.msra.mxu0 0
      %998 = vmatprep.mubr.bf16.mxu0 0
      %999 = vmatmul.mubr.bf16.gmra.mrb[0].mxu0 %v961
      %v1000 = vpop.f32.mrb[0].mxu0
      %v1001 = vadd.f32 %v944, %v1000
      %v1002 = vpop.f32.mrb[0].mxu0
      %v1003 = vpop.f32.mrb[0].mxu0
      %v1004 = vpop.f32.mrb[0].mxu0
      %1005 = vdwg.mxu0
      %v1006 = vmul.f32 %v1001, 0.5
      %v1007 = vmul.f32 %v1001, 0.70710677
      %v1008 = vand.u32 2147483647, %v1007
      %v1009 = vmul.f32 %v1008, 0.3275911
      %v1010 = vadd.f32 %v1009, 1.0
      %v1011 = vrcp.pop %v1010
      %v1012 = vmul.f32 1.0, %v1011
      %v1013 = vmul.f32 %v1012, 1.0614054
      %v1014 = vadd.f32 %v1013, -1.4531521
      %v1015 = vmul.f32 %v1012, %v1014
      %v1016 = vadd.f32 %v1015, 1.4214138
      %v1017 = vmul.f32 %v1012, %v1016
      %v1018 = vadd.f32 %v1017, -0.28449672
      %v1019 = vmul.f32 %v1012, %v1018
      %v1020 = vadd.f32 %v1019, 0.2548296
      %v1021 = vmul.f32 %v1012, %v1020
      %v1022 = vsub.f32 0.0, %v1008
      %v1023 = vmul.f32 %v1022, %v1008
      %v1024 = vmul.f32 %v1023, 1.442695
      %v1025 = vpow.pop %v1024
      %v1026 = vmul.f32 %v1021, %v1025
      %v1027 = vsub.f32 1.0, %v1026
      %vm1028 = vcmp.ge.f32.partialorder %v1007, 0.0
      %v1029 = vsub.f32 0.0, %v1027
      %v1030 = vsel %vm1028, %v1027, %v1029
      %v1031 = vadd.f32 %v1030, 1.0
      %v1032 = vmul.f32 %v1006, %v1031
      %v1033 = vpack.c.bf16 %v1032, %v1032
      %s1034 = scalar_lea.vmem %s170, 16
      %1035 = vst.msk [vmem:[%s1034] sm:$0xf] %vm350, %v1033
      %v1036 = vld [vmem:[%s870] sm:$0xf]
      %v1037 = vld [vmem:[%s870 + $0x4] sm:$0x1]
      %s1038 = scalar_lea.vmem %s165, 88
      %v1039 = vld [vmem:[%s1038] sm:$0xf]
      %v1040 = vld [vmem:[%s1038 + $0x4] sm:$0x1]
      %s1041 = scalar_lea.vmem %s165, 96
      %v1042 = vld [vmem:[%s1041] sm:$0xf]
      %v1043 = vld [vmem:[%s1041 + $0x4] sm:$0x1]
      %v1046 = vunpack.c.l.b16 %v1036
      %v1047 = vunpack.c.l.b16 %v1037
      %v1048 = vpack.c.b16 %v1047, %v1046
      %v1050 = vshrl.u32 %v1048, 16
      %v1052 = vshll.u32 %v1048, 16
      %v1054 = vrot.slane %v1052, 1
      %v1055 = vor.u32 %v1050, %v1054
      %1056 = vrot.lane.b32.xlu0 %v1055, 8
      %v1057 = vpop.permute.xlu0 %1056
      %v1059 = vunpack.c.l.b16 %v1039
      %v1060 = vpack.c.b16 %v1059, %v1059
      %1061 = vrot.lane.b32.xlu0 %v1060, 12
      %v1062 = vpop.permute.xlu0 %1061
      %v1064 = vunpack.c.l.b16 %v1040
      %v1065 = vpack.c.b16 %v1064, %v1059
      %v1067 = vshrl.u32 %v1065, 16
      %v1069 = vshll.u32 %v1065, 16
      %v1071 = vrot.slane %v1069, 1
      %v1072 = vor.u32 %v1067, %v1071
      %1073 = vrot.lane.b32.xlu0 %v1072, 20
      %v1074 = vpop.permute.xlu0 %1073
      %v1076 = vunpack.c.l.b16 %v1042
      %v1077 = vpack.c.b16 %v1076, %v1076
      %1078 = vrot.lane.b32.xlu0 %v1077, 24
      %v1079 = vpop.permute.xlu0 %1078
      %v1081 = vunpack.c.l.b16 %v1043
      %v1082 = vpack.c.b16 %v1081, %v1076
      %v1084 = vshrl.u32 %v1082, 16
      %v1086 = vshll.u32 %v1082, 16
      %v1088 = vrot.slane %v1086, 1
      %v1089 = vor.u32 %v1084, %v1088
      %1090 = vrot.lane.b32.xlu0 %v1089, 32
      %v1091 = vpop.permute.xlu0 %1090
      %v1094 = vsel %vm229, %v1036, %v1057
      %v1096 = vsel %vm232, %v1094, %v1062
      %v1097 = vsel %vm235, %v1096, %v1062
      %v1099 = vsel %vm237, %v1097, %v1074
      %v1101 = vsel %vm240, %v1099, %v1079
      %v1102 = vsel %vm243, %v1101, %v1079
      %v1104 = vsel %vm245, %v1102, %v1091
      %v1105 = vld [vmem:[%s1] sm:$0xf]
      %v1106 = vld [vmem:[%s1 + $0x4] sm:$0xf]
      %v1107 = vld [vmem:[%s1 + $0x8] sm:$0xf]
      %v1108 = vld [vmem:[%s1 + $0xc] sm:$0xf]
      %v1109 = vld [vmem:[%s1 + $0x10] sm:$0x3]
      %v1110 = vld [vmem:[%s2] sm:$0x1]
      %v1112 = vlaneseq
      %v1113 = vshrl.u32 %v1112, 7
      %v1114 = vsub.s32 0, %v1113
      %v1115 = vrot.slane %v1110, %v1114
      %v1122 = vunpack.c.l.b16 %v1105
      %v1123 = vunpack.c.l.b16 %v1106
      %v1124 = vunpack.c.l.b16 %v1107
      %v1125 = vunpack.c.l.b16 %v1108
      %v1126 = vunpack.c.l.b16 %v1109
      %v1127 = vpack.c.b16 %v1123, %v1122
      %v1128 = vpack.c.b16 %v1125, %v1124
      %v1129 = vpack.c.b16 %v1126, %v1126
      %v1132 = vsel %vm275, %v1104, 0
      %v1135 = vsel %vm278, %v1129, 0
      %1137 = vmatprep.subr.bf16.mxu0 0
      %1138 = vmatpush1.bf16.msra.mxu0 %v1127
      %1139 = vmatprep.subr.bf16.mxu0 0
      %1140 = vmatpush1.bf16.msra.mxu0 %v1128
      %1141 = vmatprep.subr.bf16.mxu0 0
      %1142 = vmatpush1.bf16.msra.mxu0 %v1135
      %1143 = vmatprep.subr.bf16.mxu0 0
      %1144 = vmatpush1.bf16.msra.mxu0 0
      %1145 = vmatprep.subr.bf16.mxu0 0
      %1146 = vmatpush1.bf16.msra.mxu0 0
      %1147 = vmatprep.subr.bf16.mxu0 0
      %1148 = vmatpush1.bf16.msra.mxu0 0
      %1149 = vmatprep.subr.bf16.mxu0 0
      %1150 = vmatpush1.bf16.msra.mxu0 0
      %1151 = vmatprep.subr.bf16.mxu0 0
      %1152 = vmatpush1.bf16.msra.mxu0 0
      %1153 = vmatprep.subr.bf16.mxu0 0
      %1154 = vmatpush1.bf16.msra.mxu0 0
      %1155 = vmatprep.subr.bf16.mxu0 0
      %1156 = vmatpush1.bf16.msra.mxu0 0
      %1157 = vmatprep.subr.bf16.mxu0 0
      %1158 = vmatpush1.bf16.msra.mxu0 0
      %1159 = vmatprep.subr.bf16.mxu0 0
      %1160 = vmatpush1.bf16.msra.mxu0 0
      %1161 = vmatprep.subr.bf16.mxu0 0
      %1162 = vmatpush1.bf16.msra.mxu0 0
      %1163 = vmatprep.subr.bf16.mxu0 0
      %1164 = vmatpush1.bf16.msra.mxu0 0
      %1165 = vmatprep.subr.bf16.mxu0 0
      %1166 = vmatpush1.bf16.msra.mxu0 0
      %1167 = vmatprep.subr.bf16.mxu0 0
      %1168 = vmatpush1.bf16.msra.mxu0 0
      %1169 = vmatprep.mubr.bf16.mxu0 0
      %1170 = vmatmul.mubr.bf16.gmra.mrb[0].mxu0 %v1132
      %v1171 = vpop.f32.mrb[0].mxu0
      %v1172 = vadd.f32 %v1115, %v1171
      %v1173 = vpop.f32.mrb[0].mxu0
      %v1174 = vpop.f32.mrb[0].mxu0
      %v1175 = vpop.f32.mrb[0].mxu0
      %1176 = vdwg.mxu0
      %v1177 = vmul.f32 %v1172, 0.5
      %v1178 = vmul.f32 %v1172, 0.70710677
      %v1179 = vand.u32 2147483647, %v1178
      %v1180 = vmul.f32 %v1179, 0.3275911
      %v1181 = vadd.f32 %v1180, 1.0
      %v1182 = vrcp.pop %v1181
      %v1183 = vmul.f32 1.0, %v1182
      %v1184 = vmul.f32 %v1183, 1.0614054
      %v1185 = vadd.f32 %v1184, -1.4531521
      %v1186 = vmul.f32 %v1183, %v1185
      %v1187 = vadd.f32 %v1186, 1.4214138
      %v1188 = vmul.f32 %v1183, %v1187
      %v1189 = vadd.f32 %v1188, -0.28449672
      %v1190 = vmul.f32 %v1183, %v1189
      %v1191 = vadd.f32 %v1190, 0.2548296
      %v1192 = vmul.f32 %v1183, %v1191
      %v1193 = vsub.f32 0.0, %v1179
      %v1194 = vmul.f32 %v1193, %v1179
      %v1195 = vmul.f32 %v1194, 1.442695
      %v1196 = vpow.pop %v1195
      %v1197 = vmul.f32 %v1192, %v1196
      %v1198 = vsub.f32 1.0, %v1197
      %vm1199 = vcmp.ge.f32.partialorder %v1178, 0.0
      %v1200 = vsub.f32 0.0, %v1198
      %v1201 = vsel %vm1199, %v1198, %v1200
      %v1202 = vadd.f32 %v1201, 1.0
      %v1203 = vmul.f32 %v1177, %v1202
      %v1204 = vpack.c.bf16 %v1203, %v1203
      %s1205 = scalar_lea.vmem %s170, 20
      %1206 = vst.msk [vmem:[%s1205] sm:$0xf] %vm350, %v1204
      %v1207 = vld [vmem:[%s1041] sm:$0xf]
      %v1208 = vld [vmem:[%s1041 + $0x4] sm:$0x1]
      %s1209 = scalar_lea.vmem %s165, 104
      %v1210 = vld [vmem:[%s1209] sm:$0xf]
      %v1211 = vld [vmem:[%s1209 + $0x4] sm:$0x1]
      %s1212 = scalar_lea.vmem %s165, 112
      %v1213 = vld [vmem:[%s1212] sm:$0xf]
      %v1214 = vld [vmem:[%s1212 + $0x4] sm:$0x1]
      %v1217 = vunpack.c.l.b16 %v1207
      %v1218 = vunpack.c.l.b16 %v1208
      %v1219 = vpack.c.b16 %v1218, %v1217
      %v1221 = vshrl.u32 %v1219, 16
      %v1223 = vshll.u32 %v1219, 16
      %v1225 = vrot.slane %v1223, 1
      %v1226 = vor.u32 %v1221, %v1225
      %1227 = vrot.lane.b32.xlu0 %v1226, 8
      %v1228 = vpop.permute.xlu0 %1227
      %v1230 = vunpack.c.l.b16 %v1210
      %v1231 = vpack.c.b16 %v1230, %v1230
      %1232 = vrot.lane.b32.xlu0 %v1231, 12
      %v1233 = vpop.permute.xlu0 %1232
      %v1235 = vunpack.c.l.b16 %v1211
      %v1236 = vpack.c.b16 %v1235, %v1230
      %v1238 = vshrl.u32 %v1236, 16
      %v1240 = vshll.u32 %v1236, 16
      %v1242 = vrot.slane %v1240, 1
      %v1243 = vor.u32 %v1238, %v1242
      %1244 = vrot.lane.b32.xlu0 %v1243, 20
      %v1245 = vpop.permute.xlu0 %1244
      %v1247 = vunpack.c.l.b16 %v1213
      %v1248 = vpack.c.b16 %v1247, %v1247
      %1249 = vrot.lane.b32.xlu0 %v1248, 24
      %v1250 = vpop.permute.xlu0 %1249
      %v1252 = vunpack.c.l.b16 %v1214
      %v1253 = vpack.c.b16 %v1252, %v1247
      %v1255 = vshrl.u32 %v1253, 16
      %v1257 = vshll.u32 %v1253, 16
      %v1259 = vrot.slane %v1257, 1
      %v1260 = vor.u32 %v1255, %v1259
      %1261 = vrot.lane.b32.xlu0 %v1260, 32
      %v1262 = vpop.permute.xlu0 %1261
      %v1265 = vsel %vm229, %v1207, %v1228
      %v1267 = vsel %vm232, %v1265, %v1233
      %v1268 = vsel %vm235, %v1267, %v1233
      %v1270 = vsel %vm237, %v1268, %v1245
      %v1272 = vsel %vm240, %v1270, %v1250
      %v1273 = vsel %vm243, %v1272, %v1250
      %v1275 = vsel %vm245, %v1273, %v1262
      %v1276 = vld [vmem:[%s1] sm:$0xf]
      %v1277 = vld [vmem:[%s1 + $0x4] sm:$0xf]
      %v1278 = vld [vmem:[%s1 + $0x8] sm:$0xf]
      %v1279 = vld [vmem:[%s1 + $0xc] sm:$0xf]
      %v1280 = vld [vmem:[%s1 + $0x10] sm:$0x3]
      %v1281 = vld [vmem:[%s2] sm:$0x1]
      %v1283 = vlaneseq
      %v1284 = vshrl.u32 %v1283, 7
      %v1285 = vsub.s32 0, %v1284
      %v1286 = vrot.slane %v1281, %v1285
      %v1293 = vunpack.c.l.b16 %v1276
      %v1294 = vunpack.c.l.b16 %v1277
      %v1295 = vunpack.c.l.b16 %v1278
      %v1296 = vunpack.c.l.b16 %v1279
      %v1297 = vunpack.c.l.b16 %v1280
      %v1298 = vpack.c.b16 %v1294, %v1293
      %v1299 = vpack.c.b16 %v1296, %v1295
      %v1300 = vpack.c.b16 %v1297, %v1297
      %v1303 = vsel %vm275, %v1275, 0
      %v1306 = vsel %vm278, %v1300, 0
      %1308 = vmatprep.subr.bf16.mxu0 0
      %1309 = vmatpush1.bf16.msra.mxu0 %v1298
      %1310 = vmatprep.subr.bf16.mxu0 0
      %1311 = vmatpush1.bf16.msra.mxu0 %v1299
      %1312 = vmatprep.subr.bf16.mxu0 0
      %1313 = vmatpush1.bf16.msra.mxu0 %v1306
      %1314 = vmatprep.subr.bf16.mxu0 0
      %1315 = vmatpush1.bf16.msra.mxu0 0
      %1316 = vmatprep.subr.bf16.mxu0 0
      %1317 = vmatpush1.bf16.msra.mxu0 0
      %1318 = vmatprep.subr.bf16.mxu0 0
      %1319 = vmatpush1.bf16.msra.mxu0 0
      %1320 = vmatprep.subr.bf16.mxu0 0
      %1321 = vmatpush1.bf16.msra.mxu0 0
      %1322 = vmatprep.subr.bf16.mxu0 0
      %1323 = vmatpush1.bf16.msra.mxu0 0
      %1324 = vmatprep.subr.bf16.mxu0 0
      %1325 = vmatpush1.bf16.msra.mxu0 0
      %1326 = vmatprep.subr.bf16.mxu0 0
      %1327 = vmatpush1.bf16.msra.mxu0 0
      %1328 = vmatprep.subr.bf16.mxu0 0
      %1329 = vmatpush1.bf16.msra.mxu0 0
      %1330 = vmatprep.subr.bf16.mxu0 0
      %1331 = vmatpush1.bf16.msra.mxu0 0
      %1332 = vmatprep.subr.bf16.mxu0 0
      %1333 = vmatpush1.bf16.msra.mxu0 0
      %1334 = vmatprep.subr.bf16.mxu0 0
      %1335 = vmatpush1.bf16.msra.mxu0 0
      %1336 = vmatprep.subr.bf16.mxu0 0
      %1337 = vmatpush1.bf16.msra.mxu0 0
      %1338 = vmatprep.subr.bf16.mxu0 0
      %1339 = vmatpush1.bf16.msra.mxu0 0
      %1340 = vmatprep.mubr.bf16.mxu0 0
      %1341 = vmatmul.mubr.bf16.gmra.mrb[0].mxu0 %v1303
      %v1342 = vpop.f32.mrb[0].mxu0
      %v1343 = vadd.f32 %v1286, %v1342
      %v1344 = vpop.f32.mrb[0].mxu0
      %v1345 = vpop.f32.mrb[0].mxu0
      %v1346 = vpop.f32.mrb[0].mxu0
      %1347 = vdwg.mxu0
      %v1348 = vmul.f32 %v1343, 0.5
      %v1349 = vmul.f32 %v1343, 0.70710677
      %v1350 = vand.u32 2147483647, %v1349
      %v1351 = vmul.f32 %v1350, 0.3275911
      %v1352 = vadd.f32 %v1351, 1.0
      %v1353 = vrcp.pop %v1352
      %v1354 = vmul.f32 1.0, %v1353
      %v1355 = vmul.f32 %v1354, 1.0614054
      %v1356 = vadd.f32 %v1355, -1.4531521
      %v1357 = vmul.f32 %v1354, %v1356
      %v1358 = vadd.f32 %v1357, 1.4214138
      %v1359 = vmul.f32 %v1354, %v1358
      %v1360 = vadd.f32 %v1359, -0.28449672
      %v1361 = vmul.f32 %v1354, %v1360
      %v1362 = vadd.f32 %v1361, 0.2548296
      %v1363 = vmul.f32 %v1354, %v1362
      %v1364 = vsub.f32 0.0, %v1350
      %v1365 = vmul.f32 %v1364, %v1350
      %v1366 = vmul.f32 %v1365, 1.442695
      %v1367 = vpow.pop %v1366
      %v1368 = vmul.f32 %v1363, %v1367
      %v1369 = vsub.f32 1.0, %v1368
      %vm1370 = vcmp.ge.f32.partialorder %v1349, 0.0
      %v1371 = vsub.f32 0.0, %v1369
      %v1372 = vsel %vm1370, %v1369, %v1371
      %v1373 = vadd.f32 %v1372, 1.0
      %v1374 = vmul.f32 %v1348, %v1373
      %v1375 = vpack.c.bf16 %v1374, %v1374
      %s1376 = scalar_lea.vmem %s170, 24
      %1377 = vst.msk [vmem:[%s1376] sm:$0xf] %vm350, %v1375
      %v1378 = vld [vmem:[%s1212] sm:$0xf]
      %v1379 = vld [vmem:[%s1212 + $0x4] sm:$0x1]
      %s1380 = scalar_lea.vmem %s165, 120
      %v1381 = vld [vmem:[%s1380] sm:$0xf]
      %v1382 = vld [vmem:[%s1380 + $0x4] sm:$0x1]
      %s1383 = scalar_lea.vmem %s165, 128
      %v1384 = vld [vmem:[%s1383] sm:$0xf]
      %v1385 = vld [vmem:[%s1383 + $0x4] sm:$0x1]
      %v1388 = vunpack.c.l.b16 %v1378
      %v1389 = vunpack.c.l.b16 %v1379
      %v1390 = vpack.c.b16 %v1389, %v1388
      %v1392 = vshrl.u32 %v1390, 16
      %v1394 = vshll.u32 %v1390, 16
      %v1396 = vrot.slane %v1394, 1
      %v1397 = vor.u32 %v1392, %v1396
      %1398 = vrot.lane.b32.xlu0 %v1397, 8
      %v1399 = vpop.permute.xlu0 %1398
      %v1401 = vunpack.c.l.b16 %v1381
      %v1402 = vpack.c.b16 %v1401, %v1401
      %1403 = vrot.lane.b32.xlu0 %v1402, 12
      %v1404 = vpop.permute.xlu0 %1403
      %v1406 = vunpack.c.l.b16 %v1382
      %v1407 = vpack.c.b16 %v1406, %v1401
      %v1409 = vshrl.u32 %v1407, 16
      %v1411 = vshll.u32 %v1407, 16
      %v1413 = vrot.slane %v1411, 1
      %v1414 = vor.u32 %v1409, %v1413
      %1415 = vrot.lane.b32.xlu0 %v1414, 20
      %v1416 = vpop.permute.xlu0 %1415
      %v1418 = vunpack.c.l.b16 %v1384
      %v1419 = vpack.c.b16 %v1418, %v1418
      %1420 = vrot.lane.b32.xlu0 %v1419, 24
      %v1421 = vpop.permute.xlu0 %1420
      %v1423 = vunpack.c.l.b16 %v1385
      %v1424 = vpack.c.b16 %v1423, %v1418
      %v1426 = vshrl.u32 %v1424, 16
      %v1428 = vshll.u32 %v1424, 16
      %v1430 = vrot.slane %v1428, 1
      %v1431 = vor.u32 %v1426, %v1430
      %1432 = vrot.lane.b32.xlu0 %v1431, 32
      %v1433 = vpop.permute.xlu0 %1432
      %v1436 = vsel %vm229, %v1378, %v1399
      %v1438 = vsel %vm232, %v1436, %v1404
      %v1439 = vsel %vm235, %v1438, %v1404
      %v1441 = vsel %vm237, %v1439, %v1416
      %v1443 = vsel %vm240, %v1441, %v1421
      %v1444 = vsel %vm243, %v1443, %v1421
      %v1446 = vsel %vm245, %v1444, %v1433
      %v1447 = vld [vmem:[%s1] sm:$0xf]
      %v1448 = vld [vmem:[%s1 + $0x4] sm:$0xf]
      %v1449 = vld [vmem:[%s1 + $0x8] sm:$0xf]
      %v1450 = vld [vmem:[%s1 + $0xc] sm:$0xf]
      %v1451 = vld [vmem:[%s1 + $0x10] sm:$0x3]
      %v1452 = vld [vmem:[%s2] sm:$0x1]
      %v1454 = vlaneseq
      %v1455 = vshrl.u32 %v1454, 7
      %v1456 = vsub.s32 0, %v1455
      %v1457 = vrot.slane %v1452, %v1456
      %v1464 = vunpack.c.l.b16 %v1447
      %v1465 = vunpack.c.l.b16 %v1448
      %v1466 = vunpack.c.l.b16 %v1449
      %v1467 = vunpack.c.l.b16 %v1450
      %v1468 = vunpack.c.l.b16 %v1451
      %v1469 = vpack.c.b16 %v1465, %v1464
      %v1470 = vpack.c.b16 %v1467, %v1466
      %v1471 = vpack.c.b16 %v1468, %v1468
      %v1474 = vsel %vm275, %v1446, 0
      %v1477 = vsel %vm278, %v1471, 0
      %1479 = vmatprep.subr.bf16.mxu0 0
      %1480 = vmatpush1.bf16.msra.mxu0 %v1469
      %1481 = vmatprep.subr.bf16.mxu0 0
      %1482 = vmatpush1.bf16.msra.mxu0 %v1470
      %1483 = vmatprep.subr.bf16.mxu0 0
      %1484 = vmatpush1.bf16.msra.mxu0 %v1477
      %1485 = vmatprep.subr.bf16.mxu0 0
      %1486 = vmatpush1.bf16.msra.mxu0 0
      %1487 = vmatprep.subr.bf16.mxu0 0
      %1488 = vmatpush1.bf16.msra.mxu0 0
      %1489 = vmatprep.subr.bf16.mxu0 0
      %1490 = vmatpush1.bf16.msra.mxu0 0
      %1491 = vmatprep.subr.bf16.mxu0 0
      %1492 = vmatpush1.bf16.msra.mxu0 0
      %1493 = vmatprep.subr.bf16.mxu0 0
      %1494 = vmatpush1.bf16.msra.mxu0 0
      %1495 = vmatprep.subr.bf16.mxu0 0
      %1496 = vmatpush1.bf16.msra.mxu0 0
      %1497 = vmatprep.subr.bf16.mxu0 0
      %1498 = vmatpush1.bf16.msra.mxu0 0
      %1499 = vmatprep.subr.bf16.mxu0 0
      %1500 = vmatpush1.bf16.msra.mxu0 0
      %1501 = vmatprep.subr.bf16.mxu0 0
      %1502 = vmatpush1.bf16.msra.mxu0 0
      %1503 = vmatprep.subr.bf16.mxu0 0
      %1504 = vmatpush1.bf16.msra.mxu0 0
      %1505 = vmatprep.subr.bf16.mxu0 0
      %1506 = vmatpush1.bf16.msra.mxu0 0
      %1507 = vmatprep.subr.bf16.mxu0 0
      %1508 = vmatpush1.bf16.msra.mxu0 0
      %1509 = vmatprep.subr.bf16.mxu0 0
      %1510 = vmatpush1.bf16.msra.mxu0 0
      %1511 = vmatprep.mubr.bf16.mxu0 0
      %1512 = vmatmul.mubr.bf16.gmra.mrb[0].mxu0 %v1474
      %v1513 = vpop.f32.mrb[0].mxu0
      %v1514 = vadd.f32 %v1457, %v1513
      %v1515 = vpop.f32.mrb[0].mxu0
      %v1516 = vpop.f32.mrb[0].mxu0
      %v1517 = vpop.f32.mrb[0].mxu0
      %1518 = vdwg.mxu0
      %v1519 = vmul.f32 %v1514, 0.5
      %v1520 = vmul.f32 %v1514, 0.70710677
      %v1521 = vand.u32 2147483647, %v1520
      %v1522 = vmul.f32 %v1521, 0.3275911
      %v1523 = vadd.f32 %v1522, 1.0
      %v1524 = vrcp.pop %v1523
      %v1525 = vmul.f32 1.0, %v1524
      %v1526 = vmul.f32 %v1525, 1.0614054
      %v1527 = vadd.f32 %v1526, -1.4531521
      %v1528 = vmul.f32 %v1525, %v1527
      %v1529 = vadd.f32 %v1528, 1.4214138
      %v1530 = vmul.f32 %v1525, %v1529
      %v1531 = vadd.f32 %v1530, -0.28449672
      %v1532 = vmul.f32 %v1525, %v1531
      %v1533 = vadd.f32 %v1532, 0.2548296
      %v1534 = vmul.f32 %v1525, %v1533
      %v1535 = vsub.f32 0.0, %v1521
      %v1536 = vmul.f32 %v1535, %v1521
      %v1537 = vmul.f32 %v1536, 1.442695
      %v1538 = vpow.pop %v1537
      %v1539 = vmul.f32 %v1534, %v1538
      %v1540 = vsub.f32 1.0, %v1539
      %vm1541 = vcmp.ge.f32.partialorder %v1520, 0.0
      %v1542 = vsub.f32 0.0, %v1540
      %v1543 = vsel %vm1541, %v1540, %v1542
      %v1544 = vadd.f32 %v1543, 1.0
      %v1545 = vmul.f32 %v1519, %v1544
      %v1546 = vpack.c.bf16 %v1545, %v1545
      %s1547 = scalar_lea.vmem %s170, 28
      %1548 = vst.msk [vmem:[%s1547] sm:$0xf] %vm350, %v1546
      %p1549 = scmp.lt.s32.totalorder %s14, 1
      %s1550 = scalar_select %p1549, %s14, 1
      %s1551 = smul.addr %s1550, 8
      %s1552 = smul.addr %s1551, 4
      %s1553 = scalar_lea.vmem %s3, %s1552
      // Predicated region
      $region33: #{stack_conv_patch_embed_forward.2} parent=31 // pred_check
        %p1554 = pneg %p100
      $region34: #{stack_conv_patch_embed_forward.2} parent=31 // pred_check_branch
        %1556 = sbr.rel (%p1554) target = $region36
      $region35: #{stack_conv_patch_embed_forward.2} parent=31 // pred_region
        _
      $region36: #{stack_conv_patch_embed_forward.2} parent=31 // pred_fallthru
        _
    $region32: #{stack_conv_patch_embed_forward.2} parent=5 // pred_fallthru
      _
    %p1557 = scmp.le.s32.totalorder 2, %s9
    // Predicated region
    $region37: #{stack_conv_patch_embed_forward.2} parent=5 // pred_check
      %p1558 = pneg %p1557
    $region38: #{stack_conv_patch_embed_forward.2} parent=5 // pred_check_branch
      %1560 = sbr.rel (%p1558) target = $region40
    $region39: #{stack_conv_patch_embed_forward.2} parent=5 // pred_region
      %s1561 = ssub.s32 %s9, 2
      // Predicated region
      $region41: #{stack_conv_patch_embed_forward.2} parent=39 // pred_check
        %p1562 = pneg %p106
      $region42: #{stack_conv_patch_embed_forward.2} parent=39 // pred_check_branch
        %1564 = sbr.rel (%p1562) target = $region44
      $region43: #{stack_conv_patch_embed_forward.2} parent=39 // pred_region
        %p1565 = scmp.lt.s32.totalorder %s15, 1
        %s1566 = scalar_select %p1565, %s15, 1
        %s1567 = smul.addr %s1566, 8
        %s1568 = smul.addr %s1567, 4
        %s1569 = scalar_lea.vmem %s3, %s1568
      $region44: #{stack_conv_patch_embed_forward.2} parent=39 // pred_fallthru
        _
    $region40: #{stack_conv_patch_embed_forward.2} parent=5 // pred_fallthru
      _
  $region6: #{stack_conv_patch_embed_forward.2} parent=0 // loop_footer
    %s13 = sadd.s32 1, %s9
  $region7: #{stack_conv_patch_embed_forward.2} parent=0 // loop_footer_branch
    %8 = sbr.rel target = $region3
  $region8: #{stack_conv_patch_embed_forward.2} parent=0 // loop_exit
    _

// kernel: stack_conv_patch_embed_forward.3
$region0: #{stack_conv_patch_embed_forward.3}
  #allocation0 [shape = 'u32[]', space=smem, size = 0x4, offset = 0x4, fixed_abs, tag = 'smem constant byte address 0x4 - core index']
  #allocation1 [shape = 'u32[144,128]{1,0:T(1,128)}', space=vmem, size = 0x12000, scoped, tag = 'internal scratch']
  %s0 = inlined_call_operand.vmem [shape: bf16[2,10,5,128], index: 0, kind: input, shape index: {}]
  %s1 = inlined_call_operand.vmem [shape: bf16[576,128], index: 1, kind: input, shape index: {}]
  %s2 = inlined_call_operand.vmem [shape: f32[1,128], index: 2, kind: input, shape index: {}]
  %s3 = inlined_call_operand.hbm [shape: f32[2,4,4,128], index: 3, kind: output, shape index: {}]
  %s4 = sld [smem:[#allocation0]]
  $region45: #{stack_conv_patch_embed_forward.3} parent=0
    _
  %s6 = ssub.s32 1, %s4
  %s7 = scalar_select 0, %s6, %s4
  $region1: #{stack_conv_patch_embed_forward.3} parent=0
    #allocation2 [shape = 'u8[16384]{0}', space=vmem, size = 0x4000, scoped, tag = 'output window, operand 0']
    #allocation3 [shape = 's32[2]{0}', space=sflag, size = 0x8, scoped, tag = 'scoped memory for stack_conv_patch_embed_forward.3']
    %8 = vsyncpa [#allocation3], 0
    %s9 = scalar_lea.sflag [#allocation3], 1
    %10 = vsyncpa %s9, 0
    loop: start=0, step=1, limit=4
    $region2: #{stack_conv_patch_embed_forward.3} parent=1 // loop_pre_header
      _
    $region3: #{stack_conv_patch_embed_forward.3} parent=1 // loop_header
      %s12 = sphi 0, %s16
      %p13 = scmp.ge.s32.totalorder %s12, 4
      %s22 = sphi 0, %s24
      %s25 = sphi 0, %s22
      %s26 = sphi 0, %s25
      %s42 = sphi 0, %s26
      %s46 = sphi 0, %s46
      %s48 = sphi 0, %s46
      %s49 = sphi 0, %s48
      %s63 = sphi 0, %s49
      %s67 = sphi 0, %s67
      %s69 = sphi 0, %s67
      %s70 = sphi 0, %s69
      %s84 = sphi 0, %s70
      %s90 = sphi 0, %s92
      %s93 = sphi 0, %s90
      %s94 = sphi 0, %s93
      %s110 = sphi 0, %s94
    $region4: #{stack_conv_patch_embed_forward.3} parent=1 // loop_header_branch
      %15 = sbr.rel (%p13) target = $region8
    $region5: #{stack_conv_patch_embed_forward.3} parent=1 // loop_body
      %s17 = ssub.s32 %s12, 1
      %s18 = ssub.s32 %s12, 2
      %s19 = sadd.s32 %s12, 1
      %s20 = ssub.s32 %s12, %s19
      %p21 = scmp.eq.s32.totalorder %s20, 0
      %s23 = sadd.s32 %s22, 1
      %s24 = scalar_select %p21, %s22, %s23
      %p27 = pneg %p21
      %p28 = scmp.eq.s32.totalorder %s12, 1
      %p29 = por %p27, %p28
      %p30 = scmp.ne.s32.totalorder %s22, %s25
      %p31 = scmp.eq.s32.totalorder %s12, 0
      %p32 = por %p30, %p31
      %p33 = scmp.ne.s32.totalorder %s22, %s25
      %p34 = scmp.eq.s32.totalorder %s17, 1
      %p35 = por %p33, %p34
      %p36 = scmp.ne.s32.totalorder %s25, %s26
      %p37 = scmp.eq.s32.totalorder %s17, 0
      %p38 = por %p36, %p37
      %p39 = scmp.ne.s32.totalorder %s25, %s26
      %p40 = scmp.eq.s32.totalorder %s18, 1
      %p41 = por %p39, %p40
      %p43 = scmp.ne.s32.totalorder %s26, %s42
      %p44 = scmp.eq.s32.totalorder %s18, 0
      %p45 = por %p43, %p44
      %s47 = sadd.s32 %s46, 1
      %p50 = scmp.eq.s32.totalorder %s12, 1
      %p51 = scmp.ne.s32.totalorder %s46, %s48
      %p52 = scmp.eq.s32.totalorder %s12, 0
      %p53 = por %p51, %p52
      %p54 = scmp.ne.s32.totalorder %s46, %s48
      %p55 = scmp.eq.s32.totalorder %s17, 1
      %p56 = por %p54, %p55
      %p57 = scmp.ne.s32.totalorder %s48, %s49
      %p58 = scmp.eq.s32.totalorder %s17, 0
      %p59 = por %p57, %p58
      %p60 = scmp.ne.s32.totalorder %s48, %s49
      %p61 = scmp.eq.s32.totalorder %s18, 1
      %p62 = por %p60, %p61
      %p64 = scmp.ne.s32.totalorder %s49, %s63
      %p65 = scmp.eq.s32.totalorder %s18, 0
      %p66 = por %p64, %p65
      %s68 = sadd.s32 %s67, 1
      %p71 = scmp.eq.s32.totalorder %s12, 1
      %p72 = scmp.ne.s32.totalorder %s67, %s69
      %p73 = scmp.eq.s32.totalorder %s12, 0
      %p74 = por %p72, %p73
      %p75 = scmp.ne.s32.totalorder %s67, %s69
      %p76 = scmp.eq.s32.totalorder %s17, 1
      %p77 = por %p75, %p76
      %p78 = scmp.ne.s32.totalorder %s69, %s70
      %p79 = scmp.eq.s32.totalorder %s17, 0
      %p80 = por %p78, %p79
      %p81 = scmp.ne.s32.totalorder %s69, %s70
      %p82 = scmp.eq.s32.totalorder %s18, 1
      %p83 = por %p81, %p82
      %p85 = scmp.ne.s32.totalorder %s70, %s84
      %p86 = scmp.eq.s32.totalorder %s18, 0
      %p87 = por %p85, %p86
      %s88 = ssub.s32 %s12, %s19
      %p89 = scmp.eq.s32.totalorder %s88, 0
      %s91 = sadd.s32 %s90, 1
      %s92 = scalar_select %p89, %s90, %s91
      %p95 = pneg %p89
      %p96 = scmp.eq.s32.totalorder %s12, 1
      %p97 = por %p95, %p96
      %p98 = scmp.ne.s32.totalorder %s90, %s93
      %p99 = scmp.eq.s32.totalorder %s12, 0
      %p100 = por %p98, %p99
      %p101 = scmp.ne.s32.totalorder %s90, %s93
      %p102 = scmp.eq.s32.totalorder %s17, 1
      %p103 = por %p101, %p102
      %p104 = scmp.ne.s32.totalorder %s93, %s94
      %p105 = scmp.eq.s32.totalorder %s17, 0
      %p106 = por %p104, %p105
      %p107 = scmp.ne.s32.totalorder %s93, %s94
      %p108 = scmp.eq.s32.totalorder %s18, 1
      %p109 = por %p107, %p108
      %p111 = scmp.ne.s32.totalorder %s94, %s110
      %p112 = scmp.eq.s32.totalorder %s18, 0
      %p113 = por %p111, %p112
      %p114 = scmp.le.s32.totalorder 1, %s12
      %p115 = scmp.lt.s32.totalorder %s12, 3
      %p116 = pnand %p114, %p115
      %p117 = pneg %p116
      // Predicated region
      $region9: #{stack_conv_patch_embed_forward.3} parent=5 // pred_check
        _
      $region10: #{stack_conv_patch_embed_forward.3} parent=5 // pred_check_branch
        %119 = sbr.rel (%p116) target = $region12
      $region11: #{stack_conv_patch_embed_forward.3} parent=5 // pred_region
        %s120 = ssub.s32 %s12, 1
        // Predicated region
        $region13: #{stack_conv_patch_embed_forward.3} parent=11 // pred_check
          %p121 = pneg %p59
        $region14: #{stack_conv_patch_embed_forward.3} parent=11 // pred_check_branch
          %123 = sbr.rel (%p121) target = $region16
        $region15: #{stack_conv_patch_embed_forward.3} parent=11 // pred_region
          _
        $region16: #{stack_conv_patch_embed_forward.3} parent=11 // pred_fallthru
          _
        // Predicated region
        $region17: #{stack_conv_patch_embed_forward.3} parent=11 // pred_check
          %p124 = pneg %p80
        $region18: #{stack_conv_patch_embed_forward.3} parent=11 // pred_check_branch
          %126 = sbr.rel (%p124) target = $region20
        $region19: #{stack_conv_patch_embed_forward.3} parent=11 // pred_region
          _
        $region20: #{stack_conv_patch_embed_forward.3} parent=11 // pred_fallthru
          _
      $region12: #{stack_conv_patch_embed_forward.3} parent=5 // pred_fallthru
        _
      %p127 = scmp.lt.s32.totalorder %s12, 2
      // Predicated region
      $region21: #{stack_conv_patch_embed_forward.3} parent=5 // pred_check
        %p128 = pneg %p127
      $region22: #{stack_conv_patch_embed_forward.3} parent=5 // pred_check_branch
        %130 = sbr.rel (%p128) target = $region24
      $region23: #{stack_conv_patch_embed_forward.3} parent=5 // pred_region
        // Predicated region
        $region25: #{stack_conv_patch_embed_forward.3} parent=23 // pred_check
          %p131 = pneg %p32
        $region26: #{stack_conv_patch_embed_forward.3} parent=23 // pred_check_branch
          %133 = sbr.rel (%p131) target = $region28
        $region27: #{stack_conv_patch_embed_forward.3} parent=23 // pred_region
          %p134 = scmp.lt.s32.totalorder %s12, 1
          %s135 = scalar_select %p134, %s12, 1
          %s136 = smul.addr %s135, 10
          %s137 = smul.addr %s136, 4
          %s138 = scalar_lea.vmem %s0, %s137
        $region28: #{stack_conv_patch_embed_forward.3} parent=23 // pred_fallthru
          _
      $region24: #{stack_conv_patch_embed_forward.3} parent=5 // pred_fallthru
        _
      %p139 = scmp.le.s32.totalorder 1, %s12
      %p140 = scmp.lt.s32.totalorder %s12, 3
      %p141 = pnand %p139, %p140
      %p142 = pneg %p141
      // Predicated region
      $region29: #{stack_conv_patch_embed_forward.3} parent=5 // pred_check
        _
      $region30: #{stack_conv_patch_embed_forward.3} parent=5 // pred_check_branch
        %144 = sbr.rel (%p141) target = $region32
      $region31: #{stack_conv_patch_embed_forward.3} parent=5 // pred_region
        %s145 = ssub.s32 %s12, 1
        %p146 = scmp.lt.s32.totalorder %s17, 1
        %s147 = scalar_select %p146, %s17, 1
        %s148 = smul.addr %s147, 10
        %s149 = smul.addr %s148, 4
        %s150 = scalar_lea.vmem %s0, %s149
        %p151 = pneg %p38
        %p152 = pneg %p35
        %p153 = pneg %p59
        %p154 = pneg %p56
        %p155 = pneg %p80
        %p156 = pneg %p77
        %p157 = pneg %p106
        %p158 = pneg %p103
        %s159 = sand.u32 %s93, 1
        %s160 = scalar_lea.sflag [#allocation3], %s159
        %s161 = sand.u32 %s93, 1
        %s162 = smul.addr %s161, 16
        %s163 = scalar_lea.vmem [#allocation2], %s162
        %p164 = scmp.lt.s32.totalorder %s17, 1
        %s165 = scalar_select %p164, %s17, 1
        %s166 = smul.addr %s165, 10
        %s167 = smul.addr %s166, 4
        %s168 = scalar_lea.vmem %s0, %s167
        %v170 = vld [vmem:[%s168] sm:$0x7]
        %s171 = scalar_lea.vmem %s168, 4
        %v172 = vld [vmem:[%s171] sm:$0x7]
        %s173 = scalar_lea.vmem %s168, 8
        %v174 = vld [vmem:[%s173] sm:$0x7]
        %v176 = vunpack.c.l.b16 %v170
        %v177 = vpack.c.b16 %v176, %v176
        %v179 = vshrl.u32 %v177, 16
        %v181 = vshll.u32 %v177, 16
        %v183 = vrot.slane %v181, 1
        %v184 = vor.u32 %v179, %v183
        %v186 = vunpack.c.l.b16 %v172
        %v187 = vpack.c.b16 %v186, %v186
        %188 = vrot.lane.b32.xlu0 %v187, 64
        %v189 = vpop.permute.xlu0 %188
        %v191 = vshrl.u32 %v187, 16
        %v193 = vshll.u32 %v187, 16
        %v195 = vrot.slane %v193, 1
        %v196 = vor.u32 %v191, %v195
        %197 = vrot.lane.b32.xlu0 %v196, 64
        %v198 = vpop.permute.xlu0 %197
        %v200 = vunpack.c.l.b16 %v174
        %v201 = vpack.c.b16 %v200, %v200
        %v203 = vshrl.u32 %v201, 16
        %v205 = vshll.u32 %v201, 16
        %v207 = vrot.slane %v205, 1
        %v208 = vor.u32 %v203, %v207
        %vm209 = vcmask 523264
        %v214 = vsel %vm209, %v184, %v189
        %v217 = vsel %vm209, %v189, %v198
        %v221 = vld [vmem:[%s1] sm:$0xf]
        %v222 = vld [vmem:[%s1 + $0x4] sm:$0xf]
        %v223 = vld [vmem:[%s1 + $0x8] sm:$0xf]
        %v224 = vld [vmem:[%s1 + $0xc] sm:$0xf]
        %v225 = vld [vmem:[%s1 + $0x10] sm:$0xf]
        %v226 = vld [vmem:[%s1 + $0x14] sm:$0xf]
        %v227 = vld [vmem:[%s1 + $0x18] sm:$0xf]
        %v228 = vld [vmem:[%s1 + $0x1c] sm:$0xf]
        %v229 = vld [vmem:[%s1 + $0x20] sm:$0xf]
        %v230 = vld [vmem:[%s1 + $0x24] sm:$0xf]
        %v231 = vld [vmem:[%s1 + $0x28] sm:$0xf]
        %v232 = vld [vmem:[%s1 + $0x2c] sm:$0xf]
        %v233 = vld [vmem:[%s1 + $0x30] sm:$0xf]
        %v234 = vld [vmem:[%s1 + $0x34] sm:$0xf]
        %v235 = vld [vmem:[%s1 + $0x38] sm:$0xf]
        %v236 = vld [vmem:[%s1 + $0x3c] sm:$0xf]
        %v237 = vld [vmem:[%s1 + $0x40] sm:$0xf]
        %v238 = vld [vmem:[%s1 + $0x44] sm:$0xf]
        %v239 = vld [vmem:[%s1 + $0x48] sm:$0xf]
        %v240 = vld [vmem:[%s1 + $0x4c] sm:$0xf]
        %v241 = vld [vmem:[%s1 + $0x50] sm:$0xf]
        %v242 = vld [vmem:[%s1 + $0x54] sm:$0xf]
        %v243 = vld [vmem:[%s1 + $0x58] sm:$0xf]
        %v244 = vld [vmem:[%s1 + $0x5c] sm:$0xf]
        %v245 = vld [vmem:[%s1 + $0x60] sm:$0xf]
        %v246 = vld [vmem:[%s1 + $0x64] sm:$0xf]
        %v247 = vld [vmem:[%s1 + $0x68] sm:$0xf]
        %v248 = vld [vmem:[%s1 + $0x6c] sm:$0xf]
        %v249 = vld [vmem:[%s1 + $0x70] sm:$0xf]
        %v250 = vld [vmem:[%s1 + $0x74] sm:$0xf]
        %v251 = vld [vmem:[%s1 + $0x78] sm:$0xf]
        %v252 = vld [vmem:[%s1 + $0x7c] sm:$0xf]
        %v253 = vld [vmem:[%s1 + $0x80] sm:$0xf]
        %v254 = vld [vmem:[%s1 + $0x84] sm:$0xf]
        %v255 = vld [vmem:[%s1 + $0x88] sm:$0xf]
        %v256 = vld [vmem:[%s1 + $0x8c] sm:$0xf]
        %v257 = vld [vmem:[%s1 + $0x90] sm:$0xf]
        %v258 = vld [vmem:[%s1 + $0x94] sm:$0xf]
        %v259 = vld [vmem:[%s1 + $0x98] sm:$0xf]
        %v260 = vld [vmem:[%s1 + $0x9c] sm:$0xf]
        %v261 = vld [vmem:[%s1 + $0xa0] sm:$0xf]
        %v262 = vld [vmem:[%s1 + $0xa4] sm:$0xf]
        %v263 = vld [vmem:[%s1 + $0xa8] sm:$0xf]
        %v264 = vld [vmem:[%s1 + $0xac] sm:$0xf]
        %v265 = vld [vmem:[%s1 + $0xb0] sm:$0xf]
        %v266 = vld [vmem:[%s1 + $0xb4] sm:$0xf]
        %v267 = vld [vmem:[%s1 + $0xb8] sm:$0xf]
        %v268 = vld [vmem:[%s1 + $0xbc] sm:$0xf]
        %v269 = vld [vmem:[%s1 + $0xc0] sm:$0xf]
        %v270 = vld [vmem:[%s1 + $0xc4] sm:$0xf]
        %v271 = vld [vmem:[%s1 + $0xc8] sm:$0xf]
        %v272 = vld [vmem:[%s1 + $0xcc] sm:$0xf]
        %v273 = vld [vmem:[%s1 + $0xd0] sm:$0xf]
        %v274 = vld [vmem:[%s1 + $0xd4] sm:$0xf]
        %v275 = vld [vmem:[%s1 + $0xd8] sm:$0xf]
        %v276 = vld [vmem:[%s1 + $0xdc] sm:$0xf]
        %v277 = vld [vmem:[%s1 + $0xe0] sm:$0xf]
        %v278 = vld [vmem:[%s1 + $0xe4] sm:$0xf]
        %v279 = vld [vmem:[%s1 + $0xe8] sm:$0xf]
        %v280 = vld [vmem:[%s1 + $0xec] sm:$0xf]
        %v281 = vld [vmem:[%s1 + $0xf0] sm:$0xf]
        %v282 = vld [vmem:[%s1 + $0xf4] sm:$0xf]
        %v283 = vld [vmem:[%s1 + $0xf8] sm:$0xf]
        %v284 = vld [vmem:[%s1 + $0xfc] sm:$0xf]
        %v285 = vld [vmem:[%s1 + $0x100] sm:$0xf]
        %v286 = vld [vmem:[%s1 + $0x104] sm:$0xf]
        %v287 = vld [vmem:[%s1 + $0x108] sm:$0xf]
        %v288 = vld [vmem:[%s1 + $0x10c] sm:$0xf]
        %v289 = vld [vmem:[%s1 + $0x110] sm:$0xf]
        %v290 = vld [vmem:[%s1 + $0x114] sm:$0xf]
        %v291 = vld [vmem:[%s1 + $0x118] sm:$0xf]
        %v292 = vld [vmem:[%s1 + $0x11c] sm:$0xf]
        %v293 = vld [vmem:[%s2] sm:$0x1]
        %v295 = vlaneseq
        %v296 = vshrl.u32 %v295, 7
        %v297 = vsub.s32 0, %v296
        %v298 = vrot.slane %v293, %v297
        %v372 = vunpack.c.l.b16 %v221
        %v373 = vunpack.c.l.b16 %v222
        %v374 = vunpack.c.l.b16 %v223
        %v375 = vunpack.c.l.b16 %v224
        %v376 = vunpack.c.l.b16 %v225
        %v377 = vunpack.c.l.b16 %v226
        %v378 = vunpack.c.l.b16 %v227
        %v379 = vunpack.c.l.b16 %v228
        %v380 = vunpack.c.l.b16 %v229
        %v381 = vunpack.c.l.b16 %v230
        %v382 = vunpack.c.l.b16 %v231
        %v383 = vunpack.c.l.b16 %v232
        %v384 = vunpack.c.l.b16 %v233
        %v385 = vunpack.c.l.b16 %v234
        %v386 = vunpack.c.l.b16 %v235
        %v387 = vunpack.c.l.b16 %v236
        %v388 = vunpack.c.l.b16 %v237
        %v389 = vunpack.c.l.b16 %v238
        %v390 = vunpack.c.l.b16 %v239
        %v391 = vunpack.c.l.b16 %v240
        %v392 = vunpack.c.l.b16 %v241
        %v393 = vunpack.c.l.b16 %v242
        %v394 = vunpack.c.l.b16 %v243
        %v395 = vunpack.c.l.b16 %v244
        %v396 = vunpack.c.l.b16 %v245
        %v397 = vunpack.c.l.b16 %v246
        %v398 = vunpack.c.l.b16 %v247
        %v399 = vunpack.c.l.b16 %v248
        %v400 = vunpack.c.l.b16 %v249
        %v401 = vunpack.c.l.b16 %v250
        %v402 = vunpack.c.l.b16 %v251
        %v403 = vunpack.c.l.b16 %v252
        %v404 = vunpack.c.l.b16 %v253
        %v405 = vunpack.c.l.b16 %v254
        %v406 = vunpack.c.l.b16 %v255
        %v407 = vunpack.c.l.b16 %v256
        %v408 = vunpack.c.l.b16 %v257
        %v409 = vunpack.c.l.b16 %v258
        %v410 = vunpack.c.l.b16 %v259
        %v411 = vunpack.c.l.b16 %v260
        %v412 = vunpack.c.l.b16 %v261
        %v413 = vunpack.c.l.b16 %v262
        %v414 = vunpack.c.l.b16 %v263
        %v415 = vunpack.c.l.b16 %v264
        %v416 = vunpack.c.l.b16 %v265
        %v417 = vunpack.c.l.b16 %v266
        %v418 = vunpack.c.l.b16 %v267
        %v419 = vunpack.c.l.b16 %v268
        %v420 = vunpack.c.l.b16 %v269
        %v421 = vunpack.c.l.b16 %v270
        %v422 = vunpack.c.l.b16 %v271
        %v423 = vunpack.c.l.b16 %v272
        %v424 = vunpack.c.l.b16 %v273
        %v425 = vunpack.c.l.b16 %v274
        %v426 = vunpack.c.l.b16 %v275
        %v427 = vunpack.c.l.b16 %v276
        %v428 = vunpack.c.l.b16 %v277
        %v429 = vunpack.c.l.b16 %v278
        %v430 = vunpack.c.l.b16 %v279
        %v431 = vunpack.c.l.b16 %v280
        %v432 = vunpack.c.l.b16 %v281
        %v433 = vunpack.c.l.b16 %v282
        %v434 = vunpack.c.l.b16 %v283
        %v435 = vunpack.c.l.b16 %v284
        %v436 = vunpack.c.l.b16 %v285
        %v437 = vunpack.c.l.b16 %v286
        %v438 = vunpack.c.l.b16 %v287
        %v439 = vunpack.c.l.b16 %v288
        %v440 = vunpack.c.l.b16 %v289
        %v441 = vunpack.c.l.b16 %v290
        %v442 = vunpack.c.l.b16 %v291
        %v443 = vunpack.c.l.b16 %v292
        %v444 = vpack.c.b16 %v373, %v372
        %v445 = vpack.c.b16 %v375, %v374
        %v446 = vpack.c.b16 %v377, %v376
        %v447 = vpack.c.b16 %v379, %v378
        %v448 = vpack.c.b16 %v381, %v380
        %v449 = vpack.c.b16 %v383, %v382
        %v450 = vpack.c.b16 %v385, %v384
        %v451 = vpack.c.b16 %v387, %v386
        %v452 = vpack.c.b16 %v389, %v388
        %v453 = vpack.c.b16 %v391, %v390
        %v454 = vpack.c.b16 %v393, %v392
        %v455 = vpack.c.b16 %v395, %v394
        %v456 = vpack.c.b16 %v397, %v396
        %v457 = vpack.c.b16 %v399, %v398
        %v458 = vpack.c.b16 %v401, %v400
        %v459 = vpack.c.b16 %v403, %v402
        %v460 = vpack.c.b16 %v405, %v404
        %v461 = vpack.c.b16 %v407, %v406
        %v462 = vpack.c.b16 %v409, %v408
        %v463 = vpack.c.b16 %v411, %v410
        %v464 = vpack.c.b16 %v413, %v412
        %v465 = vpack.c.b16 %v415, %v414
        %v466 = vpack.c.b16 %v417, %v416
        %v467 = vpack.c.b16 %v419, %v418
        %v468 = vpack.c.b16 %v421, %v420
        %v469 = vpack.c.b16 %v423, %v422
        %v470 = vpack.c.b16 %v425, %v424
        %v471 = vpack.c.b16 %v427, %v426
        %v472 = vpack.c.b16 %v429, %v428
        %v473 = vpack.c.b16 %v431, %v430
        %v474 = vpack.c.b16 %v433, %v432
        %v475 = vpack.c.b16 %v435, %v434
        %v476 = vpack.c.b16 %v437, %v436
        %v477 = vpack.c.b16 %v439, %v438
        %v478 = vpack.c.b16 %v441, %v440
        %v479 = vpack.c.b16 %v443, %v442
        %v517 = vsel %vm209, %v208, 0
        %519 = vmatprep.subr.bf16.mxu0 0
        %520 = vmatpush1.bf16.msra.mxu0 %v444
        %521 = vmatprep.subr.bf16.mxu0 0
        %522 = vmatpush1.bf16.msra.mxu0 %v445
        %523 = vmatprep.subr.bf16.mxu0 0
        %524 = vmatpush1.bf16.msra.mxu0 %v446
        %525 = vmatprep.subr.bf16.mxu0 0
        %526 = vmatpush1.bf16.msra.mxu0 %v447
        %527 = vmatprep.subr.bf16.mxu0 0
        %528 = vmatpush1.bf16.msra.mxu0 %v448
        %529 = vmatprep.subr.bf16.mxu0 0
        %530 = vmatpush1.bf16.msra.mxu0 %v449
        %531 = vmatprep.subr.bf16.mxu0 0
        %532 = vmatpush1.bf16.msra.mxu0 %v450
        %533 = vmatprep.subr.bf16.mxu0 0
        %534 = vmatpush1.bf16.msra.mxu0 %v451
        %535 = vmatprep.subr.bf16.mxu0 0
        %536 = vmatpush1.bf16.msra.mxu0 %v452
        %537 = vmatprep.subr.bf16.mxu0 0
        %538 = vmatpush1.bf16.msra.mxu0 %v453
        %539 = vmatprep.subr.bf16.mxu0 0
        %540 = vmatpush1.bf16.msra.mxu0 %v454
        %541 = vmatprep.subr.bf16.mxu0 0
        %542 = vmatpush1.bf16.msra.mxu0 %v455
        %543 = vmatprep.subr.bf16.mxu0 0
        %544 = vmatpush1.bf16.msra.mxu0 %v456
        %545 = vmatprep.subr.bf16.mxu0 0
        %546 = vmatpush1.bf16.msra.mxu0 %v457
        %547 = vmatprep.subr.bf16.mxu0 0
        %548 = vmatpush1.bf16.msra.mxu0 %v458
        %549 = vmatprep.subr.bf16.mxu0 0
        %550 = vmatpush1.bf16.msra.mxu0 %v459
        %551 = vmatprep.mubr.bf16.mxu0 %v214
        %552 = vmatmul.mubr.bf16.gmra.mrb[0].mxu0 %v170
        %v553 = vpop.f32.mrb[0].mxu0
        %v554 = vadd.f32 %v298, %v553
        %v555 = vpop.f32.mrb[0].mxu0
        %v556 = vpop.f32.mrb[0].mxu0
        %v557 = vpop.f32.mrb[0].mxu0
        %558 = vdwg.mxu0
        %559 = vmatprep.subr.bf16.mxu0 0
        %560 = vmatpush1.bf16.msra.mxu0 %v460
        %561 = vmatprep.subr.bf16.mxu0 0
        %562 = vmatpush1.bf16.msra.mxu0 %v461
        %563 = vmatprep.subr.bf16.mxu0 0
        %564 = vmatpush1.bf16.msra.mxu0 %v462
        %565 = vmatprep.subr.bf16.mxu0 0
        %566 = vmatpush1.bf16.msra.mxu0 %v463
        %567 = vmatprep.subr.bf16.mxu0 0
        %568 = vmatpush1.bf16.msra.mxu0 %v464
        %569 = vmatprep.subr.bf16.mxu0 0
        %570 = vmatpush1.bf16.msra.mxu0 %v465
        %571 = vmatprep.subr.bf16.mxu0 0
        %572 = vmatpush1.bf16.msra.mxu0 %v466
        %573 = vmatprep.subr.bf16.mxu0 0
        %574 = vmatpush1.bf16.msra.mxu0 %v467
        %575 = vmatprep.subr.bf16.mxu0 0
        %576 = vmatpush1.bf16.msra.mxu0 %v468
        %577 = vmatprep.subr.bf16.mxu0 0
        %578 = vmatpush1.bf16.msra.mxu0 %v469
        %579 = vmatprep.subr.bf16.mxu0 0
        %580 = vmatpush1.bf16.msra.mxu0 %v470
        %581 = vmatprep.subr.bf16.mxu0 0
        %582 = vmatpush1.bf16.msra.mxu0 %v471
        %583 = vmatprep.subr.bf16.mxu0 0
        %584 = vmatpush1.bf16.msra.mxu0 %v472
        %585 = vmatprep.subr.bf16.mxu0 0
        %586 = vmatpush1.bf16.msra.mxu0 %v473
        %587 = vmatprep.subr.bf16.mxu0 0
        %588 = vmatpush1.bf16.msra.mxu0 %v474
        %589 = vmatprep.subr.bf16.mxu0 0
        %590 = vmatpush1.bf16.msra.mxu0 %v475
        %591 = vmatprep.mubr.bf16.mxu0 %v174
        %592 = vmatmul.mubr.bf16.gmra.mrb[0].mxu0 %v217
        %v593 = vpop.f32.mrb[0].mxu0
        %v594 = vadd.f32 %v554, %v593
        %v595 = vpop.f32.mrb[0].mxu0
        %v596 = vpop.f32.mrb[0].mxu0
        %v597 = vpop.f32.mrb[0].mxu0
        %598 = vdwg.mxu0
        %599 = vmatprep.subr.bf16.mxu0 0
        %600 = vmatpush1.bf16.msra.mxu0 %v476
        %601 = vmatprep.subr.bf16.mxu0 0
        %602 = vmatpush1.bf16.msra.mxu0 %v477
        %603 = vmatprep.subr.bf16.mxu0 0
        %604 = vmatpush1.bf16.msra.mxu0 %v478
        %605 = vmatprep.subr.bf16.mxu0 0
        %606 = vmatpush1.bf16.msra.mxu0 %v479
        %607 = vmatprep.subr.bf16.mxu0 0
        %608 = vmatpush1.bf16.msra.mxu0 0
        %609 = vmatprep.subr.bf16.mxu0 0
        %610 = vmatpush1.bf16.msra.mxu0 0
        %611 = vmatprep.subr.bf16.mxu0 0
        %612 = vmatpush1.bf16.msra.mxu0 0
        %613 = vmatprep.subr.bf16.mxu0 0
        %614 = vmatpush1.bf16.msra.mxu0 0
        %615 = vmatprep.subr.bf16.mxu0 0
        %616 = vmatpush1.bf16.msra.mxu0 0
        %617 = vmatprep.subr.bf16.mxu0 0
        %618 = vmatpush1.bf16.msra.mxu0 0
        %619 = vmatprep.subr.bf16.mxu0 0
        %620 = vmatpush1.bf16.msra.mxu0 0
        %621 = vmatprep.subr.bf16.mxu0 0
        %622 = vmatpush1.bf16.msra.mxu0 0
        %623 = vmatprep.subr.bf16.mxu0 0
        %624 = vmatpush1.bf16.msra.mxu0 0
        %625 = vmatprep.subr.bf16.mxu0 0
        %626 = vmatpush1.bf16.msra.mxu0 0
        %627 = vmatprep.subr.bf16.mxu0 0
        %628 = vmatpush1.bf16.msra.mxu0 0
        %629 = vmatprep.subr.bf16.mxu0 0
        %630 = vmatpush1.bf16.msra.mxu0 0
        %631 = vmatprep.mubr.bf16.mxu0 0
        %632 = vmatmul.mubr.bf16.gmra.mrb[0].mxu0 %v517
        %v633 = vpop.f32.mrb[0].mxu0
        %v634 = vadd.f32 %v594, %v633
        %v635 = vpop.f32.mrb[0].mxu0
        %v636 = vpop.f32.mrb[0].mxu0
        %v637 = vpop.f32.mrb[0].mxu0
        %638 = vdwg.mxu0
        %639 = vst [vmem:[%s163] sm:$0xf] %v634
        %v640 = vld [vmem:[%s173] sm:$0x7]
        %s641 = scalar_lea.vmem %s168, 12
        %v642 = vld [vmem:[%s641] sm:$0x7]
        %s643 = scalar_lea.vmem %s168, 16
        %v644 = vld [vmem:[%s643] sm:$0x7]
        %v646 = vunpack.c.l.b16 %v640
        %v647 = vpack.c.b16 %v646, %v646
        %v649 = vshrl.u32 %v647, 16
        %v651 = vshll.u32 %v647, 16
        %v653 = vrot.slane %v651, 1
        %v654 = vor.u32 %v649, %v653
        %v656 = vunpack.c.l.b16 %v642
        %v657 = vpack.c.b16 %v656, %v656
        %658 = vrot.lane.b32.xlu0 %v657, 64
        %v659 = vpop.permute.xlu0 %658
        %v661 = vshrl.u32 %v657, 16
        %v663 = vshll.u32 %v657, 16
        %v665 = vrot.slane %v663, 1
        %v666 = vor.u32 %v661, %v665
        %667 = vrot.lane.b32.xlu0 %v666, 64
        %v668 = vpop.permute.xlu0 %667
        %v670 = vunpack.c.l.b16 %v644
        %v671 = vpack.c.b16 %v670, %v670
        %v673 = vshrl.u32 %v671, 16
        %v675 = vshll.u32 %v671, 16
        %v677 = vrot.slane %v675, 1
        %v678 = vor.u32 %v673, %v677
        %v683 = vsel %vm209, %v654, %v659
        %v686 = vsel %vm209, %v659, %v668
        %v690 = vld [vmem:[%s1] sm:$0xf]
        %v691 = vld [vmem:[%s1 + $0x4] sm:$0xf]
        %v692 = vld [vmem:[%s1 + $0x8] sm:$0xf]
        %v693 = vld [vmem:[%s1 + $0xc] sm:$0xf]
        %v694 = vld [vmem:[%s1 + $0x10] sm:$0xf]
        %v695 = vld [vmem:[%s1 + $0x14] sm:$0xf]
        %v696 = vld [vmem:[%s1 + $0x18] sm:$0xf]
        %v697 = vld [vmem:[%s1 + $0x1c] sm:$0xf]
        %v698 = vld [vmem:[%s1 + $0x20] sm:$0xf]
        %v699 = vld [vmem:[%s1 + $0x24] sm:$0xf]
        %v700 = vld [vmem:[%s1 + $0x28] sm:$0xf]
        %v701 = vld [vmem:[%s1 + $0x2c] sm:$0xf]
        %v702 = vld [vmem:[%s1 + $0x30] sm:$0xf]
        %v703 = vld [vmem:[%s1 + $0x34] sm:$0xf]
        %v704 = vld [vmem:[%s1 + $0x38] sm:$0xf]
        %v705 = vld [vmem:[%s1 + $0x3c] sm:$0xf]
        %v706 = vld [vmem:[%s1 + $0x40] sm:$0xf]
        %v707 = vld [vmem:[%s1 + $0x44] sm:$0xf]
        %v708 = vld [vmem:[%s1 + $0x48] sm:$0xf]
        %v709 = vld [vmem:[%s1 + $0x4c] sm:$0xf]
        %v710 = vld [vmem:[%s1 + $0x50] sm:$0xf]
        %v711 = vld [vmem:[%s1 + $0x54] sm:$0xf]
        %v712 = vld [vmem:[%s1 + $0x58] sm:$0xf]
        %v713 = vld [vmem:[%s1 + $0x5c] sm:$0xf]
        %v714 = vld [vmem:[%s1 + $0x60] sm:$0xf]
        %v715 = vld [vmem:[%s1 + $0x64] sm:$0xf]
        %v716 = vld [vmem:[%s1 + $0x68] sm:$0xf]
        %v717 = vld [vmem:[%s1 + $0x6c] sm:$0xf]
        %v718 = vld [vmem:[%s1 + $0x70] sm:$0xf]
        %v719 = vld [vmem:[%s1 + $0x74] sm:$0xf]
        %v720 = vld [vmem:[%s1 + $0x78] sm:$0xf]
        %v721 = vld [vmem:[%s1 + $0x7c] sm:$0xf]
        %v722 = vld [vmem:[%s1 + $0x80] sm:$0xf]
        %v723 = vld [vmem:[%s1 + $0x84] sm:$0xf]
        %v724 = vld [vmem:[%s1 + $0x88] sm:$0xf]
        %v725 = vld [vmem:[%s1 + $0x8c] sm:$0xf]
        %v726 = vld [vmem:[%s1 + $0x90] sm:$0xf]
        %v727 = vld [vmem:[%s1 + $0x94] sm:$0xf]
        %v728 = vld [vmem:[%s1 + $0x98] sm:$0xf]
        %v729 = vld [vmem:[%s1 + $0x9c] sm:$0xf]
        %v730 = vld [vmem:[%s1 + $0xa0] sm:$0xf]
        %v731 = vld [vmem:[%s1 + $0xa4] sm:$0xf]
        %v732 = vld [vmem:[%s1 + $0xa8] sm:$0xf]
        %v733 = vld [vmem:[%s1 + $0xac] sm:$0xf]
        %v734 = vld [vmem:[%s1 + $0xb0] sm:$0xf]
        %v735 = vld [vmem:[%s1 + $0xb4] sm:$0xf]
        %v736 = vld [vmem:[%s1 + $0xb8] sm:$0xf]
        %v737 = vld [vmem:[%s1 + $0xbc] sm:$0xf]
        %v738 = vld [vmem:[%s1 + $0xc0] sm:$0xf]
        %v739 = vld [vmem:[%s1 + $0xc4] sm:$0xf]
        %v740 = vld [vmem:[%s1 + $0xc8] sm:$0xf]
        %v741 = vld [vmem:[%s1 + $0xcc] sm:$0xf]
        %v742 = vld [vmem:[%s1 + $0xd0] sm:$0xf]
        %v743 = vld [vmem:[%s1 + $0xd4] sm:$0xf]
        %v744 = vld [vmem:[%s1 + $0xd8] sm:$0xf]
        %v745 = vld [vmem:[%s1 + $0xdc] sm:$0xf]
        %v746 = vld [vmem:[%s1 + $0xe0] sm:$0xf]
        %v747 = vld [vmem:[%s1 + $0xe4] sm:$0xf]
        %v748 = vld [vmem:[%s1 + $0xe8] sm:$0xf]
        %v749 = vld [vmem:[%s1 + $0xec] sm:$0xf]
        %v750 = vld [vmem:[%s1 + $0xf0] sm:$0xf]
        %v751 = vld [vmem:[%s1 + $0xf4] sm:$0xf]
        %v752 = vld [vmem:[%s1 + $0xf8] sm:$0xf]
        %v753 = vld [vmem:[%s1 + $0xfc] sm:$0xf]
        %v754 = vld [vmem:[%s1 + $0x100] sm:$0xf]
        %v755 = vld [vmem:[%s1 + $0x104] sm:$0xf]
        %v756 = vld [vmem:[%s1 + $0x108] sm:$0xf]
        %v757 = vld [vmem:[%s1 + $0x10c] sm:$0xf]
        %v758 = vld [vmem:[%s1 + $0x110] sm:$0xf]
        %v759 = vld [vmem:[%s1 + $0x114] sm:$0xf]
        %v760 = vld [vmem:[%s1 + $0x118] sm:$0xf]
        %v761 = vld [vmem:[%s1 + $0x11c] sm:$0xf]
        %v762 = vld [vmem:[%s2] sm:$0x1]
        %v764 = vlaneseq
        %v765 = vshrl.u32 %v764, 7
        %v766 = vsub.s32 0, %v765
        %v767 = vrot.slane %v762, %v766
        %v841 = vunpack.c.l.b16 %v690
        %v842 = vunpack.c.l.b16 %v691
        %v843 = vunpack.c.l.b16 %v692
        %v844 = vunpack.c.l.b16 %v693
        %v845 = vunpack.c.l.b16 %v694
        %v846 = vunpack.c.l.b16 %v695
        %v847 = vunpack.c.l.b16 %v696
        %v848 = vunpack.c.l.b16 %v697
        %v849 = vunpack.c.l.b16 %v698
        %v850 = vunpack.c.l.b16 %v699
        %v851 = vunpack.c.l.b16 %v700
        %v852 = vunpack.c.l.b16 %v701
        %v853 = vunpack.c.l.b16 %v702
        %v854 = vunpack.c.l.b16 %v703
        %v855 = vunpack.c.l.b16 %v704
        %v856 = vunpack.c.l.b16 %v705
        %v857 = vunpack.c.l.b16 %v706
        %v858 = vunpack.c.l.b16 %v707
        %v859 = vunpack.c.l.b16 %v708
        %v860 = vunpack.c.l.b16 %v709
        %v861 = vunpack.c.l.b16 %v710
        %v862 = vunpack.c.l.b16 %v711
        %v863 = vunpack.c.l.b16 %v712
        %v864 = vunpack.c.l.b16 %v713
        %v865 = vunpack.c.l.b16 %v714
        %v866 = vunpack.c.l.b16 %v715
        %v867 = vunpack.c.l.b16 %v716
        %v868 = vunpack.c.l.b16 %v717
        %v869 = vunpack.c.l.b16 %v718
        %v870 = vunpack.c.l.b16 %v719
        %v871 = vunpack.c.l.b16 %v720
        %v872 = vunpack.c.l.b16 %v721
        %v873 = vunpack.c.l.b16 %v722
        %v874 = vunpack.c.l.b16 %v723
        %v875 = vunpack.c.l.b16 %v724
        %v876 = vunpack.c.l.b16 %v725
        %v877 = vunpack.c.l.b16 %v726
        %v878 = vunpack.c.l.b16 %v727
        %v879 = vunpack.c.l.b16 %v728
        %v880 = vunpack.c.l.b16 %v729
        %v881 = vunpack.c.l.b16 %v730
        %v882 = vunpack.c.l.b16 %v731
        %v883 = vunpack.c.l.b16 %v732
        %v884 = vunpack.c.l.b16 %v733
        %v885 = vunpack.c.l.b16 %v734
        %v886 = vunpack.c.l.b16 %v735
        %v887 = vunpack.c.l.b16 %v736
        %v888 = vunpack.c.l.b16 %v737
        %v889 = vunpack.c.l.b16 %v738
        %v890 = vunpack.c.l.b16 %v739
        %v891 = vunpack.c.l.b16 %v740
        %v892 = vunpack.c.l.b16 %v741
        %v893 = vunpack.c.l.b16 %v742
        %v894 = vunpack.c.l.b16 %v743
        %v895 = vunpack.c.l.b16 %v744
        %v896 = vunpack.c.l.b16 %v745
        %v897 = vunpack.c.l.b16 %v746
        %v898 = vunpack.c.l.b16 %v747
        %v899 = vunpack.c.l.b16 %v748
        %v900 = vunpack.c.l.b16 %v749
        %v901 = vunpack.c.l.b16 %v750
        %v902 = vunpack.c.l.b16 %v751
        %v903 = vunpack.c.l.b16 %v752
        %v904 = vunpack.c.l.b16 %v753
        %v905 = vunpack.c.l.b16 %v754
        %v906 = vunpack.c.l.b16 %v755
        %v907 = vunpack.c.l.b16 %v756
        %v908 = vunpack.c.l.b16 %v757
        %v909 = vunpack.c.l.b16 %v758
        %v910 = vunpack.c.l.b16 %v759
        %v911 = vunpack.c.l.b16 %v760
        %v912 = vunpack.c.l.b16 %v761
        %v913 = vpack.c.b16 %v842, %v841
        %v914 = vpack.c.b16 %v844, %v843
        %v915 = vpack.c.b16 %v846, %v845
        %v916 = vpack.c.b16 %v848, %v847
        %v917 = vpack.c.b16 %v850, %v849
        %v918 = vpack.c.b16 %v852, %v851
        %v919 = vpack.c.b16 %v854, %v853
        %v920 = vpack.c.b16 %v856, %v855
        %v921 = vpack.c.b16 %v858, %v857
        %v922 = vpack.c.b16 %v860, %v859
        %v923 = vpack.c.b16 %v862, %v861
        %v924 = vpack.c.b16 %v864, %v863
        %v925 = vpack.c.b16 %v866, %v865
        %v926 = vpack.c.b16 %v868, %v867
        %v927 = vpack.c.b16 %v870, %v869
        %v928 = vpack.c.b16 %v872, %v871
        %v929 = vpack.c.b16 %v874, %v873
        %v930 = vpack.c.b16 %v876, %v875
        %v931 = vpack.c.b16 %v878, %v877
        %v932 = vpack.c.b16 %v880, %v879
        %v933 = vpack.c.b16 %v882, %v881
        %v934 = vpack.c.b16 %v884, %v883
        %v935 = vpack.c.b16 %v886, %v885
        %v936 = vpack.c.b16 %v888, %v887
        %v937 = vpack.c.b16 %v890, %v889
        %v938 = vpack.c.b16 %v892, %v891
        %v939 = vpack.c.b16 %v894, %v893
        %v940 = vpack.c.b16 %v896, %v895
        %v941 = vpack.c.b16 %v898, %v897
        %v942 = vpack.c.b16 %v900, %v899
        %v943 = vpack.c.b16 %v902, %v901
        %v944 = vpack.c.b16 %v904, %v903
        %v945 = vpack.c.b16 %v906, %v905
        %v946 = vpack.c.b16 %v908, %v907
        %v947 = vpack.c.b16 %v910, %v909
        %v948 = vpack.c.b16 %v912, %v911
        %v986 = vsel %vm209, %v678, 0
        %988 = vmatprep.subr.bf16.mxu0 0
        %989 = vmatpush1.bf16.msra.mxu0 %v913
        %990 = vmatprep.subr.bf16.mxu0 0
        %991 = vmatpush1.bf16.msra.mxu0 %v914
        %992 = vmatprep.subr.bf16.mxu0 0
        %993 = vmatpush1.bf16.msra.mxu0 %v915
        %994 = vmatprep.subr.bf16.mxu0 0
        %995 = vmatpush1.bf16.msra.mxu0 %v916
        %996 = vmatprep.subr.bf16.mxu0 0
        %997 = vmatpush1.bf16.msra.mxu0 %v917
        %998 = vmatprep.subr.bf16.mxu0 0
        %999 = vmatpush1.bf16.msra.mxu0 %v918
        %1000 = vmatprep.subr.bf16.mxu0 0
        %1001 = vmatpush1.bf16.msra.mxu0 %v919
        %1002 = vmatprep.subr.bf16.mxu0 0
        %1003 = vmatpush1.bf16.msra.mxu0 %v920
        %1004 = vmatprep.subr.bf16.mxu0 0
        %1005 = vmatpush1.bf16.msra.mxu0 %v921
        %1006 = vmatprep.subr.bf16.mxu0 0
        %1007 = vmatpush1.bf16.msra.mxu0 %v922
        %1008 = vmatprep.subr.bf16.mxu0 0
        %1009 = vmatpush1.bf16.msra.mxu0 %v923
        %1010 = vmatprep.subr.bf16.mxu0 0
        %1011 = vmatpush1.bf16.msra.mxu0 %v924
        %1012 = vmatprep.subr.bf16.mxu0 0
        %1013 = vmatpush1.bf16.msra.mxu0 %v925
        %1014 = vmatprep.subr.bf16.mxu0 0
        %1015 = vmatpush1.bf16.msra.mxu0 %v926
        %1016 = vmatprep.subr.bf16.mxu0 0
        %1017 = vmatpush1.bf16.msra.mxu0 %v927
        %1018 = vmatprep.subr.bf16.mxu0 0
        %1019 = vmatpush1.bf16.msra.mxu0 %v928
        %1020 = vmatprep.mubr.bf16.mxu0 %v683
        %1021 = vmatmul.mubr.bf16.gmra.mrb[0].mxu0 %v640
        %v1022 = vpop.f32.mrb[0].mxu0
        %v1023 = vadd.f32 %v767, %v1022
        %v1024 = vpop.f32.mrb[0].mxu0
        %v1025 = vpop.f32.mrb[0].mxu0
        %v1026 = vpop.f32.mrb[0].mxu0
        %1027 = vdwg.mxu0
        %1028 = vmatprep.subr.bf16.mxu0 0
        %1029 = vmatpush1.bf16.msra.mxu0 %v929
        %1030 = vmatprep.subr.bf16.mxu0 0
        %1031 = vmatpush1.bf16.msra.mxu0 %v930
        %1032 = vmatprep.subr.bf16.mxu0 0
        %1033 = vmatpush1.bf16.msra.mxu0 %v931
        %1034 = vmatprep.subr.bf16.mxu0 0
        %1035 = vmatpush1.bf16.msra.mxu0 %v932
        %1036 = vmatprep.subr.bf16.mxu0 0
        %1037 = vmatpush1.bf16.msra.mxu0 %v933
        %1038 = vmatprep.subr.bf16.mxu0 0
        %1039 = vmatpush1.bf16.msra.mxu0 %v934
        %1040 = vmatprep.subr.bf16.mxu0 0
        %1041 = vmatpush1.bf16.msra.mxu0 %v935
        %1042 = vmatprep.subr.bf16.mxu0 0
        %1043 = vmatpush1.bf16.msra.mxu0 %v936
        %1044 = vmatprep.subr.bf16.mxu0 0
        %1045 = vmatpush1.bf16.msra.mxu0 %v937
        %1046 = vmatprep.subr.bf16.mxu0 0
        %1047 = vmatpush1.bf16.msra.mxu0 %v938
        %1048 = vmatprep.subr.bf16.mxu0 0
        %1049 = vmatpush1.bf16.msra.mxu0 %v939
        %1050 = vmatprep.subr.bf16.mxu0 0
        %1051 = vmatpush1.bf16.msra.mxu0 %v940
        %1052 = vmatprep.subr.bf16.mxu0 0
        %1053 = vmatpush1.bf16.msra.mxu0 %v941
        %1054 = vmatprep.subr.bf16.mxu0 0
        %1055 = vmatpush1.bf16.msra.mxu0 %v942
        %1056 = vmatprep.subr.bf16.mxu0 0
        %1057 = vmatpush1.bf16.msra.mxu0 %v943
        %1058 = vmatprep.subr.bf16.mxu0 0
        %1059 = vmatpush1.bf16.msra.mxu0 %v944
        %1060 = vmatprep.mubr.bf16.mxu0 %v644
        %1061 = vmatmul.mubr.bf16.gmra.mrb[0].mxu0 %v686
        %v1062 = vpop.f32.mrb[0].mxu0
        %v1063 = vadd.f32 %v1023, %v1062
        %v1064 = vpop.f32.mrb[0].mxu0
        %v1065 = vpop.f32.mrb[0].mxu0
        %v1066 = vpop.f32.mrb[0].mxu0
        %1067 = vdwg.mxu0
        %1068 = vmatprep.subr.bf16.mxu0 0
        %1069 = vmatpush1.bf16.msra.mxu0 %v945
        %1070 = vmatprep.subr.bf16.mxu0 0
        %1071 = vmatpush1.bf16.msra.mxu0 %v946
        %1072 = vmatprep.subr.bf16.mxu0 0
        %1073 = vmatpush1.bf16.msra.mxu0 %v947
        %1074 = vmatprep.subr.bf16.mxu0 0
        %1075 = vmatpush1.bf16.msra.mxu0 %v948
        %1076 = vmatprep.subr.bf16.mxu0 0
        %1077 = vmatpush1.bf16.msra.mxu0 0
        %1078 = vmatprep.subr.bf16.mxu0 0
        %1079 = vmatpush1.bf16.msra.mxu0 0
        %1080 = vmatprep.subr.bf16.mxu0 0
        %1081 = vmatpush1.bf16.msra.mxu0 0
        %1082 = vmatprep.subr.bf16.mxu0 0
        %1083 = vmatpush1.bf16.msra.mxu0 0
        %1084 = vmatprep.subr.bf16.mxu0 0
        %1085 = vmatpush1.bf16.msra.mxu0 0
        %1086 = vmatprep.subr.bf16.mxu0 0
        %1087 = vmatpush1.bf16.msra.mxu0 0
        %1088 = vmatprep.subr.bf16.mxu0 0
        %1089 = vmatpush1.bf16.msra.mxu0 0
        %1090 = vmatprep.subr.bf16.mxu0 0
        %1091 = vmatpush1.bf16.msra.mxu0 0
        %1092 = vmatprep.subr.bf16.mxu0 0
        %1093 = vmatpush1.bf16.msra.mxu0 0
        %1094 = vmatprep.subr.bf16.mxu0 0
        %1095 = vmatpush1.bf16.msra.mxu0 0
        %1096 = vmatprep.subr.bf16.mxu0 0
        %1097 = vmatpush1.bf16.msra.mxu0 0
        %1098 = vmatprep.subr.bf16.mxu0 0
        %1099 = vmatpush1.bf16.msra.mxu0 0
        %1100 = vmatprep.mubr.bf16.mxu0 0
        %1101 = vmatmul.mubr.bf16.gmra.mrb[0].mxu0 %v986
        %v1102 = vpop.f32.mrb[0].mxu0
        %v1103 = vadd.f32 %v1063, %v1102
        %v1104 = vpop.f32.mrb[0].mxu0
        %v1105 = vpop.f32.mrb[0].mxu0
        %v1106 = vpop.f32.mrb[0].mxu0
        %1107 = vdwg.mxu0
        %s1108 = scalar_lea.vmem %s163, 4 [#allocation2]
        %1109 = vst [vmem:[%s1108] sm:$0xf] %v1103
        %v1110 = vld [vmem:[%s643] sm:$0x7]
        %s1111 = scalar_lea.vmem %s168, 20
        %v1112 = vld [vmem:[%s1111] sm:$0x7]
        %s1113 = scalar_lea.vmem %s168, 24
        %v1114 = vld [vmem:[%s1113] sm:$0x7]
        %v1116 = vunpack.c.l.b16 %v1110
        %v1117 = vpack.c.b16 %v1116, %v1116
        %v1119 = vshrl.u32 %v1117, 16
        %v1121 = vshll.u32 %v1117, 16
        %v1123 = vrot.slane %v1121, 1
        %v1124 = vor.u32 %v1119, %v1123
        %v1126 = vunpack.c.l.b16 %v1112
        %v1127 = vpack.c.b16 %v1126, %v1126
        %1128 = vrot.lane.b32.xlu0 %v1127, 64
        %v1129 = vpop.permute.xlu0 %1128
        %v1131 = vshrl.u32 %v1127, 16
        %v1133 = vshll.u32 %v1127, 16
        %v1135 = vrot.slane %v1133, 1
        %v1136 = vor.u32 %v1131, %v1135
        %1137 = vrot.lane.b32.xlu0 %v1136, 64
        %v1138 = vpop.permute.xlu0 %1137
        %v1140 = vunpack.c.l.b16 %v1114
        %v1141 = vpack.c.b16 %v1140, %v1140
        %v1143 = vshrl.u32 %v1141, 16
        %v1145 = vshll.u32 %v1141, 16
        %v1147 = vrot.slane %v1145, 1
        %v1148 = vor.u32 %v1143, %v1147
        %v1153 = vsel %vm209, %v1124, %v1129
        %v1156 = vsel %vm209, %v1129, %v1138
        %v1160 = vld [vmem:[%s1] sm:$0xf]
        %v1161 = vld [vmem:[%s1 + $0x4] sm:$0xf]
        %v1162 = vld [vmem:[%s1 + $0x8] sm:$0xf]
        %v1163 = vld [vmem:[%s1 + $0xc] sm:$0xf]
        %v1164 = vld [vmem:[%s1 + $0x10] sm:$0xf]
        %v1165 = vld [vmem:[%s1 + $0x14] sm:$0xf]
        %v1166 = vld [vmem:[%s1 + $0x18] sm:$0xf]
        %v1167 = vld [vmem:[%s1 + $0x1c] sm:$0xf]
        %v1168 = vld [vmem:[%s1 + $0x20] sm:$0xf]
        %v1169 = vld [vmem:[%s1 + $0x24] sm:$0xf]
        %v1170 = vld [vmem:[%s1 + $0x28] sm:$0xf]
        %v1171 = vld [vmem:[%s1 + $0x2c] sm:$0xf]
        %v1172 = vld [vmem:[%s1 + $0x30] sm:$0xf]
        %v1173 = vld [vmem:[%s1 + $0x34] sm:$0xf]
        %v1174 = vld [vmem:[%s1 + $0x38] sm:$0xf]
        %v1175 = vld [vmem:[%s1 + $0x3c] sm:$0xf]
        %v1176 = vld [vmem:[%s1 + $0x40] sm:$0xf]
        %v1177 = vld [vmem:[%s1 + $0x44] sm:$0xf]
        %v1178 = vld [vmem:[%s1 + $0x48] sm:$0xf]
        %v1179 = vld [vmem:[%s1 + $0x4c] sm:$0xf]
        %v1180 = vld [vmem:[%s1 + $0x50] sm:$0xf]
        %v1181 = vld [vmem:[%s1 + $0x54] sm:$0xf]
        %v1182 = vld [vmem:[%s1 + $0x58] sm:$0xf]
        %v1183 = vld [vmem:[%s1 + $0x5c] sm:$0xf]
        %v1184 = vld [vmem:[%s1 + $0x60] sm:$0xf]
        %v1185 = vld [vmem:[%s1 + $0x64] sm:$0xf]
        %v1186 = vld [vmem:[%s1 + $0x68] sm:$0xf]
        %v1187 = vld [vmem:[%s1 + $0x6c] sm:$0xf]
        %v1188 = vld [vmem:[%s1 + $0x70] sm:$0xf]
        %v1189 = vld [vmem:[%s1 + $0x74] sm:$0xf]
        %v1190 = vld [vmem:[%s1 + $0x78] sm:$0xf]
        %v1191 = vld [vmem:[%s1 + $0x7c] sm:$0xf]
        %v1192 = vld [vmem:[%s1 + $0x80] sm:$0xf]
        %v1193 = vld [vmem:[%s1 + $0x84] sm:$0xf]
        %v1194 = vld [vmem:[%s1 + $0x88] sm:$0xf]
        %v1195 = vld [vmem:[%s1 + $0x8c] sm:$0xf]
        %v1196 = vld [vmem:[%s1 + $0x90] sm:$0xf]
        %v1197 = vld [vmem:[%s1 + $0x94] sm:$0xf]
        %v1198 = vld [vmem:[%s1 + $0x98] sm:$0xf]
        %v1199 = vld [vmem:[%s1 + $0x9c] sm:$0xf]
        %v1200 = vld [vmem:[%s1 + $0xa0] sm:$0xf]
        %v1201 = vld [vmem:[%s1 + $0xa4] sm:$0xf]
        %v1202 = vld [vmem:[%s1 + $0xa8] sm:$0xf]
        %v1203 = vld [vmem:[%s1 + $0xac] sm:$0xf]
        %v1204 = vld [vmem:[%s1 + $0xb0] sm:$0xf]
        %v1205 = vld [vmem:[%s1 + $0xb4] sm:$0xf]
        %v1206 = vld [vmem:[%s1 + $0xb8] sm:$0xf]
        %v1207 = vld [vmem:[%s1 + $0xbc] sm:$0xf]
        %v1208 = vld [vmem:[%s1 + $0xc0] sm:$0xf]
        %v1209 = vld [vmem:[%s1 + $0xc4] sm:$0xf]
        %v1210 = vld [vmem:[%s1 + $0xc8] sm:$0xf]
        %v1211 = vld [vmem:[%s1 + $0xcc] sm:$0xf]
        %v1212 = vld [vmem:[%s1 + $0xd0] sm:$0xf]
        %v1213 = vld [vmem:[%s1 + $0xd4] sm:$0xf]
        %v1214 = vld [vmem:[%s1 + $0xd8] sm:$0xf]
        %v1215 = vld [vmem:[%s1 + $0xdc] sm:$0xf]
        %v1216 = vld [vmem:[%s1 + $0xe0] sm:$0xf]
        %v1217 = vld [vmem:[%s1 + $0xe4] sm:$0xf]
        %v1218 = vld [vmem:[%s1 + $0xe8] sm:$0xf]
        %v1219 = vld [vmem:[%s1 + $0xec] sm:$0xf]
        %v1220 = vld [vmem:[%s1 + $0xf0] sm:$0xf]
        %v1221 = vld [vmem:[%s1 + $0xf4] sm:$0xf]
        %v1222 = vld [vmem:[%s1 + $0xf8] sm:$0xf]
        %v1223 = vld [vmem:[%s1 + $0xfc] sm:$0xf]
        %v1224 = vld [vmem:[%s1 + $0x100] sm:$0xf]
        %v1225 = vld [vmem:[%s1 + $0x104] sm:$0xf]
        %v1226 = vld [vmem:[%s1 + $0x108] sm:$0xf]
        %v1227 = vld [vmem:[%s1 + $0x10c] sm:$0xf]
        %v1228 = vld [vmem:[%s1 + $0x110] sm:$0xf]
        %v1229 = vld [vmem:[%s1 + $0x114] sm:$0xf]
        %v1230 = vld [vmem:[%s1 + $0x118] sm:$0xf]
        %v1231 = vld [vmem:[%s1 + $0x11c] sm:$0xf]
        %v1232 = vld [vmem:[%s2] sm:$0x1]
        %v1234 = vlaneseq
        %v1235 = vshrl.u32 %v1234, 7
        %v1236 = vsub.s32 0, %v1235
        %v1237 = vrot.slane %v1232, %v1236
        %v1311 = vunpack.c.l.b16 %v1160
        %v1312 = vunpack.c.l.b16 %v1161
        %v1313 = vunpack.c.l.b16 %v1162
        %v1314 = vunpack.c.l.b16 %v1163
        %v1315 = vunpack.c.l.b16 %v1164
        %v1316 = vunpack.c.l.b16 %v1165
        %v1317 = vunpack.c.l.b16 %v1166
        %v1318 = vunpack.c.l.b16 %v1167
        %v1319 = vunpack.c.l.b16 %v1168
        %v1320 = vunpack.c.l.b16 %v1169
        %v1321 = vunpack.c.l.b16 %v1170
        %v1322 = vunpack.c.l.b16 %v1171
        %v1323 = vunpack.c.l.b16 %v1172
        %v1324 = vunpack.c.l.b16 %v1173
        %v1325 = vunpack.c.l.b16 %v1174
        %v1326 = vunpack.c.l.b16 %v1175
        %v1327 = vunpack.c.l.b16 %v1176
        %v1328 = vunpack.c.l.b16 %v1177
        %v1329 = vunpack.c.l.b16 %v1178
        %v1330 = vunpack.c.l.b16 %v1179
        %v1331 = vunpack.c.l.b16 %v1180
        %v1332 = vunpack.c.l.b16 %v1181
        %v1333 = vunpack.c.l.b16 %v1182
        %v1334 = vunpack.c.l.b16 %v1183
        %v1335 = vunpack.c.l.b16 %v1184
        %v1336 = vunpack.c.l.b16 %v1185
        %v1337 = vunpack.c.l.b16 %v1186
        %v1338 = vunpack.c.l.b16 %v1187
        %v1339 = vunpack.c.l.b16 %v1188
        %v1340 = vunpack.c.l.b16 %v1189
        %v1341 = vunpack.c.l.b16 %v1190
        %v1342 = vunpack.c.l.b16 %v1191
        %v1343 = vunpack.c.l.b16 %v1192
        %v1344 = vunpack.c.l.b16 %v1193
        %v1345 = vunpack.c.l.b16 %v1194
        %v1346 = vunpack.c.l.b16 %v1195
        %v1347 = vunpack.c.l.b16 %v1196
        %v1348 = vunpack.c.l.b16 %v1197
        %v1349 = vunpack.c.l.b16 %v1198
        %v1350 = vunpack.c.l.b16 %v1199
        %v1351 = vunpack.c.l.b16 %v1200
        %v1352 = vunpack.c.l.b16 %v1201
        %v1353 = vunpack.c.l.b16 %v1202
        %v1354 = vunpack.c.l.b16 %v1203
        %v1355 = vunpack.c.l.b16 %v1204
        %v1356 = vunpack.c.l.b16 %v1205
        %v1357 = vunpack.c.l.b16 %v1206
        %v1358 = vunpack.c.l.b16 %v1207
        %v1359 = vunpack.c.l.b16 %v1208
        %v1360 = vunpack.c.l.b16 %v1209
        %v1361 = vunpack.c.l.b16 %v1210
        %v1362 = vunpack.c.l.b16 %v1211
        %v1363 = vunpack.c.l.b16 %v1212
        %v1364 = vunpack.c.l.b16 %v1213
        %v1365 = vunpack.c.l.b16 %v1214
        %v1366 = vunpack.c.l.b16 %v1215
        %v1367 = vunpack.c.l.b16 %v1216
        %v1368 = vunpack.c.l.b16 %v1217
        %v1369 = vunpack.c.l.b16 %v1218
        %v1370 = vunpack.c.l.b16 %v1219
        %v1371 = vunpack.c.l.b16 %v1220
        %v1372 = vunpack.c.l.b16 %v1221
        %v1373 = vunpack.c.l.b16 %v1222
        %v1374 = vunpack.c.l.b16 %v1223
        %v1375 = vunpack.c.l.b16 %v1224
        %v1376 = vunpack.c.l.b16 %v1225
        %v1377 = vunpack.c.l.b16 %v1226
        %v1378 = vunpack.c.l.b16 %v1227
        %v1379 = vunpack.c.l.b16 %v1228
        %v1380 = vunpack.c.l.b16 %v1229
        %v1381 = vunpack.c.l.b16 %v1230
        %v1382 = vunpack.c.l.b16 %v1231
        %v1383 = vpack.c.b16 %v1312, %v1311
        %v1384 = vpack.c.b16 %v1314, %v1313
        %v1385 = vpack.c.b16 %v1316, %v1315
        %v1386 = vpack.c.b16 %v1318, %v1317
        %v1387 = vpack.c.b16 %v1320, %v1319
        %v1388 = vpack.c.b16 %v1322, %v1321
        %v1389 = vpack.c.b16 %v1324, %v1323
        %v1390 = vpack.c.b16 %v1326, %v1325
        %v1391 = vpack.c.b16 %v1328, %v1327
        %v1392 = vpack.c.b16 %v1330, %v1329
        %v1393 = vpack.c.b16 %v1332, %v1331
        %v1394 = vpack.c.b16 %v1334, %v1333
        %v1395 = vpack.c.b16 %v1336, %v1335
        %v1396 = vpack.c.b16 %v1338, %v1337
        %v1397 = vpack.c.b16 %v1340, %v1339
        %v1398 = vpack.c.b16 %v1342, %v1341
        %v1399 = vpack.c.b16 %v1344, %v1343
        %v1400 = vpack.c.b16 %v1346, %v1345
        %v1401 = vpack.c.b16 %v1348, %v1347
        %v1402 = vpack.c.b16 %v1350, %v1349
        %v1403 = vpack.c.b16 %v1352, %v1351
        %v1404 = vpack.c.b16 %v1354, %v1353
        %v1405 = vpack.c.b16 %v1356, %v1355
        %v1406 = vpack.c.b16 %v1358, %v1357
        %v1407 = vpack.c.b16 %v1360, %v1359
        %v1408 = vpack.c.b16 %v1362, %v1361
        %v1409 = vpack.c.b16 %v1364, %v1363
        %v1410 = vpack.c.b16 %v1366, %v1365
        %v1411 = vpack.c.b16 %v1368, %v1367
        %v1412 = vpack.c.b16 %v1370, %v1369
        %v1413 = vpack.c.b16 %v1372, %v1371
        %v1414 = vpack.c.b16 %v1374, %v1373
        %v1415 = vpack.c.b16 %v1376, %v1375
        %v1416 = vpack.c.b16 %v1378, %v1377
        %v1417 = vpack.c.b16 %v1380, %v1379
        %v1418 = vpack.c.b16 %v1382, %v1381
        %v1456 = vsel %vm209, %v1148, 0
        %1458 = vmatprep.subr.bf16.mxu0 0
        %1459 = vmatpush1.bf16.msra.mxu0 %v1383
        %1460 = vmatprep.subr.bf16.mxu0 0
        %1461 = vmatpush1.bf16.msra.mxu0 %v1384
        %1462 = vmatprep.subr.bf16.mxu0 0
        %1463 = vmatpush1.bf16.msra.mxu0 %v1385
        %1464 = vmatprep.subr.bf16.mxu0 0
        %1465 = vmatpush1.bf16.msra.mxu0 %v1386
        %1466 = vmatprep.subr.bf16.mxu0 0
        %1467 = vmatpush1.bf16.msra.mxu0 %v1387
        %1468 = vmatprep.subr.bf16.mxu0 0
        %1469 = vmatpush1.bf16.msra.mxu0 %v1388
        %1470 = vmatprep.subr.bf16.mxu0 0
        %1471 = vmatpush1.bf16.msra.mxu0 %v1389
        %1472 = vmatprep.subr.bf16.mxu0 0
        %1473 = vmatpush1.bf16.msra.mxu0 %v1390
        %1474 = vmatprep.subr.bf16.mxu0 0
        %1475 = vmatpush1.bf16.msra.mxu0 %v1391
        %1476 = vmatprep.subr.bf16.mxu0 0
        %1477 = vmatpush1.bf16.msra.mxu0 %v1392
        %1478 = vmatprep.subr.bf16.mxu0 0
        %1479 = vmatpush1.bf16.msra.mxu0 %v1393
        %1480 = vmatprep.subr.bf16.mxu0 0
        %1481 = vmatpush1.bf16.msra.mxu0 %v1394
        %1482 = vmatprep.subr.bf16.mxu0 0
        %1483 = vmatpush1.bf16.msra.mxu0 %v1395
        %1484 = vmatprep.subr.bf16.mxu0 0
        %1485 = vmatpush1.bf16.msra.mxu0 %v1396
        %1486 = vmatprep.subr.bf16.mxu0 0
        %1487 = vmatpush1.bf16.msra.mxu0 %v1397
        %1488 = vmatprep.subr.bf16.mxu0 0
        %1489 = vmatpush1.bf16.msra.mxu0 %v1398
        %1490 = vmatprep.mubr.bf16.mxu0 %v1153
        %1491 = vmatmul.mubr.bf16.gmra.mrb[0].mxu0 %v1110
        %v1492 = vpop.f32.mrb[0].mxu0
        %v1493 = vadd.f32 %v1237, %v1492
        %v1494 = vpop.f32.mrb[0].mxu0
        %v1495 = vpop.f32.mrb[0].mxu0
        %v1496 = vpop.f32.mrb[0].mxu0
        %1497 = vdwg.mxu0
        %1498 = vmatprep.subr.bf16.mxu0 0
        %1499 = vmatpush1.bf16.msra.mxu0 %v1399
        %1500 = vmatprep.subr.bf16.mxu0 0
        %1501 = vmatpush1.bf16.msra.mxu0 %v1400
        %1502 = vmatprep.subr.bf16.mxu0 0
        %1503 = vmatpush1.bf16.msra.mxu0 %v1401
        %1504 = vmatprep.subr.bf16.mxu0 0
        %1505 = vmatpush1.bf16.msra.mxu0 %v1402
        %1506 = vmatprep.subr.bf16.mxu0 0
        %1507 = vmatpush1.bf16.msra.mxu0 %v1403
        %1508 = vmatprep.subr.bf16.mxu0 0
        %1509 = vmatpush1.bf16.msra.mxu0 %v1404
        %1510 = vmatprep.subr.bf16.mxu0 0
        %1511 = vmatpush1.bf16.msra.mxu0 %v1405
        %1512 = vmatprep.subr.bf16.mxu0 0
        %1513 = vmatpush1.bf16.msra.mxu0 %v1406
        %1514 = vmatprep.subr.bf16.mxu0 0
        %1515 = vmatpush1.bf16.msra.mxu0 %v1407
        %1516 = vmatprep.subr.bf16.mxu0 0
        %1517 = vmatpush1.bf16.msra.mxu0 %v1408
        %1518 = vmatprep.subr.bf16.mxu0 0
        %1519 = vmatpush1.bf16.msra.mxu0 %v1409
        %1520 = vmatprep.subr.bf16.mxu0 0
        %1521 = vmatpush1.bf16.msra.mxu0 %v1410
        %1522 = vmatprep.subr.bf16.mxu0 0
        %1523 = vmatpush1.bf16.msra.mxu0 %v1411
        %1524 = vmatprep.subr.bf16.mxu0 0
        %1525 = vmatpush1.bf16.msra.mxu0 %v1412
        %1526 = vmatprep.subr.bf16.mxu0 0
        %1527 = vmatpush1.bf16.msra.mxu0 %v1413
        %1528 = vmatprep.subr.bf16.mxu0 0
        %1529 = vmatpush1.bf16.msra.mxu0 %v1414
        %1530 = vmatprep.mubr.bf16.mxu0 %v1114
        %1531 = vmatmul.mubr.bf16.gmra.mrb[0].mxu0 %v1156
        %v1532 = vpop.f32.mrb[0].mxu0
        %v1533 = vadd.f32 %v1493, %v1532
        %v1534 = vpop.f32.mrb[0].mxu0
        %v1535 = vpop.f32.mrb[0].mxu0
        %v1536 = vpop.f32.mrb[0].mxu0
        %1537 = vdwg.mxu0
        %1538 = vmatprep.subr.bf16.mxu0 0
        %1539 = vmatpush1.bf16.msra.mxu0 %v1415
        %1540 = vmatprep.subr.bf16.mxu0 0
        %1541 = vmatpush1.bf16.msra.mxu0 %v1416
        %1542 = vmatprep.subr.bf16.mxu0 0
        %1543 = vmatpush1.bf16.msra.mxu0 %v1417
        %1544 = vmatprep.subr.bf16.mxu0 0
        %1545 = vmatpush1.bf16.msra.mxu0 %v1418
        %1546 = vmatprep.subr.bf16.mxu0 0
        %1547 = vmatpush1.bf16.msra.mxu0 0
        %1548 = vmatprep.subr.bf16.mxu0 0
        %1549 = vmatpush1.bf16.msra.mxu0 0
        %1550 = vmatprep.subr.bf16.mxu0 0
        %1551 = vmatpush1.bf16.msra.mxu0 0
        %1552 = vmatprep.subr.bf16.mxu0 0
        %1553 = vmatpush1.bf16.msra.mxu0 0
        %1554 = vmatprep.subr.bf16.mxu0 0
        %1555 = vmatpush1.bf16.msra.mxu0 0
        %1556 = vmatprep.subr.bf16.mxu0 0
        %1557 = vmatpush1.bf16.msra.mxu0 0
        %1558 = vmatprep.subr.bf16.mxu0 0
        %1559 = vmatpush1.bf16.msra.mxu0 0
        %1560 = vmatprep.subr.bf16.mxu0 0
        %1561 = vmatpush1.bf16.msra.mxu0 0
        %1562 = vmatprep.subr.bf16.mxu0 0
        %1563 = vmatpush1.bf16.msra.mxu0 0
        %1564 = vmatprep.subr.bf16.mxu0 0
        %1565 = vmatpush1.bf16.msra.mxu0 0
        %1566 = vmatprep.subr.bf16.mxu0 0
        %1567 = vmatpush1.bf16.msra.mxu0 0
        %1568 = vmatprep.subr.bf16.mxu0 0
        %1569 = vmatpush1.bf16.msra.mxu0 0
        %1570 = vmatprep.mubr.bf16.mxu0 0
        %1571 = vmatmul.mubr.bf16.gmra.mrb[0].mxu0 %v1456
        %v1572 = vpop.f32.mrb[0].mxu0
        %v1573 = vadd.f32 %v1533, %v1572
        %v1574 = vpop.f32.mrb[0].mxu0
        %v1575 = vpop.f32.mrb[0].mxu0
        %v1576 = vpop.f32.mrb[0].mxu0
        %1577 = vdwg.mxu0
        %s1578 = scalar_lea.vmem %s163, 8 [#allocation2]
        %1579 = vst [vmem:[%s1578] sm:$0xf] %v1573
        %v1580 = vld [vmem:[%s1113] sm:$0x7]
        %s1581 = scalar_lea.vmem %s168, 28
        %v1582 = vld [vmem:[%s1581] sm:$0x7]
        %s1583 = scalar_lea.vmem %s168, 32
        %v1584 = vld [vmem:[%s1583] sm:$0x7]
        %v1586 = vunpack.c.l.b16 %v1580
        %v1587 = vpack.c.b16 %v1586, %v1586
        %v1589 = vshrl.u32 %v1587, 16
        %v1591 = vshll.u32 %v1587, 16
        %v1593 = vrot.slane %v1591, 1
        %v1594 = vor.u32 %v1589, %v1593
        %v1596 = vunpack.c.l.b16 %v1582
        %v1597 = vpack.c.b16 %v1596, %v1596
        %1598 = vrot.lane.b32.xlu0 %v1597, 64
        %v1599 = vpop.permute.xlu0 %1598
        %v1601 = vshrl.u32 %v1597, 16
        %v1603 = vshll.u32 %v1597, 16
        %v1605 = vrot.slane %v1603, 1
        %v1606 = vor.u32 %v1601, %v1605
        %1607 = vrot.lane.b32.xlu0 %v1606, 64
        %v1608 = vpop.permute.xlu0 %1607
        %v1610 = vunpack.c.l.b16 %v1584
        %v1611 = vpack.c.b16 %v1610, %v1610
        %v1613 = vshrl.u32 %v1611, 16
        %v1615 = vshll.u32 %v1611, 16
        %v1617 = vrot.slane %v1615, 1
        %v1618 = vor.u32 %v1613, %v1617
        %v1623 = vsel %vm209, %v1594, %v1599
        %v1626 = vsel %vm209, %v1599, %v1608
        %v1630 = vld [vmem:[%s1] sm:$0xf]
        %v1631 = vld [vmem:[%s1 + $0x4] sm:$0xf]
        %v1632 = vld [vmem:[%s1 + $0x8] sm:$0xf]
        %v1633 = vld [vmem:[%s1 + $0xc] sm:$0xf]
        %v1634 = vld [vmem:[%s1 + $0x10] sm:$0xf]
        %v1635 = vld [vmem:[%s1 + $0x14] sm:$0xf]
        %v1636 = vld [vmem:[%s1 + $0x18] sm:$0xf]
        %v1637 = vld [vmem:[%s1 + $0x1c] sm:$0xf]
        %v1638 = vld [vmem:[%s1 + $0x20] sm:$0xf]
        %v1639 = vld [vmem:[%s1 + $0x24] sm:$0xf]
        %v1640 = vld [vmem:[%s1 + $0x28] sm:$0xf]
        %v1641 = vld [vmem:[%s1 + $0x2c] sm:$0xf]
        %v1642 = vld [vmem:[%s1 + $0x30] sm:$0xf]
        %v1643 = vld [vmem:[%s1 + $0x34] sm:$0xf]
        %v1644 = vld [vmem:[%s1 + $0x38] sm:$0xf]
        %v1645 = vld [vmem:[%s1 + $0x3c] sm:$0xf]
        %v1646 = vld [vmem:[%s1 + $0x40] sm:$0xf]
        %v1647 = vld [vmem:[%s1 + $0x44] sm:$0xf]
        %v1648 = vld [vmem:[%s1 + $0x48] sm:$0xf]
        %v1649 = vld [vmem:[%s1 + $0x4c] sm:$0xf]
        %v1650 = vld [vmem:[%s1 + $0x50] sm:$0xf]
        %v1651 = vld [vmem:[%s1 + $0x54] sm:$0xf]
        %v1652 = vld [vmem:[%s1 + $0x58] sm:$0xf]
        %v1653 = vld [vmem:[%s1 + $0x5c] sm:$0xf]
        %v1654 = vld [vmem:[%s1 + $0x60] sm:$0xf]
        %v1655 = vld [vmem:[%s1 + $0x64] sm:$0xf]
        %v1656 = vld [vmem:[%s1 + $0x68] sm:$0xf]
        %v1657 = vld [vmem:[%s1 + $0x6c] sm:$0xf]
        %v1658 = vld [vmem:[%s1 + $0x70] sm:$0xf]
        %v1659 = vld [vmem:[%s1 + $0x74] sm:$0xf]
        %v1660 = vld [vmem:[%s1 + $0x78] sm:$0xf]
        %v1661 = vld [vmem:[%s1 + $0x7c] sm:$0xf]
        %v1662 = vld [vmem:[%s1 + $0x80] sm:$0xf]
        %v1663 = vld [vmem:[%s1 + $0x84] sm:$0xf]
        %v1664 = vld [vmem:[%s1 + $0x88] sm:$0xf]
        %v1665 = vld [vmem:[%s1 + $0x8c] sm:$0xf]
        %v1666 = vld [vmem:[%s1 + $0x90] sm:$0xf]
        %v1667 = vld [vmem:[%s1 + $0x94] sm:$0xf]
        %v1668 = vld [vmem:[%s1 + $0x98] sm:$0xf]
        %v1669 = vld [vmem:[%s1 + $0x9c] sm:$0xf]
        %v1670 = vld [vmem:[%s1 + $0xa0] sm:$0xf]
        %v1671 = vld [vmem:[%s1 + $0xa4] sm:$0xf]
        %v1672 = vld [vmem:[%s1 + $0xa8] sm:$0xf]
        %v1673 = vld [vmem:[%s1 + $0xac] sm:$0xf]
        %v1674 = vld [vmem:[%s1 + $0xb0] sm:$0xf]
        %v1675 = vld [vmem:[%s1 + $0xb4] sm:$0xf]
        %v1676 = vld [vmem:[%s1 + $0xb8] sm:$0xf]
        %v1677 = vld [vmem:[%s1 + $0xbc] sm:$0xf]
        %v1678 = vld [vmem:[%s1 + $0xc0] sm:$0xf]
        %v1679 = vld [vmem:[%s1 + $0xc4] sm:$0xf]
        %v1680 = vld [vmem:[%s1 + $0xc8] sm:$0xf]
        %v1681 = vld [vmem:[%s1 + $0xcc] sm:$0xf]
        %v1682 = vld [vmem:[%s1 + $0xd0] sm:$0xf]
        %v1683 = vld [vmem:[%s1 + $0xd4] sm:$0xf]
        %v1684 = vld [vmem:[%s1 + $0xd8] sm:$0xf]
        %v1685 = vld [vmem:[%s1 + $0xdc] sm:$0xf]
        %v1686 = vld [vmem:[%s1 + $0xe0] sm:$0xf]
        %v1687 = vld [vmem:[%s1 + $0xe4] sm:$0xf]
        %v1688 = vld [vmem:[%s1 + $0xe8] sm:$0xf]
        %v1689 = vld [vmem:[%s1 + $0xec] sm:$0xf]
        %v1690 = vld [vmem:[%s1 + $0xf0] sm:$0xf]
        %v1691 = vld [vmem:[%s1 + $0xf4] sm:$0xf]
        %v1692 = vld [vmem:[%s1 + $0xf8] sm:$0xf]
        %v1693 = vld [vmem:[%s1 + $0xfc] sm:$0xf]
        %v1694 = vld [vmem:[%s1 + $0x100] sm:$0xf]
        %v1695 = vld [vmem:[%s1 + $0x104] sm:$0xf]
        %v1696 = vld [vmem:[%s1 + $0x108] sm:$0xf]
        %v1697 = vld [vmem:[%s1 + $0x10c] sm:$0xf]
        %v1698 = vld [vmem:[%s1 + $0x110] sm:$0xf]
        %v1699 = vld [vmem:[%s1 + $0x114] sm:$0xf]
        %v1700 = vld [vmem:[%s1 + $0x118] sm:$0xf]
        %v1701 = vld [vmem:[%s1 + $0x11c] sm:$0xf]
        %v1702 = vld [vmem:[%s2] sm:$0x1]
        %v1704 = vlaneseq
        %v1705 = vshrl.u32 %v1704, 7
        %v1706 = vsub.s32 0, %v1705
        %v1707 = vrot.slane %v1702, %v1706
        %v1781 = vunpack.c.l.b16 %v1630
        %v1782 = vunpack.c.l.b16 %v1631
        %v1783 = vunpack.c.l.b16 %v1632
        %v1784 = vunpack.c.l.b16 %v1633
        %v1785 = vunpack.c.l.b16 %v1634
        %v1786 = vunpack.c.l.b16 %v1635
        %v1787 = vunpack.c.l.b16 %v1636
        %v1788 = vunpack.c.l.b16 %v1637
        %v1789 = vunpack.c.l.b16 %v1638
        %v1790 = vunpack.c.l.b16 %v1639
        %v1791 = vunpack.c.l.b16 %v1640
        %v1792 = vunpack.c.l.b16 %v1641
        %v1793 = vunpack.c.l.b16 %v1642
        %v1794 = vunpack.c.l.b16 %v1643
        %v1795 = vunpack.c.l.b16 %v1644
        %v1796 = vunpack.c.l.b16 %v1645
        %v1797 = vunpack.c.l.b16 %v1646
        %v1798 = vunpack.c.l.b16 %v1647
        %v1799 = vunpack.c.l.b16 %v1648
        %v1800 = vunpack.c.l.b16 %v1649
        %v1801 = vunpack.c.l.b16 %v1650
        %v1802 = vunpack.c.l.b16 %v1651
        %v1803 = vunpack.c.l.b16 %v1652
        %v1804 = vunpack.c.l.b16 %v1653
        %v1805 = vunpack.c.l.b16 %v1654
        %v1806 = vunpack.c.l.b16 %v1655
        %v1807 = vunpack.c.l.b16 %v1656
        %v1808 = vunpack.c.l.b16 %v1657
        %v1809 = vunpack.c.l.b16 %v1658
        %v1810 = vunpack.c.l.b16 %v1659
        %v1811 = vunpack.c.l.b16 %v1660
        %v1812 = vunpack.c.l.b16 %v1661
        %v1813 = vunpack.c.l.b16 %v1662
        %v1814 = vunpack.c.l.b16 %v1663
        %v1815 = vunpack.c.l.b16 %v1664
        %v1816 = vunpack.c.l.b16 %v1665
        %v1817 = vunpack.c.l.b16 %v1666
        %v1818 = vunpack.c.l.b16 %v1667
        %v1819 = vunpack.c.l.b16 %v1668
        %v1820 = vunpack.c.l.b16 %v1669
        %v1821 = vunpack.c.l.b16 %v1670
        %v1822 = vunpack.c.l.b16 %v1671
        %v1823 = vunpack.c.l.b16 %v1672
        %v1824 = vunpack.c.l.b16 %v1673
        %v1825 = vunpack.c.l.b16 %v1674
        %v1826 = vunpack.c.l.b16 %v1675
        %v1827 = vunpack.c.l.b16 %v1676
        %v1828 = vunpack.c.l.b16 %v1677
        %v1829 = vunpack.c.l.b16 %v1678
        %v1830 = vunpack.c.l.b16 %v1679
        %v1831 = vunpack.c.l.b16 %v1680
        %v1832 = vunpack.c.l.b16 %v1681
        %v1833 = vunpack.c.l.b16 %v1682
        %v1834 = vunpack.c.l.b16 %v1683
        %v1835 = vunpack.c.l.b16 %v1684
        %v1836 = vunpack.c.l.b16 %v1685
        %v1837 = vunpack.c.l.b16 %v1686
        %v1838 = vunpack.c.l.b16 %v1687
        %v1839 = vunpack.c.l.b16 %v1688
        %v1840 = vunpack.c.l.b16 %v1689
        %v1841 = vunpack.c.l.b16 %v1690
        %v1842 = vunpack.c.l.b16 %v1691
        %v1843 = vunpack.c.l.b16 %v1692
        %v1844 = vunpack.c.l.b16 %v1693
        %v1845 = vunpack.c.l.b16 %v1694
        %v1846 = vunpack.c.l.b16 %v1695
        %v1847 = vunpack.c.l.b16 %v1696
        %v1848 = vunpack.c.l.b16 %v1697
        %v1849 = vunpack.c.l.b16 %v1698
        %v1850 = vunpack.c.l.b16 %v1699
        %v1851 = vunpack.c.l.b16 %v1700
        %v1852 = vunpack.c.l.b16 %v1701
        %v1853 = vpack.c.b16 %v1782, %v1781
        %v1854 = vpack.c.b16 %v1784, %v1783
        %v1855 = vpack.c.b16 %v1786, %v1785
        %v1856 = vpack.c.b16 %v1788, %v1787
        %v1857 = vpack.c.b16 %v1790, %v1789
        %v1858 = vpack.c.b16 %v1792, %v1791
        %v1859 = vpack.c.b16 %v1794, %v1793
        %v1860 = vpack.c.b16 %v1796, %v1795
        %v1861 = vpack.c.b16 %v1798, %v1797
        %v1862 = vpack.c.b16 %v1800, %v1799
        %v1863 = vpack.c.b16 %v1802, %v1801
        %v1864 = vpack.c.b16 %v1804, %v1803
        %v1865 = vpack.c.b16 %v1806, %v1805
        %v1866 = vpack.c.b16 %v1808, %v1807
        %v1867 = vpack.c.b16 %v1810, %v1809
        %v1868 = vpack.c.b16 %v1812, %v1811
        %v1869 = vpack.c.b16 %v1814, %v1813
        %v1870 = vpack.c.b16 %v1816, %v1815
        %v1871 = vpack.c.b16 %v1818, %v1817
        %v1872 = vpack.c.b16 %v1820, %v1819
        %v1873 = vpack.c.b16 %v1822, %v1821
        %v1874 = vpack.c.b16 %v1824, %v1823
        %v1875 = vpack.c.b16 %v1826, %v1825
        %v1876 = vpack.c.b16 %v1828, %v1827
        %v1877 = vpack.c.b16 %v1830, %v1829
        %v1878 = vpack.c.b16 %v1832, %v1831
        %v1879 = vpack.c.b16 %v1834, %v1833
        %v1880 = vpack.c.b16 %v1836, %v1835
        %v1881 = vpack.c.b16 %v1838, %v1837
        %v1882 = vpack.c.b16 %v1840, %v1839
        %v1883 = vpack.c.b16 %v1842, %v1841
        %v1884 = vpack.c.b16 %v1844, %v1843
        %v1885 = vpack.c.b16 %v1846, %v1845
        %v1886 = vpack.c.b16 %v1848, %v1847
        %v1887 = vpack.c.b16 %v1850, %v1849
        %v1888 = vpack.c.b16 %v1852, %v1851
        %v1926 = vsel %vm209, %v1618, 0
        %1928 = vmatprep.subr.bf16.mxu0 0
        %1929 = vmatpush1.bf16.msra.mxu0 %v1853
        %1930 = vmatprep.subr.bf16.mxu0 0
        %1931 = vmatpush1.bf16.msra.mxu0 %v1854
        %1932 = vmatprep.subr.bf16.mxu0 0
        %1933 = vmatpush1.bf16.msra.mxu0 %v1855
        %1934 = vmatprep.subr.bf16.mxu0 0
        %1935 = vmatpush1.bf16.msra.mxu0 %v1856
        %1936 = vmatprep.subr.bf16.mxu0 0
        %1937 = vmatpush1.bf16.msra.mxu0 %v1857
        %1938 = vmatprep.subr.bf16.mxu0 0
        %1939 = vmatpush1.bf16.msra.mxu0 %v1858
        %1940 = vmatprep.subr.bf16.mxu0 0
        %1941 = vmatpush1.bf16.msra.mxu0 %v1859
        %1942 = vmatprep.subr.bf16.mxu0 0
        %1943 = vmatpush1.bf16.msra.mxu0 %v1860
        %1944 = vmatprep.subr.bf16.mxu0 0
        %1945 = vmatpush1.bf16.msra.mxu0 %v1861
        %1946 = vmatprep.subr.bf16.mxu0 0
        %1947 = vmatpush1.bf16.msra.mxu0 %v1862
        %1948 = vmatprep.subr.bf16.mxu0 0
        %1949 = vmatpush1.bf16.msra.mxu0 %v1863
        %1950 = vmatprep.subr.bf16.mxu0 0
        %1951 = vmatpush1.bf16.msra.mxu0 %v1864
        %1952 = vmatprep.subr.bf16.mxu0 0
        %1953 = vmatpush1.bf16.msra.mxu0 %v1865
        %1954 = vmatprep.subr.bf16.mxu0 0
        %1955 = vmatpush1.bf16.msra.mxu0 %v1866
        %1956 = vmatprep.subr.bf16.mxu0 0
        %1957 = vmatpush1.bf16.msra.mxu0 %v1867
        %1958 = vmatprep.subr.bf16.mxu0 0
        %1959 = vmatpush1.bf16.msra.mxu0 %v1868
        %1960 = vmatprep.mubr.bf16.mxu0 %v1623
        %1961 = vmatmul.mubr.bf16.gmra.mrb[0].mxu0 %v1580
        %v1962 = vpop.f32.mrb[0].mxu0
        %v1963 = vadd.f32 %v1707, %v1962
        %v1964 = vpop.f32.mrb[0].mxu0
        %v1965 = vpop.f32.mrb[0].mxu0
        %v1966 = vpop.f32.mrb[0].mxu0
        %1967 = vdwg.mxu0
        %1968 = vmatprep.subr.bf16.mxu0 0
        %1969 = vmatpush1.bf16.msra.mxu0 %v1869
        %1970 = vmatprep.subr.bf16.mxu0 0
        %1971 = vmatpush1.bf16.msra.mxu0 %v1870
        %1972 = vmatprep.subr.bf16.mxu0 0
        %1973 = vmatpush1.bf16.msra.mxu0 %v1871
        %1974 = vmatprep.subr.bf16.mxu0 0
        %1975 = vmatpush1.bf16.msra.mxu0 %v1872
        %1976 = vmatprep.subr.bf16.mxu0 0
        %1977 = vmatpush1.bf16.msra.mxu0 %v1873
        %1978 = vmatprep.subr.bf16.mxu0 0
        %1979 = vmatpush1.bf16.msra.mxu0 %v1874
        %1980 = vmatprep.subr.bf16.mxu0 0
        %1981 = vmatpush1.bf16.msra.mxu0 %v1875
        %1982 = vmatprep.subr.bf16.mxu0 0
        %1983 = vmatpush1.bf16.msra.mxu0 %v1876
        %1984 = vmatprep.subr.bf16.mxu0 0
        %1985 = vmatpush1.bf16.msra.mxu0 %v1877
        %1986 = vmatprep.subr.bf16.mxu0 0
        %1987 = vmatpush1.bf16.msra.mxu0 %v1878
        %1988 = vmatprep.subr.bf16.mxu0 0
        %1989 = vmatpush1.bf16.msra.mxu0 %v1879
        %1990 = vmatprep.subr.bf16.mxu0 0
        %1991 = vmatpush1.bf16.msra.mxu0 %v1880
        %1992 = vmatprep.subr.bf16.mxu0 0
        %1993 = vmatpush1.bf16.msra.mxu0 %v1881
        %1994 = vmatprep.subr.bf16.mxu0 0
        %1995 = vmatpush1.bf16.msra.mxu0 %v1882
        %1996 = vmatprep.subr.bf16.mxu0 0
        %1997 = vmatpush1.bf16.msra.mxu0 %v1883
        %1998 = vmatprep.subr.bf16.mxu0 0
        %1999 = vmatpush1.bf16.msra.mxu0 %v1884
        %2000 = vmatprep.mubr.bf16.mxu0 %v1584
        %2001 = vmatmul.mubr.bf16.gmra.mrb[0].mxu0 %v1626
        %v2002 = vpop.f32.mrb[0].mxu0
        %v2003 = vadd.f32 %v1963, %v2002
        %v2004 = vpop.f32.mrb[0].mxu0
        %v2005 = vpop.f32.mrb[0].mxu0
        %v2006 = vpop.f32.mrb[0].mxu0
        %2007 = vdwg.mxu0
        %2008 = vmatprep.subr.bf16.mxu0 0
        %2009 = vmatpush1.bf16.msra.mxu0 %v1885
        %2010 = vmatprep.subr.bf16.mxu0 0
        %2011 = vmatpush1.bf16.msra.mxu0 %v1886
        %2012 = vmatprep.subr.bf16.mxu0 0
        %2013 = vmatpush1.bf16.msra.mxu0 %v1887
        %2014 = vmatprep.subr.bf16.mxu0 0
        %2015 = vmatpush1.bf16.msra.mxu0 %v1888
        %2016 = vmatprep.subr.bf16.mxu0 0
        %2017 = vmatpush1.bf16.msra.mxu0 0
        %2018 = vmatprep.subr.bf16.mxu0 0
        %2019 = vmatpush1.bf16.msra.mxu0 0
        %2020 = vmatprep.subr.bf16.mxu0 0
        %2021 = vmatpush1.bf16.msra.mxu0 0
        %2022 = vmatprep.subr.bf16.mxu0 0
        %2023 = vmatpush1.bf16.msra.mxu0 0
        %2024 = vmatprep.subr.bf16.mxu0 0
        %2025 = vmatpush1.bf16.msra.mxu0 0
        %2026 = vmatprep.subr.bf16.mxu0 0
        %2027 = vmatpush1.bf16.msra.mxu0 0
        %2028 = vmatprep.subr.bf16.mxu0 0
        %2029 = vmatpush1.bf16.msra.mxu0 0
        %2030 = vmatprep.subr.bf16.mxu0 0
        %2031 = vmatpush1.bf16.msra.mxu0 0
        %2032 = vmatprep.subr.bf16.mxu0 0
        %2033 = vmatpush1.bf16.msra.mxu0 0
        %2034 = vmatprep.subr.bf16.mxu0 0
        %2035 = vmatpush1.bf16.msra.mxu0 0
        %2036 = vmatprep.subr.bf16.mxu0 0
        %2037 = vmatpush1.bf16.msra.mxu0 0
        %2038 = vmatprep.subr.bf16.mxu0 0
        %2039 = vmatpush1.bf16.msra.mxu0 0
        %2040 = vmatprep.mubr.bf16.mxu0 0
        %2041 = vmatmul.mubr.bf16.gmra.mrb[0].mxu0 %v1926
        %v2042 = vpop.f32.mrb[0].mxu0
        %v2043 = vadd.f32 %v2003, %v2042
        %v2044 = vpop.f32.mrb[0].mxu0
        %v2045 = vpop.f32.mrb[0].mxu0
        %v2046 = vpop.f32.mrb[0].mxu0
        %2047 = vdwg.mxu0
        %s2048 = scalar_lea.vmem %s163, 12 [#allocation2]
        %2049 = vst [vmem:[%s2048] sm:$0xf] %v2043
        %s2050 = sand.u32 %s93, 1
        %s2051 = scalar_lea.sflag [#allocation3], %s2050
        %s2052 = sand.u32 %s93, 1
        %s2053 = smul.addr %s2052, 16
        %s2054 = scalar_lea.vmem [#allocation2], %s2053
        // Predicated region
        $region33: #{stack_conv_patch_embed_forward.3} parent=31 // pred_check
          %p2055 = pneg %p103
        $region34: #{stack_conv_patch_embed_forward.3} parent=31 // pred_check_branch
          %2057 = sbr.rel (%p2055) target = $region36
        $region35: #{stack_conv_patch_embed_forward.3} parent=31 // pred_region
          %s2059 = ssub.s32 256, 256
          %2060 = vsyncadd %s2051, %s2059
          %s2061 = smul.addr %s17, 4
          %s2062 = smul.addr %s2061, 64
          %s2063 = scalar_lea.hbm %s3, %s2062
          %s2064 = sshll.u32 %s2054, 4
          %s2065 = int_to_ptr.vmem [resolvable:$true] %s2064
          %2070 = dma.vmem_to_hbm [thread:$0]  %s2065, 256, %s2063, %s2051, 64, 64, 4
        $region36: #{stack_conv_patch_embed_forward.3} parent=31 // pred_fallthru
          _
      $region32: #{stack_conv_patch_embed_forward.3} parent=5 // pred_fallthru
        _
      %p2071 = scmp.le.s32.totalorder 2, %s12
      // Predicated region
      $region37: #{stack_conv_patch_embed_forward.3} parent=5 // pred_check
        %p2072 = pneg %p2071
      $region38: #{stack_conv_patch_embed_forward.3} parent=5 // pred_check_branch
        %2074 = sbr.rel (%p2072) target = $region40
      $region39: #{stack_conv_patch_embed_forward.3} parent=5 // pred_region
        %s2075 = ssub.s32 %s12, 2
        // Predicated region
        $region41: #{stack_conv_patch_embed_forward.3} parent=39 // pred_check
          %p2076 = pneg %p109
        $region42: #{stack_conv_patch_embed_forward.3} parent=39 // pred_check_branch
          %2078 = sbr.rel (%p2076) target = $region44
        $region43: #{stack_conv_patch_embed_forward.3} parent=39 // pred_region
          %s2079 = sand.u32 %s94, 1
          %s2080 = scalar_lea.sflag [#allocation3], %s2079
          %s2081 = sand.u32 %s94, 1
          %s2082 = smul.addr %s2081, 16
          %s2083 = scalar_lea.vmem [#allocation2], %s2082
          %2084 = dma.done %s2080, 256
        $region44: #{stack_conv_patch_embed_forward.3} parent=39 // pred_fallthru
          _
      $region40: #{stack_conv_patch_embed_forward.3} parent=5 // pred_fallthru
        _
    $region6: #{stack_conv_patch_embed_forward.3} parent=1 // loop_footer
      %s16 = sadd.s32 1, %s12
    $region7: #{stack_conv_patch_embed_forward.3} parent=1 // loop_footer_branch
      %11 = sbr.rel target = $region3
    $region8: #{stack_conv_patch_embed_forward.3} parent=1 // loop_exit
      _
    %2085 = vsyncpa [#allocation3], 1
    %s2086 = scalar_lea.sflag [#allocation3], 1
    %2087 = vsyncpa %s2086, 1

</llo_original>
